<compile_context>
chip_gen: v7x
topology: tpu7x:2x2x1
jax: 0.10.0
libtpu: 0.0.40
codegen_flags: <defaults>
</compile_context>

<pallas_src>
import jax
import jax.numpy as jnp
from jax import lax
from jax.experimental import pallas as pl
from jax.experimental.pallas import tpu as pltpu


# ----------------------------------------------------------------------------
# Fused Pallas kernel
# ----------------------------------------------------------------------------
def _fused_autoencoder_kernel(
    x_ref,        # (T*Bp, I)   time-major, batch-padded, flattened input
    ewih_ref,     # (I, 4He)    encoder W_ih^T, gate cols [i, f, o, g]
    ewhh_ref,     # (He, 4He)   encoder W_hh^T, gate cols [i, f, o, g]
    eb_ref,       # (1, 4He)    encoder b_ih + b_hh, gate cols [i, f, o, g]
    dwih_ref,     # (He, 4Hd)   decoder W_ih^T, gate cols [i, f, o, g]
    dwhh_ref,     # (Hd, 4Hd)   decoder W_hh^T, gate cols [i, f, o, g]
    db_ref,       # (1, 4Hd)    decoder b_ih + b_hh, gate cols [i, f, o, g]
    lw_ref,       # (Hd, I)     linear W^T
    lb_ref,       # (1, I)      linear b
    out_ref,      # (T*Bp, I)   time-major flattened reconstruction
    xp_sc,        # (T*Bp, 4He) scratch: hoisted encoder input projection
    he_sc, ce_sc,  # (Bp, He)   encoder hidden / cell state
    hd_sc, cd_sc,  # (Bp, Hd)   decoder hidden / cell state
    hs_sc,        # (T*Bp, Hd)  scratch: decoder hidden states (time-major)
):
    Bp, He = he_sc.shape
    Hd = hd_sc.shape[1]
    T = xp_sc.shape[0] // Bp
    unroll = min(T, 8)   # partial unroll: LLO visibility without code blow-up

    # ---------------- encoder ----------------
    # Hoisted input projection for ALL time steps in one MXU pass.
    xp_sc[...] = (
        jnp.dot(x_ref[...], ewih_ref[...], preferred_element_type=jnp.float32)
        + eb_ref[...]
    )

    he_sc[...] = jnp.zeros_like(he_sc)
    ce_sc[...] = jnp.zeros_like(ce_sc)

    # TODO(synk): hold W_hh stationary in the MXU (pltpu.matmul_push_rhs /
    # matmul_acc_lhs / matmul_pop) to avoid re-pushing the RHS every step; kept
    # jnp.dot here for portability/robustness of lowering.
    def enc_step(t, carry):
        row = pl.multiple_of(t * Bp, 8)                 # 8-aligned sublane start
        xp_t = xp_sc[pl.ds(row, Bp), :]                 # (Bp, 4He) full-tile read
        gates = xp_t + jnp.dot(he_sc[...], ewhh_ref[...],
                               preferred_element_type=jnp.float32)
        # sigmoid only on [i|f|o] columns, tanh only on [g] columns.
        sig = jax.nn.sigmoid(gates[:, : 3 * He])
        i_g = sig[:, 0 * He:1 * He]
        f_g = sig[:, 1 * He:2 * He]
        o_g = sig[:, 2 * He:3 * He]
        g_g = jnp.tanh(gates[:, 3 * He:])
        c_new = f_g * ce_sc[...] + i_g * g_g
        ce_sc[...] = c_new
        he_sc[...] = o_g * jnp.tanh(c_new)
        return carry

    lax.fori_loop(0, T, enc_step, 0, unroll=unroll)

    # ---------------- latent -> decoder ----------------
    # Decoder input is z (= final encoder hidden) at every step, so its input
    # projection is a per-call constant; z is never broadcast/materialized.
    dproj = (
        jnp.dot(he_sc[...], dwih_ref[...], preferred_element_type=jnp.float32)
        + db_ref[...]
    )                                                    # (Bp, 4Hd)

    hd_sc[...] = jnp.zeros_like(hd_sc)
    cd_sc[...] = jnp.zeros_like(cd_sc)

    def dec_step(t, carry):
        gates = dproj + jnp.dot(hd_sc[...], dwhh_ref[...],
                                preferred_element_type=jnp.float32)
        sig = jax.nn.sigmoid(gates[:, : 3 * Hd])
        i_g = sig[:, 0 * Hd:1 * Hd]
        f_g = sig[:, 1 * Hd:2 * Hd]
        o_g = sig[:, 2 * Hd:3 * Hd]
        g_g = jnp.tanh(gates[:, 3 * Hd:])
        c_new = f_g * cd_sc[...] + i_g * g_g
        cd_sc[...] = c_new
        h_new = o_g * jnp.tanh(c_new)
        hd_sc[...] = h_new
        row = pl.multiple_of(t * Bp, 8)                  # 8-aligned sublane start
        hs_sc[pl.ds(row, Bp), :] = h_new                 # full-tile store
        return carry

    lax.fori_loop(0, T, dec_step, 0, unroll=unroll)

    # ---------------- output head: one big matmul + tanh, single store ------
    y = (
        jnp.dot(hs_sc[...], lw_ref[...], preferred_element_type=jnp.float32)
        + lb_ref[...]
    )
    out_ref[...] = jnp.tanh(y)


# ----------------------------------------------------------------------------
# Wrapper (batch_first like PyTorch)
# ----------------------------------------------------------------------------
def _permute_gate_rows(w):
    """PyTorch LSTM gate row order [i, f, g, o] -> [i, f, o, g].

    With [i|f|o] contiguous the kernel runs sigmoid on 3H columns and tanh on
    H columns instead of both activations over 4H columns.
    """
    h = w.shape[0] // 4
    return jnp.concatenate([w[: 2 * h], w[3 * h: 4 * h], w[2 * h: 3 * h]], axis=0)


@jax.jit
def lstm_autoencoder_forward(batch_btf, params):
    """Forward pass of LSTM_AutoEncoder (seq_len=None path).

    batch_btf: (B, T, input_size), batch_first like PyTorch.
    Returns (x_rec (B, T, input_size), None).
    """
    B, T, I = batch_btf.shape
    He = params["enc_w_hh"].shape[1]
    Dd = params["dec_w_hh"].shape[1]
    Bp = ((B + 7) // 8) * 8        # pad batch to a sublane multiple (8)

    # time-major + batch-pad; row index = t*Bp + b.  Padded rows compute
    # harmless garbage and are sliced away below.
    # TODO(synk): for large T*B*I fold this transpose into the kernel via a
    # T-chunk grid axis whose index_map reads (B, I) slices from the
    # batch-first array, to avoid an extra HBM read+write outside the kernel.
    x_tbf = jnp.transpose(batch_btf.astype(jnp.float32), (1, 0, 2))
    x_tbf = jnp.pad(x_tbf, ((0, 0), (0, Bp - B), (0, 0)))
    x_flat = x_tbf.reshape(T * Bp, I)

    # TODO(synk): on v6e/v7x cast weights and x to bf16 (f32 accumulate / f32
    # cell state) to halve DMA; kept f32 here (required on v5e's VPU/EUP and
    # matches the f32 reference to ~1e-4).
    ewih = _permute_gate_rows(jnp.asarray(params["enc_w_ih"], jnp.float32)).T   # (I, 4He)
    ewhh = _permute_gate_rows(jnp.asarray(params["enc_w_hh"], jnp.float32)).T   # (He, 4He)
    eb = _permute_gate_rows(
        jnp.asarray(params["enc_b_ih"], jnp.float32)
        + jnp.asarray(params["enc_b_hh"], jnp.float32)).reshape(1, 4 * He)
    dwih = _permute_gate_rows(jnp.asarray(params["dec_w_ih"], jnp.float32)).T   # (He, 4Hd)
    dwhh = _permute_gate_rows(jnp.asarray(params["dec_w_hh"], jnp.float32)).T   # (Hd, 4Hd)
    db = _permute_gate_rows(
        jnp.asarray(params["dec_b_ih"], jnp.float32)
        + jnp.asarray(params["dec_b_hh"], jnp.float32)).reshape(1, 4 * Dd)
    lw = jnp.asarray(params["lin_w"], jnp.float32).T                            # (Hd, I)
    lb = jnp.asarray(params["lin_b"], jnp.float32).reshape(1, I)

    vmem = lambda: pl.BlockSpec(memory_space=pltpu.MemorySpace.VMEM)

    out_flat = pl.pallas_call(
        _fused_autoencoder_kernel,
        out_shape=jax.ShapeDtypeStruct((T * Bp, I), jnp.float32),
        in_specs=[vmem() for _ in range(9)],
        out_specs=vmem(),
        scratch_shapes=[
            pltpu.VMEM((T * Bp, 4 * He), jnp.float32),   # hoisted encoder x-proj
            pltpu.VMEM((Bp, He), jnp.float32),           # h_enc
            pltpu.VMEM((Bp, He), jnp.float32),           # c_enc
            pltpu.VMEM((Bp, Dd), jnp.float32),           # h_dec
            pltpu.VMEM((Bp, Dd), jnp.float32),           # c_dec
            pltpu.VMEM((T * Bp, Dd), jnp.float32),       # decoder hidden states
        ],
    )(x_flat, ewih, ewhh, eb, dwih, dwhh, db, lw, lb)

    x_rec = out_flat.reshape(T, Bp, I)[:, :B, :].transpose(1, 0, 2)   # (B, T, I)
    return x_rec, None


# TODO(synk): n_categories / prediction_mode heads and the seq_len gather path
# are not exercised in this config (module defaults return (x_rec, None)).
# TODO(synk): for real model sizes, keep I (output lane dim) a multiple of 128
# (or present a lane-dense output slab) so the final store is unmasked vst.
# TODO(synk): for v7x (64 MiB VMEM) at large T, chunk the hoisted x-projection
# over T (emit_pipeline / manual double-buffer with x in memory_space=pl.ANY)
# and set vmem_limit_bytes; for Bp >= 16 add a leading batch grid axis marked
# "parallel" so both v7x TensorCores are fed.


# ----------------------------------------------------------------------------
# Pure-JAX reference (for correctness check)
# ----------------------------------------------------------------------------
def _ref_lstm(x_tbf, w_ih, w_hh, b_ih, b_hh):
    H = w_hh.shape[1]
    B = x_tbf.shape[1]
    wih_t, whh_t = w_ih.T, w_hh.T
    bias = b_ih + b_hh

    def step(carry, x_t):
        h, c = carry
        gates = x_t @ wih_t + h @ whh_t + bias
        i = jax.nn.sigmoid(gates[:, 0 * H:1 * H])
        f = jax.nn.sigmoid(gates[:, 1 * H:2 * H])
        g = jnp.tanh(gates[:, 2 * H:3 * H])
        o = jax.nn.sigmoid(gates[:, 3 * H:4 * H])
        c = f * c + i * g
        h = o * jnp.tanh(c)
        return (h, c), h

    init = (jnp.zeros((B, H), jnp.float32), jnp.zeros((B, H), jnp.float32))
    (h_last, _), h_seq = lax.scan(step, init, x_tbf)
    return h_seq, h_last


def _ref_forward(batch_btf, p):
    B, T, _ = batch_btf.shape
    x_tbf = jnp.transpose(batch_btf, (1, 0, 2))
    _, z = _ref_lstm(x_tbf, p["enc_w_ih"], p["enc_w_hh"], p["enc_b_ih"], p["enc_b_hh"])
    z_tbf = jnp.broadcast_to(z[None], (T, B, z.shape[-1]))
    h_s, _ = _ref_lstm(z_tbf, p["dec_w_ih"], p["dec_w_hh"], p["dec_b_ih"], p["dec_b_hh"])
    x_rec = jnp.tanh(h_s @ p["lin_w"].T + p["lin_b"])
    return jnp.transpose(x_rec, (1, 0, 2))


# ----------------------------------------------------------------------------
# Parameter init (deterministic, PyTorch-style uniform(-1/sqrt(H), 1/sqrt(H)))
# ----------------------------------------------------------------------------
def init_params(key, input_size, enc_hidden, dec_hidden):
    ks = jax.random.split(key, 10)

    def u(k, shape, bound):
        return jax.random.uniform(k, shape, jnp.float32, -bound, bound)

    be = 1.0 / jnp.sqrt(enc_hidden)
    bd = 1.0 / jnp.sqrt(dec_hidden)
    bl = 1.0 / jnp.sqrt(dec_hidden)
    return {
        "enc_w_ih": u(ks[0], (4 * enc_hidden, input_size), be),
        "enc_w_hh": u(ks[1], (4 * enc_hidden, enc_hidden), be),
        "enc_b_ih": u(ks[2], (4 * enc_hidden,), be),
        "enc_b_hh": u(ks[3], (4 * enc_hidden,), be),
        "dec_w_ih": u(ks[4], (4 * dec_hidden, enc_hidden), bd),
        "dec_w_hh": u(ks[5], (4 * dec_hidden, dec_hidden), bd),
        "dec_b_ih": u(ks[6], (4 * dec_hidden,), bd),
        "dec_b_hh": u(ks[7], (4 * dec_hidden,), bd),
        "lin_w": u(ks[8], (input_size, dec_hidden), bl),
        "lin_b": u(ks[9], (input_size,), bl),
    }


if __name__ == "__main__":
    B, T, INPUT, ENC_H, DEC_H = 2, 8, 16, 32, 32

    key = jax.random.PRNGKey(0)
    k_x, k_p = jax.random.split(key)
    batch = jax.random.normal(k_x, (B, T, INPUT), jnp.float32)
    params = init_params(k_p, INPUT, ENC_H, DEC_H)

    x_rec, _ = lstm_autoencoder_forward(batch, params)
    x_rec = jax.block_until_ready(x_rec)

    ref = jax.block_until_ready(_ref_forward(batch, params))
    assert x_rec.shape == (B, T, INPUT)
    assert jnp.allclose(x_rec, ref, atol=1e-4, rtol=1e-4), "mismatch vs JAX reference"

    print("KERNEL_OK")
</pallas_src>

<mosaic_0001>
module attributes {stable_mosaic.version = 11 : i64} {
  func.func @_fused_autoencoder_kernel(%arg0: memref<64x16xf32, #tpu.memory_space<vmem>>, %arg1: memref<16x128xf32, #tpu.memory_space<vmem>>, %arg2: memref<32x128xf32, #tpu.memory_space<vmem>>, %arg3: memref<1x128xf32, #tpu.memory_space<vmem>>, %arg4: memref<32x128xf32, #tpu.memory_space<vmem>>, %arg5: memref<32x128xf32, #tpu.memory_space<vmem>>, %arg6: memref<1x128xf32, #tpu.memory_space<vmem>>, %arg7: memref<32x16xf32, #tpu.memory_space<vmem>>, %arg8: memref<1x16xf32, #tpu.memory_space<vmem>>, %arg9: memref<64x16xf32, #tpu.memory_space<vmem>>, %arg10: memref<64x128xf32, #tpu.memory_space<vmem>>, %arg11: memref<8x32xf32, #tpu.memory_space<vmem>>, %arg12: memref<8x32xf32, #tpu.memory_space<vmem>>, %arg13: memref<8x32xf32, #tpu.memory_space<vmem>>, %arg14: memref<8x32xf32, #tpu.memory_space<vmem>>, %arg15: memref<64x32xf32, #tpu.memory_space<vmem>>) attributes {dimension_semantics = [], scalar_prefetch = 0 : i64, scratch_operands = 6 : i64, tpu.core_type = #tpu.core_type<tc>} {
    %c0 = arith.constant 0 : index
    %c0_0 = arith.constant 0 : index
    %0 = vector.load %arg0[%c0, %c0_0] : memref<64x16xf32, #tpu.memory_space<vmem>>, vector<64x16xf32>
    %c0_1 = arith.constant 0 : index
    %c0_2 = arith.constant 0 : index
    %1 = vector.load %arg1[%c0_1, %c0_2] : memref<16x128xf32, #tpu.memory_space<vmem>>, vector<16x128xf32>
    %cst = arith.constant dense<0.000000e+00> : vector<64x128xf32>
    %2 = tpu.matmul %0, %1, %cst {dimension_numbers = #tpu.dot_dimension_numbers<[1], [0], [0], [1], [0, 0, 1, 1], [], []>} : vector<64x16xf32>, vector<16x128xf32>, vector<64x128xf32> -> vector<64x128xf32>
    %c0_3 = arith.constant 0 : index
    %c0_4 = arith.constant 0 : index
    %3 = vector.load %arg3[%c0_3, %c0_4] : memref<1x128xf32, #tpu.memory_space<vmem>>, vector<1x128xf32>
    %4 = vector.broadcast %3 : vector<1x128xf32> to vector<64x128xf32>
    %5 = arith.addf %2, %4 : vector<64x128xf32>
    %c0_5 = arith.constant 0 : index
    %c0_6 = arith.constant 0 : index
    %6 = vector.load %arg10[%c0_5, %c0_6] : memref<64x128xf32, #tpu.memory_space<vmem>>, vector<64x128xf32>
    tpu.vector_store %arg10[%c0_5, %c0_6], %5 {strides = array<i32>} : memref<64x128xf32, #tpu.memory_space<vmem>>, vector<64x128xf32>,
    %cst_7 = arith.constant 0.000000e+00 : f32
    %7 = vector.broadcast %cst_7 : f32 to vector<8x32xf32>
    %c0_8 = arith.constant 0 : index
    %c0_9 = arith.constant 0 : index
    %8 = vector.load %arg11[%c0_8, %c0_9] : memref<8x32xf32, #tpu.memory_space<vmem>>, vector<8x32xf32>
    tpu.vector_store %arg11[%c0_8, %c0_9], %7 {strides = array<i32>} : memref<8x32xf32, #tpu.memory_space<vmem>>, vector<8x32xf32>,
    %cst_10 = arith.constant 0.000000e+00 : f32
    %9 = vector.broadcast %cst_10 : f32 to vector<8x32xf32>
    %c0_11 = arith.constant 0 : index
    %c0_12 = arith.constant 0 : index
    %10 = vector.load %arg12[%c0_11, %c0_12] : memref<8x32xf32, #tpu.memory_space<vmem>>, vector<8x32xf32>
    tpu.vector_store %arg12[%c0_11, %c0_12], %9 {strides = array<i32>} : memref<8x32xf32, #tpu.memory_space<vmem>>, vector<8x32xf32>,
    %c0_i32 = arith.constant 0 : i32
    %c8_i32 = arith.constant 8 : i32
    %11 = arith.muli %c0_i32, %c8_i32 : i32
    %12 = tpu.assume_multiple %11, 8 : i32
    %13 = arith.index_cast %12 : i32 to index
    %c0_13 = arith.constant 0 : index
    %14 = vector.load %arg10[%13, %c0_13] : memref<64x128xf32, #tpu.memory_space<vmem>>, vector<8x128xf32>
    %c0_14 = arith.constant 0 : index
    %c0_15 = arith.constant 0 : index
    %15 = vector.load %arg11[%c0_14, %c0_15] : memref<8x32xf32, #tpu.memory_space<vmem>>, vector<8x32xf32>
    %c0_16 = arith.constant 0 : index
    %c0_17 = arith.constant 0 : index
    %16 = vector.load %arg2[%c0_16, %c0_17] : memref<32x128xf32, #tpu.memory_space<vmem>>, vector<32x128xf32>
    %cst_18 = arith.constant dense<0.000000e+00> : vector<8x128xf32>
    %17 = tpu.matmul %15, %16, %cst_18 {dimension_numbers = #tpu.dot_dimension_numbers<[1], [0], [0], [1], [0, 0, 1, 1], [], []>} : vector<8x32xf32>, vector<32x128xf32>, vector<8x128xf32> -> vector<8x128xf32>
    %18 = arith.addf %14, %17 : vector<8x128xf32>
    %19 = vector.extract_strided_slice %18 {offsets = [0, 0], sizes = [8, 96], strides = [1, 1]} : vector<8x128xf32> to vector<8x96xf32>
    %20 = arith.negf %19 : vector<8x96xf32>
    %21 = math.exp %20 : vector<8x96xf32>
    %cst_19 = arith.constant 1.000000e+00 : f32
    %22 = vector.broadcast %cst_19 : f32 to vector<8x96xf32>
    %23 = arith.addf %22, %21 : vector<8x96xf32>
    %24 = arith.divf %22, %23 : vector<8x96xf32>
    %25 = vector.extract_strided_slice %24 {offsets = [0, 0], sizes = [8, 32], strides = [1, 1]} : vector<8x96xf32> to vector<8x32xf32>
    %26 = vector.extract_strided_slice %24 {offsets = [0, 32], sizes = [8, 32], strides = [1, 1]} : vector<8x96xf32> to vector<8x32xf32>
    %27 = vector.extract_strided_slice %24 {offsets = [0, 64], sizes = [8, 32], strides = [1, 1]} : vector<8x96xf32> to vector<8x32xf32>
    %28 = vector.extract_strided_slice %18 {offsets = [0, 96], sizes = [8, 32], strides = [1, 1]} : vector<8x128xf32> to vector<8x32xf32>
    %29 = math.tanh %28 : vector<8x32xf32>
    %c0_20 = arith.constant 0 : index
    %c0_21 = arith.constant 0 : index
    %30 = vector.load %arg12[%c0_20, %c0_21] : memref<8x32xf32, #tpu.memory_space<vmem>>, vector<8x32xf32>
    %31 = arith.mulf %26, %30 : vector<8x32xf32>
    %32 = arith.mulf %25, %29 : vector<8x32xf32>
    %33 = arith.addf %31, %32 : vector<8x32xf32>
    %c0_22 = arith.constant 0 : index
    %c0_23 = arith.constant 0 : index
    %34 = vector.load %arg12[%c0_22, %c0_23] : memref<8x32xf32, #tpu.memory_space<vmem>>, vector<8x32xf32>
    tpu.vector_store %arg12[%c0_22, %c0_23], %33 {strides = array<i32>} : memref<8x32xf32, #tpu.memory_space<vmem>>, vector<8x32xf32>,
    %35 = math.tanh %33 : vector<8x32xf32>
    %36 = arith.mulf %27, %35 : vector<8x32xf32>
    %c0_24 = arith.constant 0 : index
    %c0_25 = arith.constant 0 : index
    %37 = vector.load %arg11[%c0_24, %c0_25] : memref<8x32xf32, #tpu.memory_space<vmem>>, vector<8x32xf32>
    tpu.vector_store %arg11[%c0_24, %c0_25], %36 {strides = array<i32>} : memref<8x32xf32, #tpu.memory_space<vmem>>, vector<8x32xf32>,
    %c1_i32 = arith.constant 1 : i32
    %c8_i32_26 = arith.constant 8 : i32
    %38 = arith.muli %c1_i32, %c8_i32_26 : i32
    %39 = tpu.assume_multiple %38, 8 : i32
    %40 = arith.index_cast %39 : i32 to index
    %c0_27 = arith.constant 0 : index
    %41 = vector.load %arg10[%40, %c0_27] : memref<64x128xf32, #tpu.memory_space<vmem>>, vector<8x128xf32>
    %c0_28 = arith.constant 0 : index
    %c0_29 = arith.constant 0 : index
    %42 = vector.load %arg11[%c0_28, %c0_29] : memref<8x32xf32, #tpu.memory_space<vmem>>, vector<8x32xf32>
    %c0_30 = arith.constant 0 : index
    %c0_31 = arith.constant 0 : index
    %43 = vector.load %arg2[%c0_30, %c0_31] : memref<32x128xf32, #tpu.memory_space<vmem>>, vector<32x128xf32>
    %cst_32 = arith.constant dense<0.000000e+00> : vector<8x128xf32>
    %44 = tpu.matmul %42, %43, %cst_32 {dimension_numbers = #tpu.dot_dimension_numbers<[1], [0], [0], [1], [0, 0, 1, 1], [], []>} : vector<8x32xf32>, vector<32x128xf32>, vector<8x128xf32> -> vector<8x128xf32>
    %45 = arith.addf %41, %44 : vector<8x128xf32>
    %46 = vector.extract_strided_slice %45 {offsets = [0, 0], sizes = [8, 96], strides = [1, 1]} : vector<8x128xf32> to vector<8x96xf32>
    %47 = arith.negf %46 : vector<8x96xf32>
    %48 = math.exp %47 : vector<8x96xf32>
    %cst_33 = arith.constant 1.000000e+00 : f32
    %49 = vector.broadcast %cst_33 : f32 to vector<8x96xf32>
    %50 = arith.addf %49, %48 : vector<8x96xf32>
    %51 = arith.divf %49, %50 : vector<8x96xf32>
    %52 = vector.extract_strided_slice %51 {offsets = [0, 0], sizes = [8, 32], strides = [1, 1]} : vector<8x96xf32> to vector<8x32xf32>
    %53 = vector.extract_strided_slice %51 {offsets = [0, 32], sizes = [8, 32], strides = [1, 1]} : vector<8x96xf32> to vector<8x32xf32>
    %54 = vector.extract_strided_slice %51 {offsets = [0, 64], sizes = [8, 32], strides = [1, 1]} : vector<8x96xf32> to vector<8x32xf32>
    %55 = vector.extract_strided_slice %45 {offsets = [0, 96], sizes = [8, 32], strides = [1, 1]} : vector<8x128xf32> to vector<8x32xf32>
    %56 = math.tanh %55 : vector<8x32xf32>
    %c0_34 = arith.constant 0 : index
    %c0_35 = arith.constant 0 : index
    %57 = vector.load %arg12[%c0_34, %c0_35] : memref<8x32xf32, #tpu.memory_space<vmem>>, vector<8x32xf32>
    %58 = arith.mulf %53, %57 : vector<8x32xf32>
    %59 = arith.mulf %52, %56 : vector<8x32xf32>
    %60 = arith.addf %58, %59 : vector<8x32xf32>
    %c0_36 = arith.constant 0 : index
    %c0_37 = arith.constant 0 : index
    %61 = vector.load %arg12[%c0_36, %c0_37] : memref<8x32xf32, #tpu.memory_space<vmem>>, vector<8x32xf32>
    tpu.vector_store %arg12[%c0_36, %c0_37], %60 {strides = array<i32>} : memref<8x32xf32, #tpu.memory_space<vmem>>, vector<8x32xf32>,
    %62 = math.tanh %60 : vector<8x32xf32>
    %63 = arith.mulf %54, %62 : vector<8x32xf32>
    %c0_38 = arith.constant 0 : index
    %c0_39 = arith.constant 0 : index
    %64 = vector.load %arg11[%c0_38, %c0_39] : memref<8x32xf32, #tpu.memory_space<vmem>>, vector<8x32xf32>
    tpu.vector_store %arg11[%c0_38, %c0_39], %63 {strides = array<i32>} : memref<8x32xf32, #tpu.memory_space<vmem>>, vector<8x32xf32>,
    %c2_i32 = arith.constant 2 : i32
    %c8_i32_40 = arith.constant 8 : i32
    %65 = arith.muli %c2_i32, %c8_i32_40 : i32
    %66 = tpu.assume_multiple %65, 8 : i32
    %67 = arith.index_cast %66 : i32 to index
    %c0_41 = arith.constant 0 : index
    %68 = vector.load %arg10[%67, %c0_41] : memref<64x128xf32, #tpu.memory_space<vmem>>, vector<8x128xf32>
    %c0_42 = arith.constant 0 : index
    %c0_43 = arith.constant 0 : index
    %69 = vector.load %arg11[%c0_42, %c0_43] : memref<8x32xf32, #tpu.memory_space<vmem>>, vector<8x32xf32>
    %c0_44 = arith.constant 0 : index
    %c0_45 = arith.constant 0 : index
    %70 = vector.load %arg2[%c0_44, %c0_45] : memref<32x128xf32, #tpu.memory_space<vmem>>, vector<32x128xf32>
    %cst_46 = arith.constant dense<0.000000e+00> : vector<8x128xf32>
    %71 = tpu.matmul %69, %70, %cst_46 {dimension_numbers = #tpu.dot_dimension_numbers<[1], [0], [0], [1], [0, 0, 1, 1], [], []>} : vector<8x32xf32>, vector<32x128xf32>, vector<8x128xf32> -> vector<8x128xf32>
    %72 = arith.addf %68, %71 : vector<8x128xf32>
    %73 = vector.extract_strided_slice %72 {offsets = [0, 0], sizes = [8, 96], strides = [1, 1]} : vector<8x128xf32> to vector<8x96xf32>
    %74 = arith.negf %73 : vector<8x96xf32>
    %75 = math.exp %74 : vector<8x96xf32>
    %cst_47 = arith.constant 1.000000e+00 : f32
    %76 = vector.broadcast %cst_47 : f32 to vector<8x96xf32>
    %77 = arith.addf %76, %75 : vector<8x96xf32>
    %78 = arith.divf %76, %77 : vector<8x96xf32>
    %79 = vector.extract_strided_slice %78 {offsets = [0, 0], sizes = [8, 32], strides = [1, 1]} : vector<8x96xf32> to vector<8x32xf32>
    %80 = vector.extract_strided_slice %78 {offsets = [0, 32], sizes = [8, 32], strides = [1, 1]} : vector<8x96xf32> to vector<8x32xf32>
    %81 = vector.extract_strided_slice %78 {offsets = [0, 64], sizes = [8, 32], strides = [1, 1]} : vector<8x96xf32> to vector<8x32xf32>
    %82 = vector.extract_strided_slice %72 {offsets = [0, 96], sizes = [8, 32], strides = [1, 1]} : vector<8x128xf32> to vector<8x32xf32>
    %83 = math.tanh %82 : vector<8x32xf32>
    %c0_48 = arith.constant 0 : index
    %c0_49 = arith.constant 0 : index
    %84 = vector.load %arg12[%c0_48, %c0_49] : memref<8x32xf32, #tpu.memory_space<vmem>>, vector<8x32xf32>
    %85 = arith.mulf %80, %84 : vector<8x32xf32>
    %86 = arith.mulf %79, %83 : vector<8x32xf32>
    %87 = arith.addf %85, %86 : vector<8x32xf32>
    %c0_50 = arith.constant 0 : index
    %c0_51 = arith.constant 0 : index
    %88 = vector.load %arg12[%c0_50, %c0_51] : memref<8x32xf32, #tpu.memory_space<vmem>>, vector<8x32xf32>
    tpu.vector_store %arg12[%c0_50, %c0_51], %87 {strides = array<i32>} : memref<8x32xf32, #tpu.memory_space<vmem>>, vector<8x32xf32>,
    %89 = math.tanh %87 : vector<8x32xf32>
    %90 = arith.mulf %81, %89 : vector<8x32xf32>
    %c0_52 = arith.constant 0 : index
    %c0_53 = arith.constant 0 : index
    %91 = vector.load %arg11[%c0_52, %c0_53] : memref<8x32xf32, #tpu.memory_space<vmem>>, vector<8x32xf32>
    tpu.vector_store %arg11[%c0_52, %c0_53], %90 {strides = array<i32>} : memref<8x32xf32, #tpu.memory_space<vmem>>, vector<8x32xf32>,
    %c3_i32 = arith.constant 3 : i32
    %c8_i32_54 = arith.constant 8 : i32
    %92 = arith.muli %c3_i32, %c8_i32_54 : i32
    %93 = tpu.assume_multiple %92, 8 : i32
    %94 = arith.index_cast %93 : i32 to index
    %c0_55 = arith.constant 0 : index
    %95 = vector.load %arg10[%94, %c0_55] : memref<64x128xf32, #tpu.memory_space<vmem>>, vector<8x128xf32>
    %c0_56 = arith.constant 0 : index
    %c0_57 = arith.constant 0 : index
    %96 = vector.load %arg11[%c0_56, %c0_57] : memref<8x32xf32, #tpu.memory_space<vmem>>, vector<8x32xf32>
    %c0_58 = arith.constant 0 : index
    %c0_59 = arith.constant 0 : index
    %97 = vector.load %arg2[%c0_58, %c0_59] : memref<32x128xf32, #tpu.memory_space<vmem>>, vector<32x128xf32>
    %cst_60 = arith.constant dense<0.000000e+00> : vector<8x128xf32>
    %98 = tpu.matmul %96, %97, %cst_60 {dimension_numbers = #tpu.dot_dimension_numbers<[1], [0], [0], [1], [0, 0, 1, 1], [], []>} : vector<8x32xf32>, vector<32x128xf32>, vector<8x128xf32> -> vector<8x128xf32>
    %99 = arith.addf %95, %98 : vector<8x128xf32>
    %100 = vector.extract_strided_slice %99 {offsets = [0, 0], sizes = [8, 96], strides = [1, 1]} : vector<8x128xf32> to vector<8x96xf32>
    %101 = arith.negf %100 : vector<8x96xf32>
    %102 = math.exp %101 : vector<8x96xf32>
    %cst_61 = arith.constant 1.000000e+00 : f32
    %103 = vector.broadcast %cst_61 : f32 to vector<8x96xf32>
    %104 = arith.addf %103, %102 : vector<8x96xf32>
    %105 = arith.divf %103, %104 : vector<8x96xf32>
    %106 = vector.extract_strided_slice %105 {offsets = [0, 0], sizes = [8, 32], strides = [1, 1]} : vector<8x96xf32> to vector<8x32xf32>
    %107 = vector.extract_strided_slice %105 {offsets = [0, 32], sizes = [8, 32], strides = [1, 1]} : vector<8x96xf32> to vector<8x32xf32>
    %108 = vector.extract_strided_slice %105 {offsets = [0, 64], sizes = [8, 32], strides = [1, 1]} : vector<8x96xf32> to vector<8x32xf32>
    %109 = vector.extract_strided_slice %99 {offsets = [0, 96], sizes = [8, 32], strides = [1, 1]} : vector<8x128xf32> to vector<8x32xf32>
    %110 = math.tanh %109 : vector<8x32xf32>
    %c0_62 = arith.constant 0 : index
    %c0_63 = arith.constant 0 : index
    %111 = vector.load %arg12[%c0_62, %c0_63] : memref<8x32xf32, #tpu.memory_space<vmem>>, vector<8x32xf32>
    %112 = arith.mulf %107, %111 : vector<8x32xf32>
    %113 = arith.mulf %106, %110 : vector<8x32xf32>
    %114 = arith.addf %112, %113 : vector<8x32xf32>
    %c0_64 = arith.constant 0 : index
    %c0_65 = arith.constant 0 : index
    %115 = vector.load %arg12[%c0_64, %c0_65] : memref<8x32xf32, #tpu.memory_space<vmem>>, vector<8x32xf32>
    tpu.vector_store %arg12[%c0_64, %c0_65], %114 {strides = array<i32>} : memref<8x32xf32, #tpu.memory_space<vmem>>, vector<8x32xf32>,
    %116 = math.tanh %114 : vector<8x32xf32>
    %117 = arith.mulf %108, %116 : vector<8x32xf32>
    %c0_66 = arith.constant 0 : index
    %c0_67 = arith.constant 0 : index
    %118 = vector.load %arg11[%c0_66, %c0_67] : memref<8x32xf32, #tpu.memory_space<vmem>>, vector<8x32xf32>
    tpu.vector_store %arg11[%c0_66, %c0_67], %117 {strides = array<i32>} : memref<8x32xf32, #tpu.memory_space<vmem>>, vector<8x32xf32>,
    %c4_i32 = arith.constant 4 : i32
    %c8_i32_68 = arith.constant 8 : i32
    %119 = arith.muli %c4_i32, %c8_i32_68 : i32
    %120 = tpu.assume_multiple %119, 8 : i32
    %121 = arith.index_cast %120 : i32 to index
    %c0_69 = arith.constant 0 : index
    %122 = vector.load %arg10[%121, %c0_69] : memref<64x128xf32, #tpu.memory_space<vmem>>, vector<8x128xf32>
    %c0_70 = arith.constant 0 : index
    %c0_71 = arith.constant 0 : index
    %123 = vector.load %arg11[%c0_70, %c0_71] : memref<8x32xf32, #tpu.memory_space<vmem>>, vector<8x32xf32>
    %c0_72 = arith.constant 0 : index
    %c0_73 = arith.constant 0 : index
    %124 = vector.load %arg2[%c0_72, %c0_73] : memref<32x128xf32, #tpu.memory_space<vmem>>, vector<32x128xf32>
    %cst_74 = arith.constant dense<0.000000e+00> : vector<8x128xf32>
    %125 = tpu.matmul %123, %124, %cst_74 {dimension_numbers = #tpu.dot_dimension_numbers<[1], [0], [0], [1], [0, 0, 1, 1], [], []>} : vector<8x32xf32>, vector<32x128xf32>, vector<8x128xf32> -> vector<8x128xf32>
    %126 = arith.addf %122, %125 : vector<8x128xf32>
    %127 = vector.extract_strided_slice %126 {offsets = [0, 0], sizes = [8, 96], strides = [1, 1]} : vector<8x128xf32> to vector<8x96xf32>
    %128 = arith.negf %127 : vector<8x96xf32>
    %129 = math.exp %128 : vector<8x96xf32>
    %cst_75 = arith.constant 1.000000e+00 : f32
    %130 = vector.broadcast %cst_75 : f32 to vector<8x96xf32>
    %131 = arith.addf %130, %129 : vector<8x96xf32>
    %132 = arith.divf %130, %131 : vector<8x96xf32>
    %133 = vector.extract_strided_slice %132 {offsets = [0, 0], sizes = [8, 32], strides = [1, 1]} : vector<8x96xf32> to vector<8x32xf32>
    %134 = vector.extract_strided_slice %132 {offsets = [0, 32], sizes = [8, 32], strides = [1, 1]} : vector<8x96xf32> to vector<8x32xf32>
    %135 = vector.extract_strided_slice %132 {offsets = [0, 64], sizes = [8, 32], strides = [1, 1]} : vector<8x96xf32> to vector<8x32xf32>
    %136 = vector.extract_strided_slice %126 {offsets = [0, 96], sizes = [8, 32], strides = [1, 1]} : vector<8x128xf32> to vector<8x32xf32>
    %137 = math.tanh %136 : vector<8x32xf32>
    %c0_76 = arith.constant 0 : index
    %c0_77 = arith.constant 0 : index
    %138 = vector.load %arg12[%c0_76, %c0_77] : memref<8x32xf32, #tpu.memory_space<vmem>>, vector<8x32xf32>
    %139 = arith.mulf %134, %138 : vector<8x32xf32>
    %140 = arith.mulf %133, %137 : vector<8x32xf32>
    %141 = arith.addf %139, %140 : vector<8x32xf32>
    %c0_78 = arith.constant 0 : index
    %c0_79 = arith.constant 0 : index
    %142 = vector.load %arg12[%c0_78, %c0_79] : memref<8x32xf32, #tpu.memory_space<vmem>>, vector<8x32xf32>
    tpu.vector_store %arg12[%c0_78, %c0_79], %141 {strides = array<i32>} : memref<8x32xf32, #tpu.memory_space<vmem>>, vector<8x32xf32>,
    %143 = math.tanh %141 : vector<8x32xf32>
    %144 = arith.mulf %135, %143 : vector<8x32xf32>
    %c0_80 = arith.constant 0 : index
    %c0_81 = arith.constant 0 : index
    %145 = vector.load %arg11[%c0_80, %c0_81] : memref<8x32xf32, #tpu.memory_space<vmem>>, vector<8x32xf32>
    tpu.vector_store %arg11[%c0_80, %c0_81], %144 {strides = array<i32>} : memref<8x32xf32, #tpu.memory_space<vmem>>, vector<8x32xf32>,
    %c5_i32 = arith.constant 5 : i32
    %c8_i32_82 = arith.constant 8 : i32
    %146 = arith.muli %c5_i32, %c8_i32_82 : i32
    %147 = tpu.assume_multiple %146, 8 : i32
    %148 = arith.index_cast %147 : i32 to index
    %c0_83 = arith.constant 0 : index
    %149 = vector.load %arg10[%148, %c0_83] : memref<64x128xf32, #tpu.memory_space<vmem>>, vector<8x128xf32>
    %c0_84 = arith.constant 0 : index
    %c0_85 = arith.constant 0 : index
    %150 = vector.load %arg11[%c0_84, %c0_85] : memref<8x32xf32, #tpu.memory_space<vmem>>, vector<8x32xf32>
    %c0_86 = arith.constant 0 : index
    %c0_87 = arith.constant 0 : index
    %151 = vector.load %arg2[%c0_86, %c0_87] : memref<32x128xf32, #tpu.memory_space<vmem>>, vector<32x128xf32>
    %cst_88 = arith.constant dense<0.000000e+00> : vector<8x128xf32>
    %152 = tpu.matmul %150, %151, %cst_88 {dimension_numbers = #tpu.dot_dimension_numbers<[1], [0], [0], [1], [0, 0, 1, 1], [], []>} : vector<8x32xf32>, vector<32x128xf32>, vector<8x128xf32> -> vector<8x128xf32>
    %153 = arith.addf %149, %152 : vector<8x128xf32>
    %154 = vector.extract_strided_slice %153 {offsets = [0, 0], sizes = [8, 96], strides = [1, 1]} : vector<8x128xf32> to vector<8x96xf32>
    %155 = arith.negf %154 : vector<8x96xf32>
    %156 = math.exp %155 : vector<8x96xf32>
    %cst_89 = arith.constant 1.000000e+00 : f32
    %157 = vector.broadcast %cst_89 : f32 to vector<8x96xf32>
    %158 = arith.addf %157, %156 : vector<8x96xf32>
    %159 = arith.divf %157, %158 : vector<8x96xf32>
    %160 = vector.extract_strided_slice %159 {offsets = [0, 0], sizes = [8, 32], strides = [1, 1]} : vector<8x96xf32> to vector<8x32xf32>
    %161 = vector.extract_strided_slice %159 {offsets = [0, 32], sizes = [8, 32], strides = [1, 1]} : vector<8x96xf32> to vector<8x32xf32>
    %162 = vector.extract_strided_slice %159 {offsets = [0, 64], sizes = [8, 32], strides = [1, 1]} : vector<8x96xf32> to vector<8x32xf32>
    %163 = vector.extract_strided_slice %153 {offsets = [0, 96], sizes = [8, 32], strides = [1, 1]} : vector<8x128xf32> to vector<8x32xf32>
    %164 = math.tanh %163 : vector<8x32xf32>
    %c0_90 = arith.constant 0 : index
    %c0_91 = arith.constant 0 : index
    %165 = vector.load %arg12[%c0_90, %c0_91] : memref<8x32xf32, #tpu.memory_space<vmem>>, vector<8x32xf32>
    %166 = arith.mulf %161, %165 : vector<8x32xf32>
    %167 = arith.mulf %160, %164 : vector<8x32xf32>
    %168 = arith.addf %166, %167 : vector<8x32xf32>
    %c0_92 = arith.constant 0 : index
    %c0_93 = arith.constant 0 : index
    %169 = vector.load %arg12[%c0_92, %c0_93] : memref<8x32xf32, #tpu.memory_space<vmem>>, vector<8x32xf32>
    tpu.vector_store %arg12[%c0_92, %c0_93], %168 {strides = array<i32>} : memref<8x32xf32, #tpu.memory_space<vmem>>, vector<8x32xf32>,
    %170 = math.tanh %168 : vector<8x32xf32>
    %171 = arith.mulf %162, %170 : vector<8x32xf32>
    %c0_94 = arith.constant 0 : index
    %c0_95 = arith.constant 0 : index
    %172 = vector.load %arg11[%c0_94, %c0_95] : memref<8x32xf32, #tpu.memory_space<vmem>>, vector<8x32xf32>
    tpu.vector_store %arg11[%c0_94, %c0_95], %171 {strides = array<i32>} : memref<8x32xf32, #tpu.memory_space<vmem>>, vector<8x32xf32>,
    %c6_i32 = arith.constant 6 : i32
    %c8_i32_96 = arith.constant 8 : i32
    %173 = arith.muli %c6_i32, %c8_i32_96 : i32
    %174 = tpu.assume_multiple %173, 8 : i32
    %175 = arith.index_cast %174 : i32 to index
    %c0_97 = arith.constant 0 : index
    %176 = vector.load %arg10[%175, %c0_97] : memref<64x128xf32, #tpu.memory_space<vmem>>, vector<8x128xf32>
    %c0_98 = arith.constant 0 : index
    %c0_99 = arith.constant 0 : index
    %177 = vector.load %arg11[%c0_98, %c0_99] : memref<8x32xf32, #tpu.memory_space<vmem>>, vector<8x32xf32>
    %c0_100 = arith.constant 0 : index
    %c0_101 = arith.constant 0 : index
    %178 = vector.load %arg2[%c0_100, %c0_101] : memref<32x128xf32, #tpu.memory_space<vmem>>, vector<32x128xf32>
    %cst_102 = arith.constant dense<0.000000e+00> : vector<8x128xf32>
    %179 = tpu.matmul %177, %178, %cst_102 {dimension_numbers = #tpu.dot_dimension_numbers<[1], [0], [0], [1], [0, 0, 1, 1], [], []>} : vector<8x32xf32>, vector<32x128xf32>, vector<8x128xf32> -> vector<8x128xf32>
    %180 = arith.addf %176, %179 : vector<8x128xf32>
    %181 = vector.extract_strided_slice %180 {offsets = [0, 0], sizes = [8, 96], strides = [1, 1]} : vector<8x128xf32> to vector<8x96xf32>
    %182 = arith.negf %181 : vector<8x96xf32>
    %183 = math.exp %182 : vector<8x96xf32>
    %cst_103 = arith.constant 1.000000e+00 : f32
    %184 = vector.broadcast %cst_103 : f32 to vector<8x96xf32>
    %185 = arith.addf %184, %183 : vector<8x96xf32>
    %186 = arith.divf %184, %185 : vector<8x96xf32>
    %187 = vector.extract_strided_slice %186 {offsets = [0, 0], sizes = [8, 32], strides = [1, 1]} : vector<8x96xf32> to vector<8x32xf32>
    %188 = vector.extract_strided_slice %186 {offsets = [0, 32], sizes = [8, 32], strides = [1, 1]} : vector<8x96xf32> to vector<8x32xf32>
    %189 = vector.extract_strided_slice %186 {offsets = [0, 64], sizes = [8, 32], strides = [1, 1]} : vector<8x96xf32> to vector<8x32xf32>
    %190 = vector.extract_strided_slice %180 {offsets = [0, 96], sizes = [8, 32], strides = [1, 1]} : vector<8x128xf32> to vector<8x32xf32>
    %191 = math.tanh %190 : vector<8x32xf32>
    %c0_104 = arith.constant 0 : index
    %c0_105 = arith.constant 0 : index
    %192 = vector.load %arg12[%c0_104, %c0_105] : memref<8x32xf32, #tpu.memory_space<vmem>>, vector<8x32xf32>
    %193 = arith.mulf %188, %192 : vector<8x32xf32>
    %194 = arith.mulf %187, %191 : vector<8x32xf32>
    %195 = arith.addf %193, %194 : vector<8x32xf32>
    %c0_106 = arith.constant 0 : index
    %c0_107 = arith.constant 0 : index
    %196 = vector.load %arg12[%c0_106, %c0_107] : memref<8x32xf32, #tpu.memory_space<vmem>>, vector<8x32xf32>
    tpu.vector_store %arg12[%c0_106, %c0_107], %195 {strides = array<i32>} : memref<8x32xf32, #tpu.memory_space<vmem>>, vector<8x32xf32>,
    %197 = math.tanh %195 : vector<8x32xf32>
    %198 = arith.mulf %189, %197 : vector<8x32xf32>
    %c0_108 = arith.constant 0 : index
    %c0_109 = arith.constant 0 : index
    %199 = vector.load %arg11[%c0_108, %c0_109] : memref<8x32xf32, #tpu.memory_space<vmem>>, vector<8x32xf32>
    tpu.vector_store %arg11[%c0_108, %c0_109], %198 {strides = array<i32>} : memref<8x32xf32, #tpu.memory_space<vmem>>, vector<8x32xf32>,
    %c7_i32 = arith.constant 7 : i32
    %c8_i32_110 = arith.constant 8 : i32
    %200 = arith.muli %c7_i32, %c8_i32_110 : i32
    %201 = tpu.assume_multiple %200, 8 : i32
    %202 = arith.index_cast %201 : i32 to index
    %c0_111 = arith.constant 0 : index
    %203 = vector.load %arg10[%202, %c0_111] : memref<64x128xf32, #tpu.memory_space<vmem>>, vector<8x128xf32>
    %c0_112 = arith.constant 0 : index
    %c0_113 = arith.constant 0 : index
    %204 = vector.load %arg11[%c0_112, %c0_113] : memref<8x32xf32, #tpu.memory_space<vmem>>, vector<8x32xf32>
    %c0_114 = arith.constant 0 : index
    %c0_115 = arith.constant 0 : index
    %205 = vector.load %arg2[%c0_114, %c0_115] : memref<32x128xf32, #tpu.memory_space<vmem>>, vector<32x128xf32>
    %cst_116 = arith.constant dense<0.000000e+00> : vector<8x128xf32>
    %206 = tpu.matmul %204, %205, %cst_116 {dimension_numbers = #tpu.dot_dimension_numbers<[1], [0], [0], [1], [0, 0, 1, 1], [], []>} : vector<8x32xf32>, vector<32x128xf32>, vector<8x128xf32> -> vector<8x128xf32>
    %207 = arith.addf %203, %206 : vector<8x128xf32>
    %208 = vector.extract_strided_slice %207 {offsets = [0, 0], sizes = [8, 96], strides = [1, 1]} : vector<8x128xf32> to vector<8x96xf32>
    %209 = arith.negf %208 : vector<8x96xf32>
    %210 = math.exp %209 : vector<8x96xf32>
    %cst_117 = arith.constant 1.000000e+00 : f32
    %211 = vector.broadcast %cst_117 : f32 to vector<8x96xf32>
    %212 = arith.addf %211, %210 : vector<8x96xf32>
    %213 = arith.divf %211, %212 : vector<8x96xf32>
    %214 = vector.extract_strided_slice %213 {offsets = [0, 0], sizes = [8, 32], strides = [1, 1]} : vector<8x96xf32> to vector<8x32xf32>
    %215 = vector.extract_strided_slice %213 {offsets = [0, 32], sizes = [8, 32], strides = [1, 1]} : vector<8x96xf32> to vector<8x32xf32>
    %216 = vector.extract_strided_slice %213 {offsets = [0, 64], sizes = [8, 32], strides = [1, 1]} : vector<8x96xf32> to vector<8x32xf32>
    %217 = vector.extract_strided_slice %207 {offsets = [0, 96], sizes = [8, 32], strides = [1, 1]} : vector<8x128xf32> to vector<8x32xf32>
    %218 = math.tanh %217 : vector<8x32xf32>
    %c0_118 = arith.constant 0 : index
    %c0_119 = arith.constant 0 : index
    %219 = vector.load %arg12[%c0_118, %c0_119] : memref<8x32xf32, #tpu.memory_space<vmem>>, vector<8x32xf32>
    %220 = arith.mulf %215, %219 : vector<8x32xf32>
    %221 = arith.mulf %214, %218 : vector<8x32xf32>
    %222 = arith.addf %220, %221 : vector<8x32xf32>
    %c0_120 = arith.constant 0 : index
    %c0_121 = arith.constant 0 : index
    %223 = vector.load %arg12[%c0_120, %c0_121] : memref<8x32xf32, #tpu.memory_space<vmem>>, vector<8x32xf32>
    tpu.vector_store %arg12[%c0_120, %c0_121], %222 {strides = array<i32>} : memref<8x32xf32, #tpu.memory_space<vmem>>, vector<8x32xf32>,
    %224 = math.tanh %222 : vector<8x32xf32>
    %225 = arith.mulf %216, %224 : vector<8x32xf32>
    %c0_122 = arith.constant 0 : index
    %c0_123 = arith.constant 0 : index
    %226 = vector.load %arg11[%c0_122, %c0_123] : memref<8x32xf32, #tpu.memory_space<vmem>>, vector<8x32xf32>
    tpu.vector_store %arg11[%c0_122, %c0_123], %225 {strides = array<i32>} : memref<8x32xf32, #tpu.memory_space<vmem>>, vector<8x32xf32>,
    %c8_i32_124 = arith.constant 8 : i32
    %c0_125 = arith.constant 0 : index
    %c0_126 = arith.constant 0 : index
    %227 = vector.load %arg11[%c0_125, %c0_126] : memref<8x32xf32, #tpu.memory_space<vmem>>, vector<8x32xf32>
    %c0_127 = arith.constant 0 : index
    %c0_128 = arith.constant 0 : index
    %228 = vector.load %arg4[%c0_127, %c0_128] : memref<32x128xf32, #tpu.memory_space<vmem>>, vector<32x128xf32>
    %cst_129 = arith.constant dense<0.000000e+00> : vector<8x128xf32>
    %229 = tpu.matmul %227, %228, %cst_129 {dimension_numbers = #tpu.dot_dimension_numbers<[1], [0], [0], [1], [0, 0, 1, 1], [], []>} : vector<8x32xf32>, vector<32x128xf32>, vector<8x128xf32> -> vector<8x128xf32>
    %c0_130 = arith.constant 0 : index
    %c0_131 = arith.constant 0 : index
    %230 = vector.load %arg6[%c0_130, %c0_131] : memref<1x128xf32, #tpu.memory_space<vmem>>, vector<1x128xf32>
    %231 = vector.broadcast %230 : vector<1x128xf32> to vector<8x128xf32>
    %232 = arith.addf %229, %231 : vector<8x128xf32>
    %cst_132 = arith.constant 0.000000e+00 : f32
    %233 = vector.broadcast %cst_132 : f32 to vector<8x32xf32>
    %c0_133 = arith.constant 0 : index
    %c0_134 = arith.constant 0 : index
    %234 = vector.load %arg13[%c0_133, %c0_134] : memref<8x32xf32, #tpu.memory_space<vmem>>, vector<8x32xf32>
    tpu.vector_store %arg13[%c0_133, %c0_134], %233 {strides = array<i32>} : memref<8x32xf32, #tpu.memory_space<vmem>>, vector<8x32xf32>,
    %cst_135 = arith.constant 0.000000e+00 : f32
    %235 = vector.broadcast %cst_135 : f32 to vector<8x32xf32>
    %c0_136 = arith.constant 0 : index
    %c0_137 = arith.constant 0 : index
    %236 = vector.load %arg14[%c0_136, %c0_137] : memref<8x32xf32, #tpu.memory_space<vmem>>, vector<8x32xf32>
    tpu.vector_store %arg14[%c0_136, %c0_137], %235 {strides = array<i32>} : memref<8x32xf32, #tpu.memory_space<vmem>>, vector<8x32xf32>,
    %c0_i32_138 = arith.constant 0 : i32
    %c0_139 = arith.constant 0 : index
    %c0_140 = arith.constant 0 : index
    %237 = vector.load %arg13[%c0_139, %c0_140] : memref<8x32xf32, #tpu.memory_space<vmem>>, vector<8x32xf32>
    %c0_141 = arith.constant 0 : index
    %c0_142 = arith.constant 0 : index
    %238 = vector.load %arg5[%c0_141, %c0_142] : memref<32x128xf32, #tpu.memory_space<vmem>>, vector<32x128xf32>
    %cst_143 = arith.constant dense<0.000000e+00> : vector<8x128xf32>
    %239 = tpu.matmul %237, %238, %cst_143 {dimension_numbers = #tpu.dot_dimension_numbers<[1], [0], [0], [1], [0, 0, 1, 1], [], []>} : vector<8x32xf32>, vector<32x128xf32>, vector<8x128xf32> -> vector<8x128xf32>
    %240 = arith.addf %232, %239 : vector<8x128xf32>
    %241 = vector.extract_strided_slice %240 {offsets = [0, 0], sizes = [8, 96], strides = [1, 1]} : vector<8x128xf32> to vector<8x96xf32>
    %242 = arith.negf %241 : vector<8x96xf32>
    %243 = math.exp %242 : vector<8x96xf32>
    %cst_144 = arith.constant 1.000000e+00 : f32
    %244 = vector.broadcast %cst_144 : f32 to vector<8x96xf32>
    %245 = arith.addf %244, %243 : vector<8x96xf32>
    %246 = arith.divf %244, %245 : vector<8x96xf32>
    %247 = vector.extract_strided_slice %246 {offsets = [0, 0], sizes = [8, 32], strides = [1, 1]} : vector<8x96xf32> to vector<8x32xf32>
    %248 = vector.extract_strided_slice %246 {offsets = [0, 32], sizes = [8, 32], strides = [1, 1]} : vector<8x96xf32> to vector<8x32xf32>
    %249 = vector.extract_strided_slice %246 {offsets = [0, 64], sizes = [8, 32], strides = [1, 1]} : vector<8x96xf32> to vector<8x32xf32>
    %250 = vector.extract_strided_slice %240 {offsets = [0, 96], sizes = [8, 32], strides = [1, 1]} : vector<8x128xf32> to vector<8x32xf32>
    %251 = math.tanh %250 : vector<8x32xf32>
    %c0_145 = arith.constant 0 : index
    %c0_146 = arith.constant 0 : index
    %252 = vector.load %arg14[%c0_145, %c0_146] : memref<8x32xf32, #tpu.memory_space<vmem>>, vector<8x32xf32>
    %253 = arith.mulf %248, %252 : vector<8x32xf32>
    %254 = arith.mulf %247, %251 : vector<8x32xf32>
    %255 = arith.addf %253, %254 : vector<8x32xf32>
    %c0_147 = arith.constant 0 : index
    %c0_148 = arith.constant 0 : index
    %256 = vector.load %arg14[%c0_147, %c0_148] : memref<8x32xf32, #tpu.memory_space<vmem>>, vector<8x32xf32>
    tpu.vector_store %arg14[%c0_147, %c0_148], %255 {strides = array<i32>} : memref<8x32xf32, #tpu.memory_space<vmem>>, vector<8x32xf32>,
    %257 = math.tanh %255 : vector<8x32xf32>
    %258 = arith.mulf %249, %257 : vector<8x32xf32>
    %c0_149 = arith.constant 0 : index
    %c0_150 = arith.constant 0 : index
    %259 = vector.load %arg13[%c0_149, %c0_150] : memref<8x32xf32, #tpu.memory_space<vmem>>, vector<8x32xf32>
    tpu.vector_store %arg13[%c0_149, %c0_150], %258 {strides = array<i32>} : memref<8x32xf32, #tpu.memory_space<vmem>>, vector<8x32xf32>,
    %c8_i32_151 = arith.constant 8 : i32
    %260 = arith.muli %c0_i32_138, %c8_i32_151 : i32
    %261 = tpu.assume_multiple %260, 8 : i32
    %262 = arith.index_cast %261 : i32 to index
    %c0_152 = arith.constant 0 : index
    %263 = vector.load %arg15[%262, %c0_152] : memref<64x32xf32, #tpu.memory_space<vmem>>, vector<8x32xf32>
    tpu.vector_store %arg15[%262, %c0_152], %258 {strides = array<i32>} : memref<64x32xf32, #tpu.memory_space<vmem>>, vector<8x32xf32>,
    %c1_i32_153 = arith.constant 1 : i32
    %c0_154 = arith.constant 0 : index
    %c0_155 = arith.constant 0 : index
    %264 = vector.load %arg13[%c0_154, %c0_155] : memref<8x32xf32, #tpu.memory_space<vmem>>, vector<8x32xf32>
    %c0_156 = arith.constant 0 : index
    %c0_157 = arith.constant 0 : index
    %265 = vector.load %arg5[%c0_156, %c0_157] : memref<32x128xf32, #tpu.memory_space<vmem>>, vector<32x128xf32>
    %cst_158 = arith.constant dense<0.000000e+00> : vector<8x128xf32>
    %266 = tpu.matmul %264, %265, %cst_158 {dimension_numbers = #tpu.dot_dimension_numbers<[1], [0], [0], [1], [0, 0, 1, 1], [], []>} : vector<8x32xf32>, vector<32x128xf32>, vector<8x128xf32> -> vector<8x128xf32>
    %267 = arith.addf %232, %266 : vector<8x128xf32>
    %268 = vector.extract_strided_slice %267 {offsets = [0, 0], sizes = [8, 96], strides = [1, 1]} : vector<8x128xf32> to vector<8x96xf32>
    %269 = arith.negf %268 : vector<8x96xf32>
    %270 = math.exp %269 : vector<8x96xf32>
    %cst_159 = arith.constant 1.000000e+00 : f32
    %271 = vector.broadcast %cst_159 : f32 to vector<8x96xf32>
    %272 = arith.addf %271, %270 : vector<8x96xf32>
    %273 = arith.divf %271, %272 : vector<8x96xf32>
    %274 = vector.extract_strided_slice %273 {offsets = [0, 0], sizes = [8, 32], strides = [1, 1]} : vector<8x96xf32> to vector<8x32xf32>
    %275 = vector.extract_strided_slice %273 {offsets = [0, 32], sizes = [8, 32], strides = [1, 1]} : vector<8x96xf32> to vector<8x32xf32>
    %276 = vector.extract_strided_slice %273 {offsets = [0, 64], sizes = [8, 32], strides = [1, 1]} : vector<8x96xf32> to vector<8x32xf32>
    %277 = vector.extract_strided_slice %267 {offsets = [0, 96], sizes = [8, 32], strides = [1, 1]} : vector<8x128xf32> to vector<8x32xf32>
    %278 = math.tanh %277 : vector<8x32xf32>
    %c0_160 = arith.constant 0 : index
    %c0_161 = arith.constant 0 : index
    %279 = vector.load %arg14[%c0_160, %c0_161] : memref<8x32xf32, #tpu.memory_space<vmem>>, vector<8x32xf32>
    %280 = arith.mulf %275, %279 : vector<8x32xf32>
    %281 = arith.mulf %274, %278 : vector<8x32xf32>
    %282 = arith.addf %280, %281 : vector<8x32xf32>
    %c0_162 = arith.constant 0 : index
    %c0_163 = arith.constant 0 : index
    %283 = vector.load %arg14[%c0_162, %c0_163] : memref<8x32xf32, #tpu.memory_space<vmem>>, vector<8x32xf32>
    tpu.vector_store %arg14[%c0_162, %c0_163], %282 {strides = array<i32>} : memref<8x32xf32, #tpu.memory_space<vmem>>, vector<8x32xf32>,
    %284 = math.tanh %282 : vector<8x32xf32>
    %285 = arith.mulf %276, %284 : vector<8x32xf32>
    %c0_164 = arith.constant 0 : index
    %c0_165 = arith.constant 0 : index
    %286 = vector.load %arg13[%c0_164, %c0_165] : memref<8x32xf32, #tpu.memory_space<vmem>>, vector<8x32xf32>
    tpu.vector_store %arg13[%c0_164, %c0_165], %285 {strides = array<i32>} : memref<8x32xf32, #tpu.memory_space<vmem>>, vector<8x32xf32>,
    %c8_i32_166 = arith.constant 8 : i32
    %287 = arith.muli %c1_i32_153, %c8_i32_166 : i32
    %288 = tpu.assume_multiple %287, 8 : i32
    %289 = arith.index_cast %288 : i32 to index
    %c0_167 = arith.constant 0 : index
    %290 = vector.load %arg15[%289, %c0_167] : memref<64x32xf32, #tpu.memory_space<vmem>>, vector<8x32xf32>
    tpu.vector_store %arg15[%289, %c0_167], %285 {strides = array<i32>} : memref<64x32xf32, #tpu.memory_space<vmem>>, vector<8x32xf32>,
    %c2_i32_168 = arith.constant 2 : i32
    %c0_169 = arith.constant 0 : index
    %c0_170 = arith.constant 0 : index
    %291 = vector.load %arg13[%c0_169, %c0_170] : memref<8x32xf32, #tpu.memory_space<vmem>>, vector<8x32xf32>
    %c0_171 = arith.constant 0 : index
    %c0_172 = arith.constant 0 : index
    %292 = vector.load %arg5[%c0_171, %c0_172] : memref<32x128xf32, #tpu.memory_space<vmem>>, vector<32x128xf32>
    %cst_173 = arith.constant dense<0.000000e+00> : vector<8x128xf32>
    %293 = tpu.matmul %291, %292, %cst_173 {dimension_numbers = #tpu.dot_dimension_numbers<[1], [0], [0], [1], [0, 0, 1, 1], [], []>} : vector<8x32xf32>, vector<32x128xf32>, vector<8x128xf32> -> vector<8x128xf32>
    %294 = arith.addf %232, %293 : vector<8x128xf32>
    %295 = vector.extract_strided_slice %294 {offsets = [0, 0], sizes = [8, 96], strides = [1, 1]} : vector<8x128xf32> to vector<8x96xf32>
    %296 = arith.negf %295 : vector<8x96xf32>
    %297 = math.exp %296 : vector<8x96xf32>
    %cst_174 = arith.constant 1.000000e+00 : f32
    %298 = vector.broadcast %cst_174 : f32 to vector<8x96xf32>
    %299 = arith.addf %298, %297 : vector<8x96xf32>
    %300 = arith.divf %298, %299 : vector<8x96xf32>
    %301 = vector.extract_strided_slice %300 {offsets = [0, 0], sizes = [8, 32], strides = [1, 1]} : vector<8x96xf32> to vector<8x32xf32>
    %302 = vector.extract_strided_slice %300 {offsets = [0, 32], sizes = [8, 32], strides = [1, 1]} : vector<8x96xf32> to vector<8x32xf32>
    %303 = vector.extract_strided_slice %300 {offsets = [0, 64], sizes = [8, 32], strides = [1, 1]} : vector<8x96xf32> to vector<8x32xf32>
    %304 = vector.extract_strided_slice %294 {offsets = [0, 96], sizes = [8, 32], strides = [1, 1]} : vector<8x128xf32> to vector<8x32xf32>
    %305 = math.tanh %304 : vector<8x32xf32>
    %c0_175 = arith.constant 0 : index
    %c0_176 = arith.constant 0 : index
    %306 = vector.load %arg14[%c0_175, %c0_176] : memref<8x32xf32, #tpu.memory_space<vmem>>, vector<8x32xf32>
    %307 = arith.mulf %302, %306 : vector<8x32xf32>
    %308 = arith.mulf %301, %305 : vector<8x32xf32>
    %309 = arith.addf %307, %308 : vector<8x32xf32>
    %c0_177 = arith.constant 0 : index
    %c0_178 = arith.constant 0 : index
    %310 = vector.load %arg14[%c0_177, %c0_178] : memref<8x32xf32, #tpu.memory_space<vmem>>, vector<8x32xf32>
    tpu.vector_store %arg14[%c0_177, %c0_178], %309 {strides = array<i32>} : memref<8x32xf32, #tpu.memory_space<vmem>>, vector<8x32xf32>,
    %311 = math.tanh %309 : vector<8x32xf32>
    %312 = arith.mulf %303, %311 : vector<8x32xf32>
    %c0_179 = arith.constant 0 : index
    %c0_180 = arith.constant 0 : index
    %313 = vector.load %arg13[%c0_179, %c0_180] : memref<8x32xf32, #tpu.memory_space<vmem>>, vector<8x32xf32>
    tpu.vector_store %arg13[%c0_179, %c0_180], %312 {strides = array<i32>} : memref<8x32xf32, #tpu.memory_space<vmem>>, vector<8x32xf32>,
    %c8_i32_181 = arith.constant 8 : i32
    %314 = arith.muli %c2_i32_168, %c8_i32_181 : i32
    %315 = tpu.assume_multiple %314, 8 : i32
    %316 = arith.index_cast %315 : i32 to index
    %c0_182 = arith.constant 0 : index
    %317 = vector.load %arg15[%316, %c0_182] : memref<64x32xf32, #tpu.memory_space<vmem>>, vector<8x32xf32>
    tpu.vector_store %arg15[%316, %c0_182], %312 {strides = array<i32>} : memref<64x32xf32, #tpu.memory_space<vmem>>, vector<8x32xf32>,
    %c3_i32_183 = arith.constant 3 : i32
    %c0_184 = arith.constant 0 : index
    %c0_185 = arith.constant 0 : index
    %318 = vector.load %arg13[%c0_184, %c0_185] : memref<8x32xf32, #tpu.memory_space<vmem>>, vector<8x32xf32>
    %c0_186 = arith.constant 0 : index
    %c0_187 = arith.constant 0 : index
    %319 = vector.load %arg5[%c0_186, %c0_187] : memref<32x128xf32, #tpu.memory_space<vmem>>, vector<32x128xf32>
    %cst_188 = arith.constant dense<0.000000e+00> : vector<8x128xf32>
    %320 = tpu.matmul %318, %319, %cst_188 {dimension_numbers = #tpu.dot_dimension_numbers<[1], [0], [0], [1], [0, 0, 1, 1], [], []>} : vector<8x32xf32>, vector<32x128xf32>, vector<8x128xf32> -> vector<8x128xf32>
    %321 = arith.addf %232, %320 : vector<8x128xf32>
    %322 = vector.extract_strided_slice %321 {offsets = [0, 0], sizes = [8, 96], strides = [1, 1]} : vector<8x128xf32> to vector<8x96xf32>
    %323 = arith.negf %322 : vector<8x96xf32>
    %324 = math.exp %323 : vector<8x96xf32>
    %cst_189 = arith.constant 1.000000e+00 : f32
    %325 = vector.broadcast %cst_189 : f32 to vector<8x96xf32>
    %326 = arith.addf %325, %324 : vector<8x96xf32>
    %327 = arith.divf %325, %326 : vector<8x96xf32>
    %328 = vector.extract_strided_slice %327 {offsets = [0, 0], sizes = [8, 32], strides = [1, 1]} : vector<8x96xf32> to vector<8x32xf32>
    %329 = vector.extract_strided_slice %327 {offsets = [0, 32], sizes = [8, 32], strides = [1, 1]} : vector<8x96xf32> to vector<8x32xf32>
    %330 = vector.extract_strided_slice %327 {offsets = [0, 64], sizes = [8, 32], strides = [1, 1]} : vector<8x96xf32> to vector<8x32xf32>
    %331 = vector.extract_strided_slice %321 {offsets = [0, 96], sizes = [8, 32], strides = [1, 1]} : vector<8x128xf32> to vector<8x32xf32>
    %332 = math.tanh %331 : vector<8x32xf32>
    %c0_190 = arith.constant 0 : index
    %c0_191 = arith.constant 0 : index
    %333 = vector.load %arg14[%c0_190, %c0_191] : memref<8x32xf32, #tpu.memory_space<vmem>>, vector<8x32xf32>
    %334 = arith.mulf %329, %333 : vector<8x32xf32>
    %335 = arith.mulf %328, %332 : vector<8x32xf32>
    %336 = arith.addf %334, %335 : vector<8x32xf32>
    %c0_192 = arith.constant 0 : index
    %c0_193 = arith.constant 0 : index
    %337 = vector.load %arg14[%c0_192, %c0_193] : memref<8x32xf32, #tpu.memory_space<vmem>>, vector<8x32xf32>
    tpu.vector_store %arg14[%c0_192, %c0_193], %336 {strides = array<i32>} : memref<8x32xf32, #tpu.memory_space<vmem>>, vector<8x32xf32>,
    %338 = math.tanh %336 : vector<8x32xf32>
    %339 = arith.mulf %330, %338 : vector<8x32xf32>
    %c0_194 = arith.constant 0 : index
    %c0_195 = arith.constant 0 : index
    %340 = vector.load %arg13[%c0_194, %c0_195] : memref<8x32xf32, #tpu.memory_space<vmem>>, vector<8x32xf32>
    tpu.vector_store %arg13[%c0_194, %c0_195], %339 {strides = array<i32>} : memref<8x32xf32, #tpu.memory_space<vmem>>, vector<8x32xf32>,
    %c8_i32_196 = arith.constant 8 : i32
    %341 = arith.muli %c3_i32_183, %c8_i32_196 : i32
    %342 = tpu.assume_multiple %341, 8 : i32
    %343 = arith.index_cast %342 : i32 to index
    %c0_197 = arith.constant 0 : index
    %344 = vector.load %arg15[%343, %c0_197] : memref<64x32xf32, #tpu.memory_space<vmem>>, vector<8x32xf32>
    tpu.vector_store %arg15[%343, %c0_197], %339 {strides = array<i32>} : memref<64x32xf32, #tpu.memory_space<vmem>>, vector<8x32xf32>,
    %c4_i32_198 = arith.constant 4 : i32
    %c0_199 = arith.constant 0 : index
    %c0_200 = arith.constant 0 : index
    %345 = vector.load %arg13[%c0_199, %c0_200] : memref<8x32xf32, #tpu.memory_space<vmem>>, vector<8x32xf32>
    %c0_201 = arith.constant 0 : index
    %c0_202 = arith.constant 0 : index
    %346 = vector.load %arg5[%c0_201, %c0_202] : memref<32x128xf32, #tpu.memory_space<vmem>>, vector<32x128xf32>
    %cst_203 = arith.constant dense<0.000000e+00> : vector<8x128xf32>
    %347 = tpu.matmul %345, %346, %cst_203 {dimension_numbers = #tpu.dot_dimension_numbers<[1], [0], [0], [1], [0, 0, 1, 1], [], []>} : vector<8x32xf32>, vector<32x128xf32>, vector<8x128xf32> -> vector<8x128xf32>
    %348 = arith.addf %232, %347 : vector<8x128xf32>
    %349 = vector.extract_strided_slice %348 {offsets = [0, 0], sizes = [8, 96], strides = [1, 1]} : vector<8x128xf32> to vector<8x96xf32>
    %350 = arith.negf %349 : vector<8x96xf32>
    %351 = math.exp %350 : vector<8x96xf32>
    %cst_204 = arith.constant 1.000000e+00 : f32
    %352 = vector.broadcast %cst_204 : f32 to vector<8x96xf32>
    %353 = arith.addf %352, %351 : vector<8x96xf32>
    %354 = arith.divf %352, %353 : vector<8x96xf32>
    %355 = vector.extract_strided_slice %354 {offsets = [0, 0], sizes = [8, 32], strides = [1, 1]} : vector<8x96xf32> to vector<8x32xf32>
    %356 = vector.extract_strided_slice %354 {offsets = [0, 32], sizes = [8, 32], strides = [1, 1]} : vector<8x96xf32> to vector<8x32xf32>
    %357 = vector.extract_strided_slice %354 {offsets = [0, 64], sizes = [8, 32], strides = [1, 1]} : vector<8x96xf32> to vector<8x32xf32>
    %358 = vector.extract_strided_slice %348 {offsets = [0, 96], sizes = [8, 32], strides = [1, 1]} : vector<8x128xf32> to vector<8x32xf32>
    %359 = math.tanh %358 : vector<8x32xf32>
    %c0_205 = arith.constant 0 : index
    %c0_206 = arith.constant 0 : index
    %360 = vector.load %arg14[%c0_205, %c0_206] : memref<8x32xf32, #tpu.memory_space<vmem>>, vector<8x32xf32>
    %361 = arith.mulf %356, %360 : vector<8x32xf32>
    %362 = arith.mulf %355, %359 : vector<8x32xf32>
    %363 = arith.addf %361, %362 : vector<8x32xf32>
    %c0_207 = arith.constant 0 : index
    %c0_208 = arith.constant 0 : index
    %364 = vector.load %arg14[%c0_207, %c0_208] : memref<8x32xf32, #tpu.memory_space<vmem>>, vector<8x32xf32>
    tpu.vector_store %arg14[%c0_207, %c0_208], %363 {strides = array<i32>} : memref<8x32xf32, #tpu.memory_space<vmem>>, vector<8x32xf32>,
    %365 = math.tanh %363 : vector<8x32xf32>
    %366 = arith.mulf %357, %365 : vector<8x32xf32>
    %c0_209 = arith.constant 0 : index
    %c0_210 = arith.constant 0 : index
    %367 = vector.load %arg13[%c0_209, %c0_210] : memref<8x32xf32, #tpu.memory_space<vmem>>, vector<8x32xf32>
    tpu.vector_store %arg13[%c0_209, %c0_210], %366 {strides = array<i32>} : memref<8x32xf32, #tpu.memory_space<vmem>>, vector<8x32xf32>,
    %c8_i32_211 = arith.constant 8 : i32
    %368 = arith.muli %c4_i32_198, %c8_i32_211 : i32
    %369 = tpu.assume_multiple %368, 8 : i32
    %370 = arith.index_cast %369 : i32 to index
    %c0_212 = arith.constant 0 : index
    %371 = vector.load %arg15[%370, %c0_212] : memref<64x32xf32, #tpu.memory_space<vmem>>, vector<8x32xf32>
    tpu.vector_store %arg15[%370, %c0_212], %366 {strides = array<i32>} : memref<64x32xf32, #tpu.memory_space<vmem>>, vector<8x32xf32>,
    %c5_i32_213 = arith.constant 5 : i32
    %c0_214 = arith.constant 0 : index
    %c0_215 = arith.constant 0 : index
    %372 = vector.load %arg13[%c0_214, %c0_215] : memref<8x32xf32, #tpu.memory_space<vmem>>, vector<8x32xf32>
    %c0_216 = arith.constant 0 : index
    %c0_217 = arith.constant 0 : index
    %373 = vector.load %arg5[%c0_216, %c0_217] : memref<32x128xf32, #tpu.memory_space<vmem>>, vector<32x128xf32>
    %cst_218 = arith.constant dense<0.000000e+00> : vector<8x128xf32>
    %374 = tpu.matmul %372, %373, %cst_218 {dimension_numbers = #tpu.dot_dimension_numbers<[1], [0], [0], [1], [0, 0, 1, 1], [], []>} : vector<8x32xf32>, vector<32x128xf32>, vector<8x128xf32> -> vector<8x128xf32>
    %375 = arith.addf %232, %374 : vector<8x128xf32>
    %376 = vector.extract_strided_slice %375 {offsets = [0, 0], sizes = [8, 96], strides = [1, 1]} : vector<8x128xf32> to vector<8x96xf32>
    %377 = arith.negf %376 : vector<8x96xf32>
    %378 = math.exp %377 : vector<8x96xf32>
    %cst_219 = arith.constant 1.000000e+00 : f32
    %379 = vector.broadcast %cst_219 : f32 to vector<8x96xf32>
    %380 = arith.addf %379, %378 : vector<8x96xf32>
    %381 = arith.divf %379, %380 : vector<8x96xf32>
    %382 = vector.extract_strided_slice %381 {offsets = [0, 0], sizes = [8, 32], strides = [1, 1]} : vector<8x96xf32> to vector<8x32xf32>
    %383 = vector.extract_strided_slice %381 {offsets = [0, 32], sizes = [8, 32], strides = [1, 1]} : vector<8x96xf32> to vector<8x32xf32>
    %384 = vector.extract_strided_slice %381 {offsets = [0, 64], sizes = [8, 32], strides = [1, 1]} : vector<8x96xf32> to vector<8x32xf32>
    %385 = vector.extract_strided_slice %375 {offsets = [0, 96], sizes = [8, 32], strides = [1, 1]} : vector<8x128xf32> to vector<8x32xf32>
    %386 = math.tanh %385 : vector<8x32xf32>
    %c0_220 = arith.constant 0 : index
    %c0_221 = arith.constant 0 : index
    %387 = vector.load %arg14[%c0_220, %c0_221] : memref<8x32xf32, #tpu.memory_space<vmem>>, vector<8x32xf32>
    %388 = arith.mulf %383, %387 : vector<8x32xf32>
    %389 = arith.mulf %382, %386 : vector<8x32xf32>
    %390 = arith.addf %388, %389 : vector<8x32xf32>
    %c0_222 = arith.constant 0 : index
    %c0_223 = arith.constant 0 : index
    %391 = vector.load %arg14[%c0_222, %c0_223] : memref<8x32xf32, #tpu.memory_space<vmem>>, vector<8x32xf32>
    tpu.vector_store %arg14[%c0_222, %c0_223], %390 {strides = array<i32>} : memref<8x32xf32, #tpu.memory_space<vmem>>, vector<8x32xf32>,
    %392 = math.tanh %390 : vector<8x32xf32>
    %393 = arith.mulf %384, %392 : vector<8x32xf32>
    %c0_224 = arith.constant 0 : index
    %c0_225 = arith.constant 0 : index
    %394 = vector.load %arg13[%c0_224, %c0_225] : memref<8x32xf32, #tpu.memory_space<vmem>>, vector<8x32xf32>
    tpu.vector_store %arg13[%c0_224, %c0_225], %393 {strides = array<i32>} : memref<8x32xf32, #tpu.memory_space<vmem>>, vector<8x32xf32>,
    %c8_i32_226 = arith.constant 8 : i32
    %395 = arith.muli %c5_i32_213, %c8_i32_226 : i32
    %396 = tpu.assume_multiple %395, 8 : i32
    %397 = arith.index_cast %396 : i32 to index
    %c0_227 = arith.constant 0 : index
    %398 = vector.load %arg15[%397, %c0_227] : memref<64x32xf32, #tpu.memory_space<vmem>>, vector<8x32xf32>
    tpu.vector_store %arg15[%397, %c0_227], %393 {strides = array<i32>} : memref<64x32xf32, #tpu.memory_space<vmem>>, vector<8x32xf32>,
    %c6_i32_228 = arith.constant 6 : i32
    %c0_229 = arith.constant 0 : index
    %c0_230 = arith.constant 0 : index
    %399 = vector.load %arg13[%c0_229, %c0_230] : memref<8x32xf32, #tpu.memory_space<vmem>>, vector<8x32xf32>
    %c0_231 = arith.constant 0 : index
    %c0_232 = arith.constant 0 : index
    %400 = vector.load %arg5[%c0_231, %c0_232] : memref<32x128xf32, #tpu.memory_space<vmem>>, vector<32x128xf32>
    %cst_233 = arith.constant dense<0.000000e+00> : vector<8x128xf32>
    %401 = tpu.matmul %399, %400, %cst_233 {dimension_numbers = #tpu.dot_dimension_numbers<[1], [0], [0], [1], [0, 0, 1, 1], [], []>} : vector<8x32xf32>, vector<32x128xf32>, vector<8x128xf32> -> vector<8x128xf32>
    %402 = arith.addf %232, %401 : vector<8x128xf32>
    %403 = vector.extract_strided_slice %402 {offsets = [0, 0], sizes = [8, 96], strides = [1, 1]} : vector<8x128xf32> to vector<8x96xf32>
    %404 = arith.negf %403 : vector<8x96xf32>
    %405 = math.exp %404 : vector<8x96xf32>
    %cst_234 = arith.constant 1.000000e+00 : f32
    %406 = vector.broadcast %cst_234 : f32 to vector<8x96xf32>
    %407 = arith.addf %406, %405 : vector<8x96xf32>
    %408 = arith.divf %406, %407 : vector<8x96xf32>
    %409 = vector.extract_strided_slice %408 {offsets = [0, 0], sizes = [8, 32], strides = [1, 1]} : vector<8x96xf32> to vector<8x32xf32>
    %410 = vector.extract_strided_slice %408 {offsets = [0, 32], sizes = [8, 32], strides = [1, 1]} : vector<8x96xf32> to vector<8x32xf32>
    %411 = vector.extract_strided_slice %408 {offsets = [0, 64], sizes = [8, 32], strides = [1, 1]} : vector<8x96xf32> to vector<8x32xf32>
    %412 = vector.extract_strided_slice %402 {offsets = [0, 96], sizes = [8, 32], strides = [1, 1]} : vector<8x128xf32> to vector<8x32xf32>
    %413 = math.tanh %412 : vector<8x32xf32>
    %c0_235 = arith.constant 0 : index
    %c0_236 = arith.constant 0 : index
    %414 = vector.load %arg14[%c0_235, %c0_236] : memref<8x32xf32, #tpu.memory_space<vmem>>, vector<8x32xf32>
    %415 = arith.mulf %410, %414 : vector<8x32xf32>
    %416 = arith.mulf %409, %413 : vector<8x32xf32>
    %417 = arith.addf %415, %416 : vector<8x32xf32>
    %c0_237 = arith.constant 0 : index
    %c0_238 = arith.constant 0 : index
    %418 = vector.load %arg14[%c0_237, %c0_238] : memref<8x32xf32, #tpu.memory_space<vmem>>, vector<8x32xf32>
    tpu.vector_store %arg14[%c0_237, %c0_238], %417 {strides = array<i32>} : memref<8x32xf32, #tpu.memory_space<vmem>>, vector<8x32xf32>,
    %419 = math.tanh %417 : vector<8x32xf32>
    %420 = arith.mulf %411, %419 : vector<8x32xf32>
    %c0_239 = arith.constant 0 : index
    %c0_240 = arith.constant 0 : index
    %421 = vector.load %arg13[%c0_239, %c0_240] : memref<8x32xf32, #tpu.memory_space<vmem>>, vector<8x32xf32>
    tpu.vector_store %arg13[%c0_239, %c0_240], %420 {strides = array<i32>} : memref<8x32xf32, #tpu.memory_space<vmem>>, vector<8x32xf32>,
    %c8_i32_241 = arith.constant 8 : i32
    %422 = arith.muli %c6_i32_228, %c8_i32_241 : i32
    %423 = tpu.assume_multiple %422, 8 : i32
    %424 = arith.index_cast %423 : i32 to index
    %c0_242 = arith.constant 0 : index
    %425 = vector.load %arg15[%424, %c0_242] : memref<64x32xf32, #tpu.memory_space<vmem>>, vector<8x32xf32>
    tpu.vector_store %arg15[%424, %c0_242], %420 {strides = array<i32>} : memref<64x32xf32, #tpu.memory_space<vmem>>, vector<8x32xf32>,
    %c7_i32_243 = arith.constant 7 : i32
    %c0_244 = arith.constant 0 : index
    %c0_245 = arith.constant 0 : index
    %426 = vector.load %arg13[%c0_244, %c0_245] : memref<8x32xf32, #tpu.memory_space<vmem>>, vector<8x32xf32>
    %c0_246 = arith.constant 0 : index
    %c0_247 = arith.constant 0 : index
    %427 = vector.load %arg5[%c0_246, %c0_247] : memref<32x128xf32, #tpu.memory_space<vmem>>, vector<32x128xf32>
    %cst_248 = arith.constant dense<0.000000e+00> : vector<8x128xf32>
    %428 = tpu.matmul %426, %427, %cst_248 {dimension_numbers = #tpu.dot_dimension_numbers<[1], [0], [0], [1], [0, 0, 1, 1], [], []>} : vector<8x32xf32>, vector<32x128xf32>, vector<8x128xf32> -> vector<8x128xf32>
    %429 = arith.addf %232, %428 : vector<8x128xf32>
    %430 = vector.extract_strided_slice %429 {offsets = [0, 0], sizes = [8, 96], strides = [1, 1]} : vector<8x128xf32> to vector<8x96xf32>
    %431 = arith.negf %430 : vector<8x96xf32>
    %432 = math.exp %431 : vector<8x96xf32>
    %cst_249 = arith.constant 1.000000e+00 : f32
    %433 = vector.broadcast %cst_249 : f32 to vector<8x96xf32>
    %434 = arith.addf %433, %432 : vector<8x96xf32>
    %435 = arith.divf %433, %434 : vector<8x96xf32>
    %436 = vector.extract_strided_slice %435 {offsets = [0, 0], sizes = [8, 32], strides = [1, 1]} : vector<8x96xf32> to vector<8x32xf32>
    %437 = vector.extract_strided_slice %435 {offsets = [0, 32], sizes = [8, 32], strides = [1, 1]} : vector<8x96xf32> to vector<8x32xf32>
    %438 = vector.extract_strided_slice %435 {offsets = [0, 64], sizes = [8, 32], strides = [1, 1]} : vector<8x96xf32> to vector<8x32xf32>
    %439 = vector.extract_strided_slice %429 {offsets = [0, 96], sizes = [8, 32], strides = [1, 1]} : vector<8x128xf32> to vector<8x32xf32>
    %440 = math.tanh %439 : vector<8x32xf32>
    %c0_250 = arith.constant 0 : index
    %c0_251 = arith.constant 0 : index
    %441 = vector.load %arg14[%c0_250, %c0_251] : memref<8x32xf32, #tpu.memory_space<vmem>>, vector<8x32xf32>
    %442 = arith.mulf %437, %441 : vector<8x32xf32>
    %443 = arith.mulf %436, %440 : vector<8x32xf32>
    %444 = arith.addf %442, %443 : vector<8x32xf32>
    %c0_252 = arith.constant 0 : index
    %c0_253 = arith.constant 0 : index
    %445 = vector.load %arg14[%c0_252, %c0_253] : memref<8x32xf32, #tpu.memory_space<vmem>>, vector<8x32xf32>
    tpu.vector_store %arg14[%c0_252, %c0_253], %444 {strides = array<i32>} : memref<8x32xf32, #tpu.memory_space<vmem>>, vector<8x32xf32>,
    %446 = math.tanh %444 : vector<8x32xf32>
    %447 = arith.mulf %438, %446 : vector<8x32xf32>
    %c0_254 = arith.constant 0 : index
    %c0_255 = arith.constant 0 : index
    %448 = vector.load %arg13[%c0_254, %c0_255] : memref<8x32xf32, #tpu.memory_space<vmem>>, vector<8x32xf32>
    tpu.vector_store %arg13[%c0_254, %c0_255], %447 {strides = array<i32>} : memref<8x32xf32, #tpu.memory_space<vmem>>, vector<8x32xf32>,
    %c8_i32_256 = arith.constant 8 : i32
    %449 = arith.muli %c7_i32_243, %c8_i32_256 : i32
    %450 = tpu.assume_multiple %449, 8 : i32
    %451 = arith.index_cast %450 : i32 to index
    %c0_257 = arith.constant 0 : index
    %452 = vector.load %arg15[%451, %c0_257] : memref<64x32xf32, #tpu.memory_space<vmem>>, vector<8x32xf32>
    tpu.vector_store %arg15[%451, %c0_257], %447 {strides = array<i32>} : memref<64x32xf32, #tpu.memory_space<vmem>>, vector<8x32xf32>,
    %c8_i32_258 = arith.constant 8 : i32
    %c0_259 = arith.constant 0 : index
    %c0_260 = arith.constant 0 : index
    %453 = vector.load %arg15[%c0_259, %c0_260] : memref<64x32xf32, #tpu.memory_space<vmem>>, vector<64x32xf32>
    %c0_261 = arith.constant 0 : index
    %c0_262 = arith.constant 0 : index
    %454 = vector.load %arg7[%c0_261, %c0_262] : memref<32x16xf32, #tpu.memory_space<vmem>>, vector<32x16xf32>
    %cst_263 = arith.constant dense<0.000000e+00> : vector<64x16xf32>
    %455 = tpu.matmul %453, %454, %cst_263 {dimension_numbers = #tpu.dot_dimension_numbers<[1], [0], [0], [1], [0, 0, 1, 1], [], []>} : vector<64x32xf32>, vector<32x16xf32>, vector<64x16xf32> -> vector<64x16xf32>
    %c0_264 = arith.constant 0 : index
    %c0_265 = arith.constant 0 : index
    %456 = vector.load %arg8[%c0_264, %c0_265] : memref<1x16xf32, #tpu.memory_space<vmem>>, vector<1x16xf32>
    %457 = vector.broadcast %456 : vector<1x16xf32> to vector<64x16xf32>
    %458 = arith.addf %455, %457 : vector<64x16xf32>
    %459 = math.tanh %458 : vector<64x16xf32>
    %c0_266 = arith.constant 0 : index
    %c0_267 = arith.constant 0 : index
    %460 = vector.load %arg9[%c0_266, %c0_267] : memref<64x16xf32, #tpu.memory_space<vmem>>, vector<64x16xf32>
    tpu.vector_store %arg9[%c0_266, %c0_267], %459 {strides = array<i32>} : memref<64x16xf32, #tpu.memory_space<vmem>>, vector<64x16xf32>,
    return
  }
}

</mosaic_0001>

<llo_original>
// kernel: lstm_autoencoder_forward.1
$region0: #{lstm_autoencoder_forward.1}
  #allocation0 [shape = 'u32[]', space=smem, size = 0x4, offset = 0x4, fixed_abs, tag = 'smem constant byte address 0x4 - core index']
  #allocation1 [shape = 'u32[144,128]{1,0:T(1,128)}', space=vmem, size = 0x12000, scoped, tag = 'internal scratch']
  #allocation2 [shape = 'f32[64,128]{1,0:T(8,128)}', space=vmem, size = 0x8000, scoped, tag = 'scratch operand']
  #allocation3 [shape = 'f32[8,32]{1,0:T(8,128)}', space=vmem, size = 0x1000, scoped, tag = 'scratch operand']
  #allocation4 [shape = 'f32[8,32]{1,0:T(8,128)}', space=vmem, size = 0x1000, scoped, tag = 'scratch operand']
  #allocation5 [shape = 'f32[8,32]{1,0:T(8,128)}', space=vmem, size = 0x1000, scoped, tag = 'scratch operand']
  #allocation6 [shape = 'f32[8,32]{1,0:T(8,128)}', space=vmem, size = 0x1000, scoped, tag = 'scratch operand']
  #allocation7 [shape = 'f32[64,32]{1,0:T(8,128)}', space=vmem, size = 0x8000, scoped, tag = 'scratch operand']
  %s0 = inlined_call_operand.vmem [shape: f32[64,16], index: 0, kind: input, shape index: {}]
  %s1 = inlined_call_operand.vmem [shape: f32[16,128], index: 1, kind: input, shape index: {}]
  %s2 = inlined_call_operand.vmem [shape: f32[32,128], index: 2, kind: input, shape index: {}]
  %s3 = inlined_call_operand.vmem [shape: f32[1,128], index: 3, kind: input, shape index: {}]
  %s4 = inlined_call_operand.vmem [shape: f32[32,128], index: 4, kind: input, shape index: {}]
  %s5 = inlined_call_operand.vmem [shape: f32[32,128], index: 5, kind: input, shape index: {}]
  %s6 = inlined_call_operand.vmem [shape: f32[1,128], index: 6, kind: input, shape index: {}]
  %s7 = inlined_call_operand.vmem [shape: f32[32,16], index: 7, kind: input, shape index: {}]
  %s8 = inlined_call_operand.vmem [shape: f32[1,16], index: 8, kind: input, shape index: {}]
  %s9 = inlined_call_operand.vmem [shape: f32[64,16], index: 9, kind: output, shape index: {}]
  %s10 = sld [smem:[#allocation0]]
  $region46: #{lstm_autoencoder_forward.1} parent=0
    _
  %s12 = ssub.s32 1, %s10
  %s13 = scalar_select 0, %s12, %s10
  // Predicated region
  $region2: #{lstm_autoencoder_forward.1} parent=0 // pred_check
    _
  $region3: #{lstm_autoencoder_forward.1} parent=0 // pred_check_branch
    %15 = sbr.rel (0) target = $region5
  $region4: #{lstm_autoencoder_forward.1} parent=0 // pred_region
    _
  $region5: #{lstm_autoencoder_forward.1} parent=0 // pred_fallthru
    _
  // Predicated region
  $region6: #{lstm_autoencoder_forward.1} parent=0 // pred_check
    _
  $region7: #{lstm_autoencoder_forward.1} parent=0 // pred_check_branch
    %17 = sbr.rel (0) target = $region9
  $region8: #{lstm_autoencoder_forward.1} parent=0 // pred_region
    _
  $region9: #{lstm_autoencoder_forward.1} parent=0 // pred_fallthru
    _
  // Predicated region
  $region10: #{lstm_autoencoder_forward.1} parent=0 // pred_check
    _
  $region11: #{lstm_autoencoder_forward.1} parent=0 // pred_check_branch
    %19 = sbr.rel (0) target = $region13
  $region12: #{lstm_autoencoder_forward.1} parent=0 // pred_region
    _
  $region13: #{lstm_autoencoder_forward.1} parent=0 // pred_fallthru
    _
  // Predicated region
  $region14: #{lstm_autoencoder_forward.1} parent=0 // pred_check
    _
  $region15: #{lstm_autoencoder_forward.1} parent=0 // pred_check_branch
    %21 = sbr.rel (0) target = $region17
  $region16: #{lstm_autoencoder_forward.1} parent=0 // pred_region
    _
  $region17: #{lstm_autoencoder_forward.1} parent=0 // pred_fallthru
    _
  // Predicated region
  $region18: #{lstm_autoencoder_forward.1} parent=0 // pred_check
    _
  $region19: #{lstm_autoencoder_forward.1} parent=0 // pred_check_branch
    %23 = sbr.rel (0) target = $region21
  $region20: #{lstm_autoencoder_forward.1} parent=0 // pred_region
    _
  $region21: #{lstm_autoencoder_forward.1} parent=0 // pred_fallthru
    _
  // Predicated region
  $region22: #{lstm_autoencoder_forward.1} parent=0 // pred_check
    _
  $region23: #{lstm_autoencoder_forward.1} parent=0 // pred_check_branch
    %25 = sbr.rel (0) target = $region25
  $region24: #{lstm_autoencoder_forward.1} parent=0 // pred_region
    _
  $region25: #{lstm_autoencoder_forward.1} parent=0 // pred_fallthru
    _
  // Predicated region
  $region26: #{lstm_autoencoder_forward.1} parent=0 // pred_check
    _
  $region27: #{lstm_autoencoder_forward.1} parent=0 // pred_check_branch
    %27 = sbr.rel (0) target = $region29
  $region28: #{lstm_autoencoder_forward.1} parent=0 // pred_region
    _
  $region29: #{lstm_autoencoder_forward.1} parent=0 // pred_fallthru
    _
  // Predicated region
  $region30: #{lstm_autoencoder_forward.1} parent=0 // pred_check
    _
  $region31: #{lstm_autoencoder_forward.1} parent=0 // pred_check_branch
    %29 = sbr.rel (0) target = $region33
  $region32: #{lstm_autoencoder_forward.1} parent=0 // pred_region
    _
  $region33: #{lstm_autoencoder_forward.1} parent=0 // pred_fallthru
    _
  // Predicated region
  $region34: #{lstm_autoencoder_forward.1} parent=0 // pred_check
    _
  $region35: #{lstm_autoencoder_forward.1} parent=0 // pred_check_branch
    %31 = sbr.rel (0) target = $region37
  $region36: #{lstm_autoencoder_forward.1} parent=0 // pred_region
    _
  $region37: #{lstm_autoencoder_forward.1} parent=0 // pred_fallthru
    _
  %v32 = vld [vmem:[%s0] sm:$0xff]
  %v33 = vld [vmem:[%s0 + $0x8] sm:$0xff]
  %v34 = vld [vmem:[%s0 + $0x10] sm:$0xff]
  %v35 = vld [vmem:[%s0 + $0x18] sm:$0xff]
  %v36 = vld [vmem:[%s0 + $0x20] sm:$0xff]
  %v37 = vld [vmem:[%s0 + $0x28] sm:$0xff]
  %v38 = vld [vmem:[%s0 + $0x30] sm:$0xff]
  %v39 = vld [vmem:[%s0 + $0x38] sm:$0xff]
  %v40 = vld [vmem:[%s1] sm:$0xff]
  %v41 = vld [vmem:[%s1 + $0x8] sm:$0xff]
  %v42 = vld [vmem:[%s3] sm:$0x1]
  %v44 = vlaneseq
  %v45 = vshrl.u32 %v44, 7
  %v46 = vsub.s32 0, %v45
  %v47 = vrot.slane %v42, %v46
  %vm49 = vcmask 130048
  %v51 = vsel %vm49, %v32, 0
  %v54 = vsel %vm49, %v33, 0
  %v57 = vsel %vm49, %v34, 0
  %v60 = vsel %vm49, %v35, 0
  %v63 = vsel %vm49, %v36, 0
  %v66 = vsel %vm49, %v37, 0
  %v69 = vsel %vm49, %v38, 0
  %v72 = vsel %vm49, %v39, 0
  %74 = vmatprep.subr.mxu0 0.0
  %75 = vmatpush1.msra.mxu0 %v40
  %76 = vmatprep.subr.mxu0 0.0
  %77 = vmatpush1.msra.mxu0 %v41
  %78 = vmatprep.subr.mxu0 0.0
  %79 = vmatpush1.msra.mxu0 0.0
  %80 = vmatprep.subr.mxu0 0.0
  %81 = vmatpush1.msra.mxu0 0.0
  %82 = vmatprep.subr.mxu0 0.0
  %83 = vmatpush1.msra.mxu0 0.0
  %84 = vmatprep.subr.mxu0 0.0
  %85 = vmatpush1.msra.mxu0 0.0
  %86 = vmatprep.subr.mxu0 0.0
  %87 = vmatpush1.msra.mxu0 0.0
  %88 = vmatprep.subr.mxu0 0.0
  %89 = vmatpush1.msra.mxu0 0.0
  %90 = vmatprep.subr.mxu0 0.0
  %91 = vmatpush1.msra.mxu0 0.0
  %92 = vmatprep.subr.mxu0 0.0
  %93 = vmatpush1.msra.mxu0 0.0
  %94 = vmatprep.subr.mxu0 0.0
  %95 = vmatpush1.msra.mxu0 0.0
  %96 = vmatprep.subr.mxu0 0.0
  %97 = vmatpush1.msra.mxu0 0.0
  %98 = vmatprep.subr.mxu0 0.0
  %99 = vmatpush1.msra.mxu0 0.0
  %100 = vmatprep.subr.mxu0 0.0
  %101 = vmatpush1.msra.mxu0 0.0
  %102 = vmatprep.subr.mxu0 0.0
  %103 = vmatpush1.msra.mxu0 0.0
  %104 = vmatprep.subr.mxu0 0.0
  %105 = vmatpush1.msra.mxu0 0.0
  %106 = vmatprep.subr.mxu0 0.0
  %107 = vmatpush1.msra.mxu0 0.0
  %108 = vmatprep.subr.mxu0 0.0
  %109 = vmatpush1.msra.mxu0 0.0
  %110 = vmatprep.subr.mxu0 0.0
  %111 = vmatpush1.msra.mxu0 0.0
  %112 = vmatprep.subr.mxu0 0.0
  %113 = vmatpush1.msra.mxu0 0.0
  %114 = vmatprep.subr.mxu0 0.0
  %115 = vmatpush1.msra.mxu0 0.0
  %116 = vmatprep.subr.mxu0 0.0
  %117 = vmatpush1.msra.mxu0 0.0
  %118 = vmatprep.subr.mxu0 0.0
  %119 = vmatpush1.msra.mxu0 0.0
  %120 = vmatprep.subr.mxu0 0.0
  %121 = vmatpush1.msra.mxu0 0.0
  %122 = vmatprep.subr.mxu0 0.0
  %123 = vmatpush1.msra.mxu0 0.0
  %124 = vmatprep.subr.mxu0 0.0
  %125 = vmatpush1.msra.mxu0 0.0
  %126 = vmatprep.subr.mxu0 0.0
  %127 = vmatpush1.msra.mxu0 0.0
  %128 = vmatprep.subr.mxu0 0.0
  %129 = vmatpush1.msra.mxu0 0.0
  %130 = vmatprep.subr.mxu0 0.0
  %131 = vmatpush1.msra.mxu0 0.0
  %132 = vmatprep.subr.mxu0 0.0
  %133 = vmatpush1.msra.mxu0 0.0
  %134 = vmatprep.subr.mxu0 0.0
  %135 = vmatpush1.msra.mxu0 0.0
  %136 = vmatprep.subr.mxu0 0.0
  %137 = vmatpush1.msra.mxu0 0.0
  %138 = vmatprep.mubr.f32.mxu0 0.0
  %139 = vmatmul.mubr.f32.gmra.mrb[0].mxu0 %v51
  %v140 = vpop.f32.mrb[0].mxu0
  %v141 = vadd.f32 %v47, %v140
  %v142 = vpop.f32.mrb[0].mxu0
  %143 = vmatprep.mubr.f32.mxu0 0.0
  %144 = vmatmul.mubr.f32.gmra.mrb[0].mxu0 %v54
  %v145 = vpop.f32.mrb[0].mxu0
  %v146 = vadd.f32 %v47, %v145
  %v147 = vpop.f32.mrb[0].mxu0
  %148 = vmatprep.mubr.f32.mxu0 0.0
  %149 = vmatmul.mubr.f32.gmra.mrb[0].mxu0 %v57
  %v150 = vpop.f32.mrb[0].mxu0
  %v151 = vadd.f32 %v47, %v150
  %v152 = vpop.f32.mrb[0].mxu0
  %153 = vmatprep.mubr.f32.mxu0 0.0
  %154 = vmatmul.mubr.f32.gmra.mrb[0].mxu0 %v60
  %v155 = vpop.f32.mrb[0].mxu0
  %v156 = vadd.f32 %v47, %v155
  %v157 = vpop.f32.mrb[0].mxu0
  %158 = vmatprep.mubr.f32.mxu0 0.0
  %159 = vmatmul.mubr.f32.gmra.mrb[0].mxu0 %v63
  %v160 = vpop.f32.mrb[0].mxu0
  %v161 = vadd.f32 %v47, %v160
  %v162 = vpop.f32.mrb[0].mxu0
  %163 = vmatprep.mubr.f32.mxu0 0.0
  %164 = vmatmul.mubr.f32.gmra.mrb[0].mxu0 %v66
  %v165 = vpop.f32.mrb[0].mxu0
  %v166 = vadd.f32 %v47, %v165
  %v167 = vpop.f32.mrb[0].mxu0
  %168 = vmatprep.mubr.f32.mxu0 0.0
  %169 = vmatmul.mubr.f32.gmra.mrb[0].mxu0 %v69
  %v170 = vpop.f32.mrb[0].mxu0
  %v171 = vadd.f32 %v47, %v170
  %v172 = vpop.f32.mrb[0].mxu0
  %173 = vmatprep.mubr.f32.mxu0 0.0
  %174 = vmatmul.mubr.f32.gmra.mrb[0].mxu0 %v72
  %v175 = vpop.f32.mrb[0].mxu0
  %v176 = vadd.f32 %v47, %v175
  %v177 = vpop.f32.mrb[0].mxu0
  %178 = vdwg.mxu0
  %179 = vst [vmem:[#allocation2] sm:$0xff] %v141
  %180 = vst [vmem:[#allocation2 + $0x8] sm:$0xff] %v146
  %181 = vst [vmem:[#allocation2 + $0x10] sm:$0xff] %v151
  %182 = vst [vmem:[#allocation2 + $0x18] sm:$0xff] %v156
  %183 = vst [vmem:[#allocation2 + $0x20] sm:$0xff] %v161
  %184 = vst [vmem:[#allocation2 + $0x28] sm:$0xff] %v166
  %185 = vst [vmem:[#allocation2 + $0x30] sm:$0xff] %v171
  %186 = vst [vmem:[#allocation2 + $0x38] sm:$0xff] %v176
  %vm187 = vcmask 261120
  %188 = vst.msk [vmem:[#allocation3] sm:$0xff] %vm187, 0.0
  %189 = vst.msk [vmem:[#allocation4] sm:$0xff] %vm187, 0.0
  %v190 = vld [vmem:[#allocation2] sm:$0xff]
  %v191 = vld [vmem:[#allocation3] sm:$0xff]
  %v192 = vld [vmem:[%s2] sm:$0xff]
  %v193 = vld [vmem:[%s2 + $0x8] sm:$0xff]
  %v194 = vld [vmem:[%s2 + $0x10] sm:$0xff]
  %v195 = vld [vmem:[%s2 + $0x18] sm:$0xff]
  %v197 = vsel %vm187, %v191, 0
  %199 = vmatprep.subr.mxu0 0.0
  %200 = vmatpush1.msra.mxu0 %v192
  %201 = vmatprep.subr.mxu0 0.0
  %202 = vmatpush1.msra.mxu0 %v193
  %203 = vmatprep.subr.mxu0 0.0
  %204 = vmatpush1.msra.mxu0 %v194
  %205 = vmatprep.subr.mxu0 0.0
  %206 = vmatpush1.msra.mxu0 %v195
  %207 = vmatprep.subr.mxu0 0.0
  %208 = vmatpush1.msra.mxu0 0.0
  %209 = vmatprep.subr.mxu0 0.0
  %210 = vmatpush1.msra.mxu0 0.0
  %211 = vmatprep.subr.mxu0 0.0
  %212 = vmatpush1.msra.mxu0 0.0
  %213 = vmatprep.subr.mxu0 0.0
  %214 = vmatpush1.msra.mxu0 0.0
  %215 = vmatprep.subr.mxu0 0.0
  %216 = vmatpush1.msra.mxu0 0.0
  %217 = vmatprep.subr.mxu0 0.0
  %218 = vmatpush1.msra.mxu0 0.0
  %219 = vmatprep.subr.mxu0 0.0
  %220 = vmatpush1.msra.mxu0 0.0
  %221 = vmatprep.subr.mxu0 0.0
  %222 = vmatpush1.msra.mxu0 0.0
  %223 = vmatprep.subr.mxu0 0.0
  %224 = vmatpush1.msra.mxu0 0.0
  %225 = vmatprep.subr.mxu0 0.0
  %226 = vmatpush1.msra.mxu0 0.0
  %227 = vmatprep.subr.mxu0 0.0
  %228 = vmatpush1.msra.mxu0 0.0
  %229 = vmatprep.subr.mxu0 0.0
  %230 = vmatpush1.msra.mxu0 0.0
  %231 = vmatprep.subr.mxu0 0.0
  %232 = vmatpush1.msra.mxu0 0.0
  %233 = vmatprep.subr.mxu0 0.0
  %234 = vmatpush1.msra.mxu0 0.0
  %235 = vmatprep.subr.mxu0 0.0
  %236 = vmatpush1.msra.mxu0 0.0
  %237 = vmatprep.subr.mxu0 0.0
  %238 = vmatpush1.msra.mxu0 0.0
  %239 = vmatprep.subr.mxu0 0.0
  %240 = vmatpush1.msra.mxu0 0.0
  %241 = vmatprep.subr.mxu0 0.0
  %242 = vmatpush1.msra.mxu0 0.0
  %243 = vmatprep.subr.mxu0 0.0
  %244 = vmatpush1.msra.mxu0 0.0
  %245 = vmatprep.subr.mxu0 0.0
  %246 = vmatpush1.msra.mxu0 0.0
  %247 = vmatprep.subr.mxu0 0.0
  %248 = vmatpush1.msra.mxu0 0.0
  %249 = vmatprep.subr.mxu0 0.0
  %250 = vmatpush1.msra.mxu0 0.0
  %251 = vmatprep.subr.mxu0 0.0
  %252 = vmatpush1.msra.mxu0 0.0
  %253 = vmatprep.subr.mxu0 0.0
  %254 = vmatpush1.msra.mxu0 0.0
  %255 = vmatprep.subr.mxu0 0.0
  %256 = vmatpush1.msra.mxu0 0.0
  %257 = vmatprep.subr.mxu0 0.0
  %258 = vmatpush1.msra.mxu0 0.0
  %259 = vmatprep.subr.mxu0 0.0
  %260 = vmatpush1.msra.mxu0 0.0
  %261 = vmatprep.subr.mxu0 0.0
  %262 = vmatpush1.msra.mxu0 0.0
  %263 = vmatprep.mubr.f32.mxu0 0.0
  %264 = vmatmul.mubr.f32.gmra.mrb[0].mxu0 %v197
  %v265 = vpop.f32.mrb[0].mxu0
  %v266 = vadd.f32 0.0, %v265
  %v267 = vpop.f32.mrb[0].mxu0
  %268 = vdwg.mxu0
  %v269 = vadd.f32 %v190, %v266
  %v270 = vxor.u32 %v269, 2147483648
  %v271 = vmul.f32 %v270, 1.442695
  %v272 = vpow.pop %v271
  %v273 = vadd.f32 %v272, 1.0
  %v274 = vrcp.pop %v273
  %v275 = vmul.f32 1.0, %v274
  %v276 = vtanh.pop %v269
  %v277 = vld [vmem:[#allocation4] sm:$0xff]
  %279 = vrot.lane.b32.xlu0 %v277, 32
  %v280 = vpop.permute.xlu0 %279
  %v282 = vmul.f32 %v275, %v280
  %284 = vrot.lane.b32.xlu0 %v276, 32
  %v285 = vpop.permute.xlu0 %284
  %v287 = vmul.f32 %v275, %v285
  %289 = vrot.lane.b32.xlu0 %v287, 32
  %v290 = vpop.permute.xlu0 %289
  %v292 = vadd.f32 %v282, %v290
  %294 = vrot.lane.b32.xlu0 %v292, 96
  %v295 = vpop.permute.xlu0 %294
  %297 = vst.msk [vmem:[#allocation4] sm:$0xff] %vm187, %v295
  %v298 = vtanh.pop %v292
  %300 = vrot.lane.b32.xlu0 %v298, 32
  %v301 = vpop.permute.xlu0 %300
  %v303 = vmul.f32 %v275, %v301
  %305 = vrot.lane.b32.xlu0 %v303, 64
  %v306 = vpop.permute.xlu0 %305
  %308 = vst.msk [vmem:[#allocation3] sm:$0xff] %vm187, %v306
  %s309 = scalar_lea.vmem [#allocation2], 8
  %v310 = vld [vmem:[%s309] sm:$0xff]
  %v311 = vld [vmem:[#allocation3] sm:$0xff]
  %v312 = vld [vmem:[%s2] sm:$0xff]
  %v313 = vld [vmem:[%s2 + $0x8] sm:$0xff]
  %v314 = vld [vmem:[%s2 + $0x10] sm:$0xff]
  %v315 = vld [vmem:[%s2 + $0x18] sm:$0xff]
  %v317 = vsel %vm187, %v311, 0
  %319 = vmatprep.subr.mxu0 0.0
  %320 = vmatpush1.msra.mxu0 %v312
  %321 = vmatprep.subr.mxu0 0.0
  %322 = vmatpush1.msra.mxu0 %v313
  %323 = vmatprep.subr.mxu0 0.0
  %324 = vmatpush1.msra.mxu0 %v314
  %325 = vmatprep.subr.mxu0 0.0
  %326 = vmatpush1.msra.mxu0 %v315
  %327 = vmatprep.subr.mxu0 0.0
  %328 = vmatpush1.msra.mxu0 0.0
  %329 = vmatprep.subr.mxu0 0.0
  %330 = vmatpush1.msra.mxu0 0.0
  %331 = vmatprep.subr.mxu0 0.0
  %332 = vmatpush1.msra.mxu0 0.0
  %333 = vmatprep.subr.mxu0 0.0
  %334 = vmatpush1.msra.mxu0 0.0
  %335 = vmatprep.subr.mxu0 0.0
  %336 = vmatpush1.msra.mxu0 0.0
  %337 = vmatprep.subr.mxu0 0.0
  %338 = vmatpush1.msra.mxu0 0.0
  %339 = vmatprep.subr.mxu0 0.0
  %340 = vmatpush1.msra.mxu0 0.0
  %341 = vmatprep.subr.mxu0 0.0
  %342 = vmatpush1.msra.mxu0 0.0
  %343 = vmatprep.subr.mxu0 0.0
  %344 = vmatpush1.msra.mxu0 0.0
  %345 = vmatprep.subr.mxu0 0.0
  %346 = vmatpush1.msra.mxu0 0.0
  %347 = vmatprep.subr.mxu0 0.0
  %348 = vmatpush1.msra.mxu0 0.0
  %349 = vmatprep.subr.mxu0 0.0
  %350 = vmatpush1.msra.mxu0 0.0
  %351 = vmatprep.subr.mxu0 0.0
  %352 = vmatpush1.msra.mxu0 0.0
  %353 = vmatprep.subr.mxu0 0.0
  %354 = vmatpush1.msra.mxu0 0.0
  %355 = vmatprep.subr.mxu0 0.0
  %356 = vmatpush1.msra.mxu0 0.0
  %357 = vmatprep.subr.mxu0 0.0
  %358 = vmatpush1.msra.mxu0 0.0
  %359 = vmatprep.subr.mxu0 0.0
  %360 = vmatpush1.msra.mxu0 0.0
  %361 = vmatprep.subr.mxu0 0.0
  %362 = vmatpush1.msra.mxu0 0.0
  %363 = vmatprep.subr.mxu0 0.0
  %364 = vmatpush1.msra.mxu0 0.0
  %365 = vmatprep.subr.mxu0 0.0
  %366 = vmatpush1.msra.mxu0 0.0
  %367 = vmatprep.subr.mxu0 0.0
  %368 = vmatpush1.msra.mxu0 0.0
  %369 = vmatprep.subr.mxu0 0.0
  %370 = vmatpush1.msra.mxu0 0.0
  %371 = vmatprep.subr.mxu0 0.0
  %372 = vmatpush1.msra.mxu0 0.0
  %373 = vmatprep.subr.mxu0 0.0
  %374 = vmatpush1.msra.mxu0 0.0
  %375 = vmatprep.subr.mxu0 0.0
  %376 = vmatpush1.msra.mxu0 0.0
  %377 = vmatprep.subr.mxu0 0.0
  %378 = vmatpush1.msra.mxu0 0.0
  %379 = vmatprep.subr.mxu0 0.0
  %380 = vmatpush1.msra.mxu0 0.0
  %381 = vmatprep.subr.mxu0 0.0
  %382 = vmatpush1.msra.mxu0 0.0
  %383 = vmatprep.mubr.f32.mxu0 0.0
  %384 = vmatmul.mubr.f32.gmra.mrb[0].mxu0 %v317
  %v385 = vpop.f32.mrb[0].mxu0
  %v386 = vadd.f32 0.0, %v385
  %v387 = vpop.f32.mrb[0].mxu0
  %388 = vdwg.mxu0
  %v389 = vadd.f32 %v310, %v386
  %v390 = vxor.u32 %v389, 2147483648
  %v391 = vmul.f32 %v390, 1.442695
  %v392 = vpow.pop %v391
  %v393 = vadd.f32 %v392, 1.0
  %v394 = vrcp.pop %v393
  %v395 = vmul.f32 1.0, %v394
  %v396 = vtanh.pop %v389
  %v397 = vld [vmem:[#allocation4] sm:$0xff]
  %399 = vrot.lane.b32.xlu0 %v397, 32
  %v400 = vpop.permute.xlu0 %399
  %v402 = vmul.f32 %v395, %v400
  %404 = vrot.lane.b32.xlu0 %v396, 32
  %v405 = vpop.permute.xlu0 %404
  %v407 = vmul.f32 %v395, %v405
  %409 = vrot.lane.b32.xlu0 %v407, 32
  %v410 = vpop.permute.xlu0 %409
  %v412 = vadd.f32 %v402, %v410
  %414 = vrot.lane.b32.xlu0 %v412, 96
  %v415 = vpop.permute.xlu0 %414
  %417 = vst.msk [vmem:[#allocation4] sm:$0xff] %vm187, %v415
  %v418 = vtanh.pop %v412
  %420 = vrot.lane.b32.xlu0 %v418, 32
  %v421 = vpop.permute.xlu0 %420
  %v423 = vmul.f32 %v395, %v421
  %425 = vrot.lane.b32.xlu0 %v423, 64
  %v426 = vpop.permute.xlu0 %425
  %428 = vst.msk [vmem:[#allocation3] sm:$0xff] %vm187, %v426
  %s429 = scalar_lea.vmem [#allocation2], 16
  %v430 = vld [vmem:[%s429] sm:$0xff]
  %v431 = vld [vmem:[#allocation3] sm:$0xff]
  %v432 = vld [vmem:[%s2] sm:$0xff]
  %v433 = vld [vmem:[%s2 + $0x8] sm:$0xff]
  %v434 = vld [vmem:[%s2 + $0x10] sm:$0xff]
  %v435 = vld [vmem:[%s2 + $0x18] sm:$0xff]
  %v437 = vsel %vm187, %v431, 0
  %439 = vmatprep.subr.mxu0 0.0
  %440 = vmatpush1.msra.mxu0 %v432
  %441 = vmatprep.subr.mxu0 0.0
  %442 = vmatpush1.msra.mxu0 %v433
  %443 = vmatprep.subr.mxu0 0.0
  %444 = vmatpush1.msra.mxu0 %v434
  %445 = vmatprep.subr.mxu0 0.0
  %446 = vmatpush1.msra.mxu0 %v435
  %447 = vmatprep.subr.mxu0 0.0
  %448 = vmatpush1.msra.mxu0 0.0
  %449 = vmatprep.subr.mxu0 0.0
  %450 = vmatpush1.msra.mxu0 0.0
  %451 = vmatprep.subr.mxu0 0.0
  %452 = vmatpush1.msra.mxu0 0.0
  %453 = vmatprep.subr.mxu0 0.0
  %454 = vmatpush1.msra.mxu0 0.0
  %455 = vmatprep.subr.mxu0 0.0
  %456 = vmatpush1.msra.mxu0 0.0
  %457 = vmatprep.subr.mxu0 0.0
  %458 = vmatpush1.msra.mxu0 0.0
  %459 = vmatprep.subr.mxu0 0.0
  %460 = vmatpush1.msra.mxu0 0.0
  %461 = vmatprep.subr.mxu0 0.0
  %462 = vmatpush1.msra.mxu0 0.0
  %463 = vmatprep.subr.mxu0 0.0
  %464 = vmatpush1.msra.mxu0 0.0
  %465 = vmatprep.subr.mxu0 0.0
  %466 = vmatpush1.msra.mxu0 0.0
  %467 = vmatprep.subr.mxu0 0.0
  %468 = vmatpush1.msra.mxu0 0.0
  %469 = vmatprep.subr.mxu0 0.0
  %470 = vmatpush1.msra.mxu0 0.0
  %471 = vmatprep.subr.mxu0 0.0
  %472 = vmatpush1.msra.mxu0 0.0
  %473 = vmatprep.subr.mxu0 0.0
  %474 = vmatpush1.msra.mxu0 0.0
  %475 = vmatprep.subr.mxu0 0.0
  %476 = vmatpush1.msra.mxu0 0.0
  %477 = vmatprep.subr.mxu0 0.0
  %478 = vmatpush1.msra.mxu0 0.0
  %479 = vmatprep.subr.mxu0 0.0
  %480 = vmatpush1.msra.mxu0 0.0
  %481 = vmatprep.subr.mxu0 0.0
  %482 = vmatpush1.msra.mxu0 0.0
  %483 = vmatprep.subr.mxu0 0.0
  %484 = vmatpush1.msra.mxu0 0.0
  %485 = vmatprep.subr.mxu0 0.0
  %486 = vmatpush1.msra.mxu0 0.0
  %487 = vmatprep.subr.mxu0 0.0
  %488 = vmatpush1.msra.mxu0 0.0
  %489 = vmatprep.subr.mxu0 0.0
  %490 = vmatpush1.msra.mxu0 0.0
  %491 = vmatprep.subr.mxu0 0.0
  %492 = vmatpush1.msra.mxu0 0.0
  %493 = vmatprep.subr.mxu0 0.0
  %494 = vmatpush1.msra.mxu0 0.0
  %495 = vmatprep.subr.mxu0 0.0
  %496 = vmatpush1.msra.mxu0 0.0
  %497 = vmatprep.subr.mxu0 0.0
  %498 = vmatpush1.msra.mxu0 0.0
  %499 = vmatprep.subr.mxu0 0.0
  %500 = vmatpush1.msra.mxu0 0.0
  %501 = vmatprep.subr.mxu0 0.0
  %502 = vmatpush1.msra.mxu0 0.0
  %503 = vmatprep.mubr.f32.mxu0 0.0
  %504 = vmatmul.mubr.f32.gmra.mrb[0].mxu0 %v437
  %v505 = vpop.f32.mrb[0].mxu0
  %v506 = vadd.f32 0.0, %v505
  %v507 = vpop.f32.mrb[0].mxu0
  %508 = vdwg.mxu0
  %v509 = vadd.f32 %v430, %v506
  %v510 = vxor.u32 %v509, 2147483648
  %v511 = vmul.f32 %v510, 1.442695
  %v512 = vpow.pop %v511
  %v513 = vadd.f32 %v512, 1.0
  %v514 = vrcp.pop %v513
  %v515 = vmul.f32 1.0, %v514
  %v516 = vtanh.pop %v509
  %v517 = vld [vmem:[#allocation4] sm:$0xff]
  %519 = vrot.lane.b32.xlu0 %v517, 32
  %v520 = vpop.permute.xlu0 %519
  %v522 = vmul.f32 %v515, %v520
  %524 = vrot.lane.b32.xlu0 %v516, 32
  %v525 = vpop.permute.xlu0 %524
  %v527 = vmul.f32 %v515, %v525
  %529 = vrot.lane.b32.xlu0 %v527, 32
  %v530 = vpop.permute.xlu0 %529
  %v532 = vadd.f32 %v522, %v530
  %534 = vrot.lane.b32.xlu0 %v532, 96
  %v535 = vpop.permute.xlu0 %534
  %537 = vst.msk [vmem:[#allocation4] sm:$0xff] %vm187, %v535
  %v538 = vtanh.pop %v532
  %540 = vrot.lane.b32.xlu0 %v538, 32
  %v541 = vpop.permute.xlu0 %540
  %v543 = vmul.f32 %v515, %v541
  %545 = vrot.lane.b32.xlu0 %v543, 64
  %v546 = vpop.permute.xlu0 %545
  %548 = vst.msk [vmem:[#allocation3] sm:$0xff] %vm187, %v546
  %s549 = scalar_lea.vmem [#allocation2], 24
  %v550 = vld [vmem:[%s549] sm:$0xff]
  %v551 = vld [vmem:[#allocation3] sm:$0xff]
  %v552 = vld [vmem:[%s2] sm:$0xff]
  %v553 = vld [vmem:[%s2 + $0x8] sm:$0xff]
  %v554 = vld [vmem:[%s2 + $0x10] sm:$0xff]
  %v555 = vld [vmem:[%s2 + $0x18] sm:$0xff]
  %v557 = vsel %vm187, %v551, 0
  %559 = vmatprep.subr.mxu0 0.0
  %560 = vmatpush1.msra.mxu0 %v552
  %561 = vmatprep.subr.mxu0 0.0
  %562 = vmatpush1.msra.mxu0 %v553
  %563 = vmatprep.subr.mxu0 0.0
  %564 = vmatpush1.msra.mxu0 %v554
  %565 = vmatprep.subr.mxu0 0.0
  %566 = vmatpush1.msra.mxu0 %v555
  %567 = vmatprep.subr.mxu0 0.0
  %568 = vmatpush1.msra.mxu0 0.0
  %569 = vmatprep.subr.mxu0 0.0
  %570 = vmatpush1.msra.mxu0 0.0
  %571 = vmatprep.subr.mxu0 0.0
  %572 = vmatpush1.msra.mxu0 0.0
  %573 = vmatprep.subr.mxu0 0.0
  %574 = vmatpush1.msra.mxu0 0.0
  %575 = vmatprep.subr.mxu0 0.0
  %576 = vmatpush1.msra.mxu0 0.0
  %577 = vmatprep.subr.mxu0 0.0
  %578 = vmatpush1.msra.mxu0 0.0
  %579 = vmatprep.subr.mxu0 0.0
  %580 = vmatpush1.msra.mxu0 0.0
  %581 = vmatprep.subr.mxu0 0.0
  %582 = vmatpush1.msra.mxu0 0.0
  %583 = vmatprep.subr.mxu0 0.0
  %584 = vmatpush1.msra.mxu0 0.0
  %585 = vmatprep.subr.mxu0 0.0
  %586 = vmatpush1.msra.mxu0 0.0
  %587 = vmatprep.subr.mxu0 0.0
  %588 = vmatpush1.msra.mxu0 0.0
  %589 = vmatprep.subr.mxu0 0.0
  %590 = vmatpush1.msra.mxu0 0.0
  %591 = vmatprep.subr.mxu0 0.0
  %592 = vmatpush1.msra.mxu0 0.0
  %593 = vmatprep.subr.mxu0 0.0
  %594 = vmatpush1.msra.mxu0 0.0
  %595 = vmatprep.subr.mxu0 0.0
  %596 = vmatpush1.msra.mxu0 0.0
  %597 = vmatprep.subr.mxu0 0.0
  %598 = vmatpush1.msra.mxu0 0.0
  %599 = vmatprep.subr.mxu0 0.0
  %600 = vmatpush1.msra.mxu0 0.0
  %601 = vmatprep.subr.mxu0 0.0
  %602 = vmatpush1.msra.mxu0 0.0
  %603 = vmatprep.subr.mxu0 0.0
  %604 = vmatpush1.msra.mxu0 0.0
  %605 = vmatprep.subr.mxu0 0.0
  %606 = vmatpush1.msra.mxu0 0.0
  %607 = vmatprep.subr.mxu0 0.0
  %608 = vmatpush1.msra.mxu0 0.0
  %609 = vmatprep.subr.mxu0 0.0
  %610 = vmatpush1.msra.mxu0 0.0
  %611 = vmatprep.subr.mxu0 0.0
  %612 = vmatpush1.msra.mxu0 0.0
  %613 = vmatprep.subr.mxu0 0.0
  %614 = vmatpush1.msra.mxu0 0.0
  %615 = vmatprep.subr.mxu0 0.0
  %616 = vmatpush1.msra.mxu0 0.0
  %617 = vmatprep.subr.mxu0 0.0
  %618 = vmatpush1.msra.mxu0 0.0
  %619 = vmatprep.subr.mxu0 0.0
  %620 = vmatpush1.msra.mxu0 0.0
  %621 = vmatprep.subr.mxu0 0.0
  %622 = vmatpush1.msra.mxu0 0.0
  %623 = vmatprep.mubr.f32.mxu0 0.0
  %624 = vmatmul.mubr.f32.gmra.mrb[0].mxu0 %v557
  %v625 = vpop.f32.mrb[0].mxu0
  %v626 = vadd.f32 0.0, %v625
  %v627 = vpop.f32.mrb[0].mxu0
  %628 = vdwg.mxu0
  %v629 = vadd.f32 %v550, %v626
  %v630 = vxor.u32 %v629, 2147483648
  %v631 = vmul.f32 %v630, 1.442695
  %v632 = vpow.pop %v631
  %v633 = vadd.f32 %v632, 1.0
  %v634 = vrcp.pop %v633
  %v635 = vmul.f32 1.0, %v634
  %v636 = vtanh.pop %v629
  %v637 = vld [vmem:[#allocation4] sm:$0xff]
  %639 = vrot.lane.b32.xlu0 %v637, 32
  %v640 = vpop.permute.xlu0 %639
  %v642 = vmul.f32 %v635, %v640
  %644 = vrot.lane.b32.xlu0 %v636, 32
  %v645 = vpop.permute.xlu0 %644
  %v647 = vmul.f32 %v635, %v645
  %649 = vrot.lane.b32.xlu0 %v647, 32
  %v650 = vpop.permute.xlu0 %649
  %v652 = vadd.f32 %v642, %v650
  %654 = vrot.lane.b32.xlu0 %v652, 96
  %v655 = vpop.permute.xlu0 %654
  %657 = vst.msk [vmem:[#allocation4] sm:$0xff] %vm187, %v655
  %v658 = vtanh.pop %v652
  %660 = vrot.lane.b32.xlu0 %v658, 32
  %v661 = vpop.permute.xlu0 %660
  %v663 = vmul.f32 %v635, %v661
  %665 = vrot.lane.b32.xlu0 %v663, 64
  %v666 = vpop.permute.xlu0 %665
  %668 = vst.msk [vmem:[#allocation3] sm:$0xff] %vm187, %v666
  %s669 = scalar_lea.vmem [#allocation2], 32
  %v670 = vld [vmem:[%s669] sm:$0xff]
  %v671 = vld [vmem:[#allocation3] sm:$0xff]
  %v672 = vld [vmem:[%s2] sm:$0xff]
  %v673 = vld [vmem:[%s2 + $0x8] sm:$0xff]
  %v674 = vld [vmem:[%s2 + $0x10] sm:$0xff]
  %v675 = vld [vmem:[%s2 + $0x18] sm:$0xff]
  %v677 = vsel %vm187, %v671, 0
  %679 = vmatprep.subr.mxu0 0.0
  %680 = vmatpush1.msra.mxu0 %v672
  %681 = vmatprep.subr.mxu0 0.0
  %682 = vmatpush1.msra.mxu0 %v673
  %683 = vmatprep.subr.mxu0 0.0
  %684 = vmatpush1.msra.mxu0 %v674
  %685 = vmatprep.subr.mxu0 0.0
  %686 = vmatpush1.msra.mxu0 %v675
  %687 = vmatprep.subr.mxu0 0.0
  %688 = vmatpush1.msra.mxu0 0.0
  %689 = vmatprep.subr.mxu0 0.0
  %690 = vmatpush1.msra.mxu0 0.0
  %691 = vmatprep.subr.mxu0 0.0
  %692 = vmatpush1.msra.mxu0 0.0
  %693 = vmatprep.subr.mxu0 0.0
  %694 = vmatpush1.msra.mxu0 0.0
  %695 = vmatprep.subr.mxu0 0.0
  %696 = vmatpush1.msra.mxu0 0.0
  %697 = vmatprep.subr.mxu0 0.0
  %698 = vmatpush1.msra.mxu0 0.0
  %699 = vmatprep.subr.mxu0 0.0
  %700 = vmatpush1.msra.mxu0 0.0
  %701 = vmatprep.subr.mxu0 0.0
  %702 = vmatpush1.msra.mxu0 0.0
  %703 = vmatprep.subr.mxu0 0.0
  %704 = vmatpush1.msra.mxu0 0.0
  %705 = vmatprep.subr.mxu0 0.0
  %706 = vmatpush1.msra.mxu0 0.0
  %707 = vmatprep.subr.mxu0 0.0
  %708 = vmatpush1.msra.mxu0 0.0
  %709 = vmatprep.subr.mxu0 0.0
  %710 = vmatpush1.msra.mxu0 0.0
  %711 = vmatprep.subr.mxu0 0.0
  %712 = vmatpush1.msra.mxu0 0.0
  %713 = vmatprep.subr.mxu0 0.0
  %714 = vmatpush1.msra.mxu0 0.0
  %715 = vmatprep.subr.mxu0 0.0
  %716 = vmatpush1.msra.mxu0 0.0
  %717 = vmatprep.subr.mxu0 0.0
  %718 = vmatpush1.msra.mxu0 0.0
  %719 = vmatprep.subr.mxu0 0.0
  %720 = vmatpush1.msra.mxu0 0.0
  %721 = vmatprep.subr.mxu0 0.0
  %722 = vmatpush1.msra.mxu0 0.0
  %723 = vmatprep.subr.mxu0 0.0
  %724 = vmatpush1.msra.mxu0 0.0
  %725 = vmatprep.subr.mxu0 0.0
  %726 = vmatpush1.msra.mxu0 0.0
  %727 = vmatprep.subr.mxu0 0.0
  %728 = vmatpush1.msra.mxu0 0.0
  %729 = vmatprep.subr.mxu0 0.0
  %730 = vmatpush1.msra.mxu0 0.0
  %731 = vmatprep.subr.mxu0 0.0
  %732 = vmatpush1.msra.mxu0 0.0
  %733 = vmatprep.subr.mxu0 0.0
  %734 = vmatpush1.msra.mxu0 0.0
  %735 = vmatprep.subr.mxu0 0.0
  %736 = vmatpush1.msra.mxu0 0.0
  %737 = vmatprep.subr.mxu0 0.0
  %738 = vmatpush1.msra.mxu0 0.0
  %739 = vmatprep.subr.mxu0 0.0
  %740 = vmatpush1.msra.mxu0 0.0
  %741 = vmatprep.subr.mxu0 0.0
  %742 = vmatpush1.msra.mxu0 0.0
  %743 = vmatprep.mubr.f32.mxu0 0.0
  %744 = vmatmul.mubr.f32.gmra.mrb[0].mxu0 %v677
  %v745 = vpop.f32.mrb[0].mxu0
  %v746 = vadd.f32 0.0, %v745
  %v747 = vpop.f32.mrb[0].mxu0
  %748 = vdwg.mxu0
  %v749 = vadd.f32 %v670, %v746
  %v750 = vxor.u32 %v749, 2147483648
  %v751 = vmul.f32 %v750, 1.442695
  %v752 = vpow.pop %v751
  %v753 = vadd.f32 %v752, 1.0
  %v754 = vrcp.pop %v753
  %v755 = vmul.f32 1.0, %v754
  %v756 = vtanh.pop %v749
  %v757 = vld [vmem:[#allocation4] sm:$0xff]
  %759 = vrot.lane.b32.xlu0 %v757, 32
  %v760 = vpop.permute.xlu0 %759
  %v762 = vmul.f32 %v755, %v760
  %764 = vrot.lane.b32.xlu0 %v756, 32
  %v765 = vpop.permute.xlu0 %764
  %v767 = vmul.f32 %v755, %v765
  %769 = vrot.lane.b32.xlu0 %v767, 32
  %v770 = vpop.permute.xlu0 %769
  %v772 = vadd.f32 %v762, %v770
  %774 = vrot.lane.b32.xlu0 %v772, 96
  %v775 = vpop.permute.xlu0 %774
  %777 = vst.msk [vmem:[#allocation4] sm:$0xff] %vm187, %v775
  %v778 = vtanh.pop %v772
  %780 = vrot.lane.b32.xlu0 %v778, 32
  %v781 = vpop.permute.xlu0 %780
  %v783 = vmul.f32 %v755, %v781
  %785 = vrot.lane.b32.xlu0 %v783, 64
  %v786 = vpop.permute.xlu0 %785
  %788 = vst.msk [vmem:[#allocation3] sm:$0xff] %vm187, %v786
  %s789 = scalar_lea.vmem [#allocation2], 40
  %v790 = vld [vmem:[%s789] sm:$0xff]
  %v791 = vld [vmem:[#allocation3] sm:$0xff]
  %v792 = vld [vmem:[%s2] sm:$0xff]
  %v793 = vld [vmem:[%s2 + $0x8] sm:$0xff]
  %v794 = vld [vmem:[%s2 + $0x10] sm:$0xff]
  %v795 = vld [vmem:[%s2 + $0x18] sm:$0xff]
  %v797 = vsel %vm187, %v791, 0
  %799 = vmatprep.subr.mxu0 0.0
  %800 = vmatpush1.msra.mxu0 %v792
  %801 = vmatprep.subr.mxu0 0.0
  %802 = vmatpush1.msra.mxu0 %v793
  %803 = vmatprep.subr.mxu0 0.0
  %804 = vmatpush1.msra.mxu0 %v794
  %805 = vmatprep.subr.mxu0 0.0
  %806 = vmatpush1.msra.mxu0 %v795
  %807 = vmatprep.subr.mxu0 0.0
  %808 = vmatpush1.msra.mxu0 0.0
  %809 = vmatprep.subr.mxu0 0.0
  %810 = vmatpush1.msra.mxu0 0.0
  %811 = vmatprep.subr.mxu0 0.0
  %812 = vmatpush1.msra.mxu0 0.0
  %813 = vmatprep.subr.mxu0 0.0
  %814 = vmatpush1.msra.mxu0 0.0
  %815 = vmatprep.subr.mxu0 0.0
  %816 = vmatpush1.msra.mxu0 0.0
  %817 = vmatprep.subr.mxu0 0.0
  %818 = vmatpush1.msra.mxu0 0.0
  %819 = vmatprep.subr.mxu0 0.0
  %820 = vmatpush1.msra.mxu0 0.0
  %821 = vmatprep.subr.mxu0 0.0
  %822 = vmatpush1.msra.mxu0 0.0
  %823 = vmatprep.subr.mxu0 0.0
  %824 = vmatpush1.msra.mxu0 0.0
  %825 = vmatprep.subr.mxu0 0.0
  %826 = vmatpush1.msra.mxu0 0.0
  %827 = vmatprep.subr.mxu0 0.0
  %828 = vmatpush1.msra.mxu0 0.0
  %829 = vmatprep.subr.mxu0 0.0
  %830 = vmatpush1.msra.mxu0 0.0
  %831 = vmatprep.subr.mxu0 0.0
  %832 = vmatpush1.msra.mxu0 0.0
  %833 = vmatprep.subr.mxu0 0.0
  %834 = vmatpush1.msra.mxu0 0.0
  %835 = vmatprep.subr.mxu0 0.0
  %836 = vmatpush1.msra.mxu0 0.0
  %837 = vmatprep.subr.mxu0 0.0
  %838 = vmatpush1.msra.mxu0 0.0
  %839 = vmatprep.subr.mxu0 0.0
  %840 = vmatpush1.msra.mxu0 0.0
  %841 = vmatprep.subr.mxu0 0.0
  %842 = vmatpush1.msra.mxu0 0.0
  %843 = vmatprep.subr.mxu0 0.0
  %844 = vmatpush1.msra.mxu0 0.0
  %845 = vmatprep.subr.mxu0 0.0
  %846 = vmatpush1.msra.mxu0 0.0
  %847 = vmatprep.subr.mxu0 0.0
  %848 = vmatpush1.msra.mxu0 0.0
  %849 = vmatprep.subr.mxu0 0.0
  %850 = vmatpush1.msra.mxu0 0.0
  %851 = vmatprep.subr.mxu0 0.0
  %852 = vmatpush1.msra.mxu0 0.0
  %853 = vmatprep.subr.mxu0 0.0
  %854 = vmatpush1.msra.mxu0 0.0
  %855 = vmatprep.subr.mxu0 0.0
  %856 = vmatpush1.msra.mxu0 0.0
  %857 = vmatprep.subr.mxu0 0.0
  %858 = vmatpush1.msra.mxu0 0.0
  %859 = vmatprep.subr.mxu0 0.0
  %860 = vmatpush1.msra.mxu0 0.0
  %861 = vmatprep.subr.mxu0 0.0
  %862 = vmatpush1.msra.mxu0 0.0
  %863 = vmatprep.mubr.f32.mxu0 0.0
  %864 = vmatmul.mubr.f32.gmra.mrb[0].mxu0 %v797
  %v865 = vpop.f32.mrb[0].mxu0
  %v866 = vadd.f32 0.0, %v865
  %v867 = vpop.f32.mrb[0].mxu0
  %868 = vdwg.mxu0
  %v869 = vadd.f32 %v790, %v866
  %v870 = vxor.u32 %v869, 2147483648
  %v871 = vmul.f32 %v870, 1.442695
  %v872 = vpow.pop %v871
  %v873 = vadd.f32 %v872, 1.0
  %v874 = vrcp.pop %v873
  %v875 = vmul.f32 1.0, %v874
  %v876 = vtanh.pop %v869
  %v877 = vld [vmem:[#allocation4] sm:$0xff]
  %879 = vrot.lane.b32.xlu0 %v877, 32
  %v880 = vpop.permute.xlu0 %879
  %v882 = vmul.f32 %v875, %v880
  %884 = vrot.lane.b32.xlu0 %v876, 32
  %v885 = vpop.permute.xlu0 %884
  %v887 = vmul.f32 %v875, %v885
  %889 = vrot.lane.b32.xlu0 %v887, 32
  %v890 = vpop.permute.xlu0 %889
  %v892 = vadd.f32 %v882, %v890
  %894 = vrot.lane.b32.xlu0 %v892, 96
  %v895 = vpop.permute.xlu0 %894
  %897 = vst.msk [vmem:[#allocation4] sm:$0xff] %vm187, %v895
  %v898 = vtanh.pop %v892
  %900 = vrot.lane.b32.xlu0 %v898, 32
  %v901 = vpop.permute.xlu0 %900
  %v903 = vmul.f32 %v875, %v901
  %905 = vrot.lane.b32.xlu0 %v903, 64
  %v906 = vpop.permute.xlu0 %905
  %908 = vst.msk [vmem:[#allocation3] sm:$0xff] %vm187, %v906
  %s909 = scalar_lea.vmem [#allocation2], 48
  %v910 = vld [vmem:[%s909] sm:$0xff]
  %v911 = vld [vmem:[#allocation3] sm:$0xff]
  %v912 = vld [vmem:[%s2] sm:$0xff]
  %v913 = vld [vmem:[%s2 + $0x8] sm:$0xff]
  %v914 = vld [vmem:[%s2 + $0x10] sm:$0xff]
  %v915 = vld [vmem:[%s2 + $0x18] sm:$0xff]
  %v917 = vsel %vm187, %v911, 0
  %919 = vmatprep.subr.mxu0 0.0
  %920 = vmatpush1.msra.mxu0 %v912
  %921 = vmatprep.subr.mxu0 0.0
  %922 = vmatpush1.msra.mxu0 %v913
  %923 = vmatprep.subr.mxu0 0.0
  %924 = vmatpush1.msra.mxu0 %v914
  %925 = vmatprep.subr.mxu0 0.0
  %926 = vmatpush1.msra.mxu0 %v915
  %927 = vmatprep.subr.mxu0 0.0
  %928 = vmatpush1.msra.mxu0 0.0
  %929 = vmatprep.subr.mxu0 0.0
  %930 = vmatpush1.msra.mxu0 0.0
  %931 = vmatprep.subr.mxu0 0.0
  %932 = vmatpush1.msra.mxu0 0.0
  %933 = vmatprep.subr.mxu0 0.0
  %934 = vmatpush1.msra.mxu0 0.0
  %935 = vmatprep.subr.mxu0 0.0
  %936 = vmatpush1.msra.mxu0 0.0
  %937 = vmatprep.subr.mxu0 0.0
  %938 = vmatpush1.msra.mxu0 0.0
  %939 = vmatprep.subr.mxu0 0.0
  %940 = vmatpush1.msra.mxu0 0.0
  %941 = vmatprep.subr.mxu0 0.0
  %942 = vmatpush1.msra.mxu0 0.0
  %943 = vmatprep.subr.mxu0 0.0
  %944 = vmatpush1.msra.mxu0 0.0
  %945 = vmatprep.subr.mxu0 0.0
  %946 = vmatpush1.msra.mxu0 0.0
  %947 = vmatprep.subr.mxu0 0.0
  %948 = vmatpush1.msra.mxu0 0.0
  %949 = vmatprep.subr.mxu0 0.0
  %950 = vmatpush1.msra.mxu0 0.0
  %951 = vmatprep.subr.mxu0 0.0
  %952 = vmatpush1.msra.mxu0 0.0
  %953 = vmatprep.subr.mxu0 0.0
  %954 = vmatpush1.msra.mxu0 0.0
  %955 = vmatprep.subr.mxu0 0.0
  %956 = vmatpush1.msra.mxu0 0.0
  %957 = vmatprep.subr.mxu0 0.0
  %958 = vmatpush1.msra.mxu0 0.0
  %959 = vmatprep.subr.mxu0 0.0
  %960 = vmatpush1.msra.mxu0 0.0
  %961 = vmatprep.subr.mxu0 0.0
  %962 = vmatpush1.msra.mxu0 0.0
  %963 = vmatprep.subr.mxu0 0.0
  %964 = vmatpush1.msra.mxu0 0.0
  %965 = vmatprep.subr.mxu0 0.0
  %966 = vmatpush1.msra.mxu0 0.0
  %967 = vmatprep.subr.mxu0 0.0
  %968 = vmatpush1.msra.mxu0 0.0
  %969 = vmatprep.subr.mxu0 0.0
  %970 = vmatpush1.msra.mxu0 0.0
  %971 = vmatprep.subr.mxu0 0.0
  %972 = vmatpush1.msra.mxu0 0.0
  %973 = vmatprep.subr.mxu0 0.0
  %974 = vmatpush1.msra.mxu0 0.0
  %975 = vmatprep.subr.mxu0 0.0
  %976 = vmatpush1.msra.mxu0 0.0
  %977 = vmatprep.subr.mxu0 0.0
  %978 = vmatpush1.msra.mxu0 0.0
  %979 = vmatprep.subr.mxu0 0.0
  %980 = vmatpush1.msra.mxu0 0.0
  %981 = vmatprep.subr.mxu0 0.0
  %982 = vmatpush1.msra.mxu0 0.0
  %983 = vmatprep.mubr.f32.mxu0 0.0
  %984 = vmatmul.mubr.f32.gmra.mrb[0].mxu0 %v917
  %v985 = vpop.f32.mrb[0].mxu0
  %v986 = vadd.f32 0.0, %v985
  %v987 = vpop.f32.mrb[0].mxu0
  %988 = vdwg.mxu0
  %v989 = vadd.f32 %v910, %v986
  %v990 = vxor.u32 %v989, 2147483648
  %v991 = vmul.f32 %v990, 1.442695
  %v992 = vpow.pop %v991
  %v993 = vadd.f32 %v992, 1.0
  %v994 = vrcp.pop %v993
  %v995 = vmul.f32 1.0, %v994
  %v996 = vtanh.pop %v989
  %v997 = vld [vmem:[#allocation4] sm:$0xff]
  %999 = vrot.lane.b32.xlu0 %v997, 32
  %v1000 = vpop.permute.xlu0 %999
  %v1002 = vmul.f32 %v995, %v1000
  %1004 = vrot.lane.b32.xlu0 %v996, 32
  %v1005 = vpop.permute.xlu0 %1004
  %v1007 = vmul.f32 %v995, %v1005
  %1009 = vrot.lane.b32.xlu0 %v1007, 32
  %v1010 = vpop.permute.xlu0 %1009
  %v1012 = vadd.f32 %v1002, %v1010
  %1014 = vrot.lane.b32.xlu0 %v1012, 96
  %v1015 = vpop.permute.xlu0 %1014
  %1017 = vst.msk [vmem:[#allocation4] sm:$0xff] %vm187, %v1015
  %v1018 = vtanh.pop %v1012
  %1020 = vrot.lane.b32.xlu0 %v1018, 32
  %v1021 = vpop.permute.xlu0 %1020
  %v1023 = vmul.f32 %v995, %v1021
  %1025 = vrot.lane.b32.xlu0 %v1023, 64
  %v1026 = vpop.permute.xlu0 %1025
  %1028 = vst.msk [vmem:[#allocation3] sm:$0xff] %vm187, %v1026
  %s1029 = scalar_lea.vmem [#allocation2], 56
  %v1030 = vld [vmem:[%s1029] sm:$0xff]
  %v1031 = vld [vmem:[#allocation3] sm:$0xff]
  %v1032 = vld [vmem:[%s2] sm:$0xff]
  %v1033 = vld [vmem:[%s2 + $0x8] sm:$0xff]
  %v1034 = vld [vmem:[%s2 + $0x10] sm:$0xff]
  %v1035 = vld [vmem:[%s2 + $0x18] sm:$0xff]
  %v1037 = vsel %vm187, %v1031, 0
  %1039 = vmatprep.subr.mxu0 0.0
  %1040 = vmatpush1.msra.mxu0 %v1032
  %1041 = vmatprep.subr.mxu0 0.0
  %1042 = vmatpush1.msra.mxu0 %v1033
  %1043 = vmatprep.subr.mxu0 0.0
  %1044 = vmatpush1.msra.mxu0 %v1034
  %1045 = vmatprep.subr.mxu0 0.0
  %1046 = vmatpush1.msra.mxu0 %v1035
  %1047 = vmatprep.subr.mxu0 0.0
  %1048 = vmatpush1.msra.mxu0 0.0
  %1049 = vmatprep.subr.mxu0 0.0
  %1050 = vmatpush1.msra.mxu0 0.0
  %1051 = vmatprep.subr.mxu0 0.0
  %1052 = vmatpush1.msra.mxu0 0.0
  %1053 = vmatprep.subr.mxu0 0.0
  %1054 = vmatpush1.msra.mxu0 0.0
  %1055 = vmatprep.subr.mxu0 0.0
  %1056 = vmatpush1.msra.mxu0 0.0
  %1057 = vmatprep.subr.mxu0 0.0
  %1058 = vmatpush1.msra.mxu0 0.0
  %1059 = vmatprep.subr.mxu0 0.0
  %1060 = vmatpush1.msra.mxu0 0.0
  %1061 = vmatprep.subr.mxu0 0.0
  %1062 = vmatpush1.msra.mxu0 0.0
  %1063 = vmatprep.subr.mxu0 0.0
  %1064 = vmatpush1.msra.mxu0 0.0
  %1065 = vmatprep.subr.mxu0 0.0
  %1066 = vmatpush1.msra.mxu0 0.0
  %1067 = vmatprep.subr.mxu0 0.0
  %1068 = vmatpush1.msra.mxu0 0.0
  %1069 = vmatprep.subr.mxu0 0.0
  %1070 = vmatpush1.msra.mxu0 0.0
  %1071 = vmatprep.subr.mxu0 0.0
  %1072 = vmatpush1.msra.mxu0 0.0
  %1073 = vmatprep.subr.mxu0 0.0
  %1074 = vmatpush1.msra.mxu0 0.0
  %1075 = vmatprep.subr.mxu0 0.0
  %1076 = vmatpush1.msra.mxu0 0.0
  %1077 = vmatprep.subr.mxu0 0.0
  %1078 = vmatpush1.msra.mxu0 0.0
  %1079 = vmatprep.subr.mxu0 0.0
  %1080 = vmatpush1.msra.mxu0 0.0
  %1081 = vmatprep.subr.mxu0 0.0
  %1082 = vmatpush1.msra.mxu0 0.0
  %1083 = vmatprep.subr.mxu0 0.0
  %1084 = vmatpush1.msra.mxu0 0.0
  %1085 = vmatprep.subr.mxu0 0.0
  %1086 = vmatpush1.msra.mxu0 0.0
  %1087 = vmatprep.subr.mxu0 0.0
  %1088 = vmatpush1.msra.mxu0 0.0
  %1089 = vmatprep.subr.mxu0 0.0
  %1090 = vmatpush1.msra.mxu0 0.0
  %1091 = vmatprep.subr.mxu0 0.0
  %1092 = vmatpush1.msra.mxu0 0.0
  %1093 = vmatprep.subr.mxu0 0.0
  %1094 = vmatpush1.msra.mxu0 0.0
  %1095 = vmatprep.subr.mxu0 0.0
  %1096 = vmatpush1.msra.mxu0 0.0
  %1097 = vmatprep.subr.mxu0 0.0
  %1098 = vmatpush1.msra.mxu0 0.0
  %1099 = vmatprep.subr.mxu0 0.0
  %1100 = vmatpush1.msra.mxu0 0.0
  %1101 = vmatprep.subr.mxu0 0.0
  %1102 = vmatpush1.msra.mxu0 0.0
  %1103 = vmatprep.mubr.f32.mxu0 0.0
  %1104 = vmatmul.mubr.f32.gmra.mrb[0].mxu0 %v1037
  %v1105 = vpop.f32.mrb[0].mxu0
  %v1106 = vadd.f32 0.0, %v1105
  %v1107 = vpop.f32.mrb[0].mxu0
  %1108 = vdwg.mxu0
  %v1109 = vadd.f32 %v1030, %v1106
  %v1110 = vxor.u32 %v1109, 2147483648
  %v1111 = vmul.f32 %v1110, 1.442695
  %v1112 = vpow.pop %v1111
  %v1113 = vadd.f32 %v1112, 1.0
  %v1114 = vrcp.pop %v1113
  %v1115 = vmul.f32 1.0, %v1114
  %v1116 = vtanh.pop %v1109
  %v1117 = vld [vmem:[#allocation4] sm:$0xff]
  %1119 = vrot.lane.b32.xlu0 %v1117, 32
  %v1120 = vpop.permute.xlu0 %1119
  %v1122 = vmul.f32 %v1115, %v1120
  %1124 = vrot.lane.b32.xlu0 %v1116, 32
  %v1125 = vpop.permute.xlu0 %1124
  %v1127 = vmul.f32 %v1115, %v1125
  %1129 = vrot.lane.b32.xlu0 %v1127, 32
  %v1130 = vpop.permute.xlu0 %1129
  %v1132 = vadd.f32 %v1122, %v1130
  %1134 = vrot.lane.b32.xlu0 %v1132, 96
  %v1135 = vpop.permute.xlu0 %1134
  %1137 = vst.msk [vmem:[#allocation4] sm:$0xff] %vm187, %v1135
  %v1138 = vtanh.pop %v1132
  %1140 = vrot.lane.b32.xlu0 %v1138, 32
  %v1141 = vpop.permute.xlu0 %1140
  %v1143 = vmul.f32 %v1115, %v1141
  %1145 = vrot.lane.b32.xlu0 %v1143, 64
  %v1146 = vpop.permute.xlu0 %1145
  %1148 = vst.msk [vmem:[#allocation3] sm:$0xff] %vm187, %v1146
  %v1149 = vld [vmem:[#allocation3] sm:$0xff]
  %v1150 = vld [vmem:[%s4] sm:$0xff]
  %v1151 = vld [vmem:[%s4 + $0x8] sm:$0xff]
  %v1152 = vld [vmem:[%s4 + $0x10] sm:$0xff]
  %v1153 = vld [vmem:[%s4 + $0x18] sm:$0xff]
  %v1154 = vld [vmem:[%s6] sm:$0x1]
  %v1156 = vlaneseq
  %v1157 = vshrl.u32 %v1156, 7
  %v1158 = vsub.s32 0, %v1157
  %v1159 = vrot.slane %v1154, %v1158
  %v1162 = vsel %vm187, %v1149, 0
  %1164 = vmatprep.subr.mxu0 0.0
  %1165 = vmatpush1.msra.mxu0 %v1150
  %1166 = vmatprep.subr.mxu0 0.0
  %1167 = vmatpush1.msra.mxu0 %v1151
  %1168 = vmatprep.subr.mxu0 0.0
  %1169 = vmatpush1.msra.mxu0 %v1152
  %1170 = vmatprep.subr.mxu0 0.0
  %1171 = vmatpush1.msra.mxu0 %v1153
  %1172 = vmatprep.subr.mxu0 0.0
  %1173 = vmatpush1.msra.mxu0 0.0
  %1174 = vmatprep.subr.mxu0 0.0
  %1175 = vmatpush1.msra.mxu0 0.0
  %1176 = vmatprep.subr.mxu0 0.0
  %1177 = vmatpush1.msra.mxu0 0.0
  %1178 = vmatprep.subr.mxu0 0.0
  %1179 = vmatpush1.msra.mxu0 0.0
  %1180 = vmatprep.subr.mxu0 0.0
  %1181 = vmatpush1.msra.mxu0 0.0
  %1182 = vmatprep.subr.mxu0 0.0
  %1183 = vmatpush1.msra.mxu0 0.0
  %1184 = vmatprep.subr.mxu0 0.0
  %1185 = vmatpush1.msra.mxu0 0.0
  %1186 = vmatprep.subr.mxu0 0.0
  %1187 = vmatpush1.msra.mxu0 0.0
  %1188 = vmatprep.subr.mxu0 0.0
  %1189 = vmatpush1.msra.mxu0 0.0
  %1190 = vmatprep.subr.mxu0 0.0
  %1191 = vmatpush1.msra.mxu0 0.0
  %1192 = vmatprep.subr.mxu0 0.0
  %1193 = vmatpush1.msra.mxu0 0.0
  %1194 = vmatprep.subr.mxu0 0.0
  %1195 = vmatpush1.msra.mxu0 0.0
  %1196 = vmatprep.subr.mxu0 0.0
  %1197 = vmatpush1.msra.mxu0 0.0
  %1198 = vmatprep.subr.mxu0 0.0
  %1199 = vmatpush1.msra.mxu0 0.0
  %1200 = vmatprep.subr.mxu0 0.0
  %1201 = vmatpush1.msra.mxu0 0.0
  %1202 = vmatprep.subr.mxu0 0.0
  %1203 = vmatpush1.msra.mxu0 0.0
  %1204 = vmatprep.subr.mxu0 0.0
  %1205 = vmatpush1.msra.mxu0 0.0
  %1206 = vmatprep.subr.mxu0 0.0
  %1207 = vmatpush1.msra.mxu0 0.0
  %1208 = vmatprep.subr.mxu0 0.0
  %1209 = vmatpush1.msra.mxu0 0.0
  %1210 = vmatprep.subr.mxu0 0.0
  %1211 = vmatpush1.msra.mxu0 0.0
  %1212 = vmatprep.subr.mxu0 0.0
  %1213 = vmatpush1.msra.mxu0 0.0
  %1214 = vmatprep.subr.mxu0 0.0
  %1215 = vmatpush1.msra.mxu0 0.0
  %1216 = vmatprep.subr.mxu0 0.0
  %1217 = vmatpush1.msra.mxu0 0.0
  %1218 = vmatprep.subr.mxu0 0.0
  %1219 = vmatpush1.msra.mxu0 0.0
  %1220 = vmatprep.subr.mxu0 0.0
  %1221 = vmatpush1.msra.mxu0 0.0
  %1222 = vmatprep.subr.mxu0 0.0
  %1223 = vmatpush1.msra.mxu0 0.0
  %1224 = vmatprep.subr.mxu0 0.0
  %1225 = vmatpush1.msra.mxu0 0.0
  %1226 = vmatprep.subr.mxu0 0.0
  %1227 = vmatpush1.msra.mxu0 0.0
  %1228 = vmatprep.mubr.f32.mxu0 0.0
  %1229 = vmatmul.mubr.f32.gmra.mrb[0].mxu0 %v1162
  %v1230 = vpop.f32.mrb[0].mxu0
  %v1231 = vadd.f32 %v1159, %v1230
  %v1232 = vpop.f32.mrb[0].mxu0
  %1233 = vdwg.mxu0
  %1234 = vst.msk [vmem:[#allocation5] sm:$0xff] %vm187, 0.0
  %1235 = vst.msk [vmem:[#allocation6] sm:$0xff] %vm187, 0.0
  %v1236 = vld [vmem:[#allocation5] sm:$0xff]
  %v1237 = vld [vmem:[%s5] sm:$0xff]
  %v1238 = vld [vmem:[%s5 + $0x8] sm:$0xff]
  %v1239 = vld [vmem:[%s5 + $0x10] sm:$0xff]
  %v1240 = vld [vmem:[%s5 + $0x18] sm:$0xff]
  %v1242 = vsel %vm187, %v1236, 0
  %1244 = vmatprep.subr.mxu0 0.0
  %1245 = vmatpush1.msra.mxu0 %v1237
  %1246 = vmatprep.subr.mxu0 0.0
  %1247 = vmatpush1.msra.mxu0 %v1238
  %1248 = vmatprep.subr.mxu0 0.0
  %1249 = vmatpush1.msra.mxu0 %v1239
  %1250 = vmatprep.subr.mxu0 0.0
  %1251 = vmatpush1.msra.mxu0 %v1240
  %1252 = vmatprep.subr.mxu0 0.0
  %1253 = vmatpush1.msra.mxu0 0.0
  %1254 = vmatprep.subr.mxu0 0.0
  %1255 = vmatpush1.msra.mxu0 0.0
  %1256 = vmatprep.subr.mxu0 0.0
  %1257 = vmatpush1.msra.mxu0 0.0
  %1258 = vmatprep.subr.mxu0 0.0
  %1259 = vmatpush1.msra.mxu0 0.0
  %1260 = vmatprep.subr.mxu0 0.0
  %1261 = vmatpush1.msra.mxu0 0.0
  %1262 = vmatprep.subr.mxu0 0.0
  %1263 = vmatpush1.msra.mxu0 0.0
  %1264 = vmatprep.subr.mxu0 0.0
  %1265 = vmatpush1.msra.mxu0 0.0
  %1266 = vmatprep.subr.mxu0 0.0
  %1267 = vmatpush1.msra.mxu0 0.0
  %1268 = vmatprep.subr.mxu0 0.0
  %1269 = vmatpush1.msra.mxu0 0.0
  %1270 = vmatprep.subr.mxu0 0.0
  %1271 = vmatpush1.msra.mxu0 0.0
  %1272 = vmatprep.subr.mxu0 0.0
  %1273 = vmatpush1.msra.mxu0 0.0
  %1274 = vmatprep.subr.mxu0 0.0
  %1275 = vmatpush1.msra.mxu0 0.0
  %1276 = vmatprep.subr.mxu0 0.0
  %1277 = vmatpush1.msra.mxu0 0.0
  %1278 = vmatprep.subr.mxu0 0.0
  %1279 = vmatpush1.msra.mxu0 0.0
  %1280 = vmatprep.subr.mxu0 0.0
  %1281 = vmatpush1.msra.mxu0 0.0
  %1282 = vmatprep.subr.mxu0 0.0
  %1283 = vmatpush1.msra.mxu0 0.0
  %1284 = vmatprep.subr.mxu0 0.0
  %1285 = vmatpush1.msra.mxu0 0.0
  %1286 = vmatprep.subr.mxu0 0.0
  %1287 = vmatpush1.msra.mxu0 0.0
  %1288 = vmatprep.subr.mxu0 0.0
  %1289 = vmatpush1.msra.mxu0 0.0
  %1290 = vmatprep.subr.mxu0 0.0
  %1291 = vmatpush1.msra.mxu0 0.0
  %1292 = vmatprep.subr.mxu0 0.0
  %1293 = vmatpush1.msra.mxu0 0.0
  %1294 = vmatprep.subr.mxu0 0.0
  %1295 = vmatpush1.msra.mxu0 0.0
  %1296 = vmatprep.subr.mxu0 0.0
  %1297 = vmatpush1.msra.mxu0 0.0
  %1298 = vmatprep.subr.mxu0 0.0
  %1299 = vmatpush1.msra.mxu0 0.0
  %1300 = vmatprep.subr.mxu0 0.0
  %1301 = vmatpush1.msra.mxu0 0.0
  %1302 = vmatprep.subr.mxu0 0.0
  %1303 = vmatpush1.msra.mxu0 0.0
  %1304 = vmatprep.subr.mxu0 0.0
  %1305 = vmatpush1.msra.mxu0 0.0
  %1306 = vmatprep.subr.mxu0 0.0
  %1307 = vmatpush1.msra.mxu0 0.0
  %1308 = vmatprep.mubr.f32.mxu0 0.0
  %1309 = vmatmul.mubr.f32.gmra.mrb[0].mxu0 %v1242
  %v1310 = vpop.f32.mrb[0].mxu0
  %v1311 = vadd.f32 0.0, %v1310
  %v1312 = vpop.f32.mrb[0].mxu0
  %1313 = vdwg.mxu0
  %v1314 = vadd.f32 %v1231, %v1311
  %v1315 = vxor.u32 %v1314, 2147483648
  %v1316 = vmul.f32 %v1315, 1.442695
  %v1317 = vpow.pop %v1316
  %v1318 = vadd.f32 %v1317, 1.0
  %v1319 = vrcp.pop %v1318
  %v1320 = vmul.f32 1.0, %v1319
  %v1321 = vtanh.pop %v1314
  %v1322 = vld [vmem:[#allocation6] sm:$0xff]
  %1324 = vrot.lane.b32.xlu0 %v1322, 32
  %v1325 = vpop.permute.xlu0 %1324
  %v1327 = vmul.f32 %v1320, %v1325
  %1329 = vrot.lane.b32.xlu0 %v1321, 32
  %v1330 = vpop.permute.xlu0 %1329
  %v1332 = vmul.f32 %v1320, %v1330
  %1334 = vrot.lane.b32.xlu0 %v1332, 32
  %v1335 = vpop.permute.xlu0 %1334
  %v1337 = vadd.f32 %v1327, %v1335
  %1339 = vrot.lane.b32.xlu0 %v1337, 96
  %v1340 = vpop.permute.xlu0 %1339
  %1342 = vst.msk [vmem:[#allocation6] sm:$0xff] %vm187, %v1340
  %v1343 = vtanh.pop %v1337
  %1345 = vrot.lane.b32.xlu0 %v1343, 32
  %v1346 = vpop.permute.xlu0 %1345
  %v1348 = vmul.f32 %v1320, %v1346
  %1350 = vrot.lane.b32.xlu0 %v1348, 64
  %v1351 = vpop.permute.xlu0 %1350
  %1353 = vst.msk [vmem:[#allocation5] sm:$0xff] %vm187, %v1351
  %1354 = vst.msk [vmem:[#allocation7] sm:$0xff] %vm187, %v1351
  %v1355 = vld [vmem:[#allocation5] sm:$0xff]
  %v1356 = vld [vmem:[%s5] sm:$0xff]
  %v1357 = vld [vmem:[%s5 + $0x8] sm:$0xff]
  %v1358 = vld [vmem:[%s5 + $0x10] sm:$0xff]
  %v1359 = vld [vmem:[%s5 + $0x18] sm:$0xff]
  %v1361 = vsel %vm187, %v1355, 0
  %1363 = vmatprep.subr.mxu0 0.0
  %1364 = vmatpush1.msra.mxu0 %v1356
  %1365 = vmatprep.subr.mxu0 0.0
  %1366 = vmatpush1.msra.mxu0 %v1357
  %1367 = vmatprep.subr.mxu0 0.0
  %1368 = vmatpush1.msra.mxu0 %v1358
  %1369 = vmatprep.subr.mxu0 0.0
  %1370 = vmatpush1.msra.mxu0 %v1359
  %1371 = vmatprep.subr.mxu0 0.0
  %1372 = vmatpush1.msra.mxu0 0.0
  %1373 = vmatprep.subr.mxu0 0.0
  %1374 = vmatpush1.msra.mxu0 0.0
  %1375 = vmatprep.subr.mxu0 0.0
  %1376 = vmatpush1.msra.mxu0 0.0
  %1377 = vmatprep.subr.mxu0 0.0
  %1378 = vmatpush1.msra.mxu0 0.0
  %1379 = vmatprep.subr.mxu0 0.0
  %1380 = vmatpush1.msra.mxu0 0.0
  %1381 = vmatprep.subr.mxu0 0.0
  %1382 = vmatpush1.msra.mxu0 0.0
  %1383 = vmatprep.subr.mxu0 0.0
  %1384 = vmatpush1.msra.mxu0 0.0
  %1385 = vmatprep.subr.mxu0 0.0
  %1386 = vmatpush1.msra.mxu0 0.0
  %1387 = vmatprep.subr.mxu0 0.0
  %1388 = vmatpush1.msra.mxu0 0.0
  %1389 = vmatprep.subr.mxu0 0.0
  %1390 = vmatpush1.msra.mxu0 0.0
  %1391 = vmatprep.subr.mxu0 0.0
  %1392 = vmatpush1.msra.mxu0 0.0
  %1393 = vmatprep.subr.mxu0 0.0
  %1394 = vmatpush1.msra.mxu0 0.0
  %1395 = vmatprep.subr.mxu0 0.0
  %1396 = vmatpush1.msra.mxu0 0.0
  %1397 = vmatprep.subr.mxu0 0.0
  %1398 = vmatpush1.msra.mxu0 0.0
  %1399 = vmatprep.subr.mxu0 0.0
  %1400 = vmatpush1.msra.mxu0 0.0
  %1401 = vmatprep.subr.mxu0 0.0
  %1402 = vmatpush1.msra.mxu0 0.0
  %1403 = vmatprep.subr.mxu0 0.0
  %1404 = vmatpush1.msra.mxu0 0.0
  %1405 = vmatprep.subr.mxu0 0.0
  %1406 = vmatpush1.msra.mxu0 0.0
  %1407 = vmatprep.subr.mxu0 0.0
  %1408 = vmatpush1.msra.mxu0 0.0
  %1409 = vmatprep.subr.mxu0 0.0
  %1410 = vmatpush1.msra.mxu0 0.0
  %1411 = vmatprep.subr.mxu0 0.0
  %1412 = vmatpush1.msra.mxu0 0.0
  %1413 = vmatprep.subr.mxu0 0.0
  %1414 = vmatpush1.msra.mxu0 0.0
  %1415 = vmatprep.subr.mxu0 0.0
  %1416 = vmatpush1.msra.mxu0 0.0
  %1417 = vmatprep.subr.mxu0 0.0
  %1418 = vmatpush1.msra.mxu0 0.0
  %1419 = vmatprep.subr.mxu0 0.0
  %1420 = vmatpush1.msra.mxu0 0.0
  %1421 = vmatprep.subr.mxu0 0.0
  %1422 = vmatpush1.msra.mxu0 0.0
  %1423 = vmatprep.subr.mxu0 0.0
  %1424 = vmatpush1.msra.mxu0 0.0
  %1425 = vmatprep.subr.mxu0 0.0
  %1426 = vmatpush1.msra.mxu0 0.0
  %1427 = vmatprep.mubr.f32.mxu0 0.0
  %1428 = vmatmul.mubr.f32.gmra.mrb[0].mxu0 %v1361
  %v1429 = vpop.f32.mrb[0].mxu0
  %v1430 = vadd.f32 0.0, %v1429
  %v1431 = vpop.f32.mrb[0].mxu0
  %1432 = vdwg.mxu0
  %v1433 = vadd.f32 %v1231, %v1430
  %v1434 = vxor.u32 %v1433, 2147483648
  %v1435 = vmul.f32 %v1434, 1.442695
  %v1436 = vpow.pop %v1435
  %v1437 = vadd.f32 %v1436, 1.0
  %v1438 = vrcp.pop %v1437
  %v1439 = vmul.f32 1.0, %v1438
  %v1440 = vtanh.pop %v1433
  %v1441 = vld [vmem:[#allocation6] sm:$0xff]
  %1443 = vrot.lane.b32.xlu0 %v1441, 32
  %v1444 = vpop.permute.xlu0 %1443
  %v1446 = vmul.f32 %v1439, %v1444
  %1448 = vrot.lane.b32.xlu0 %v1440, 32
  %v1449 = vpop.permute.xlu0 %1448
  %v1451 = vmul.f32 %v1439, %v1449
  %1453 = vrot.lane.b32.xlu0 %v1451, 32
  %v1454 = vpop.permute.xlu0 %1453
  %v1456 = vadd.f32 %v1446, %v1454
  %1458 = vrot.lane.b32.xlu0 %v1456, 96
  %v1459 = vpop.permute.xlu0 %1458
  %1461 = vst.msk [vmem:[#allocation6] sm:$0xff] %vm187, %v1459
  %v1462 = vtanh.pop %v1456
  %1464 = vrot.lane.b32.xlu0 %v1462, 32
  %v1465 = vpop.permute.xlu0 %1464
  %v1467 = vmul.f32 %v1439, %v1465
  %1469 = vrot.lane.b32.xlu0 %v1467, 64
  %v1470 = vpop.permute.xlu0 %1469
  %1472 = vst.msk [vmem:[#allocation5] sm:$0xff] %vm187, %v1470
  %s1473 = scalar_lea.vmem [#allocation7], 8
  %1474 = vst.msk [vmem:[%s1473] sm:$0xff] %vm187, %v1470
  %v1475 = vld [vmem:[#allocation5] sm:$0xff]
  %v1476 = vld [vmem:[%s5] sm:$0xff]
  %v1477 = vld [vmem:[%s5 + $0x8] sm:$0xff]
  %v1478 = vld [vmem:[%s5 + $0x10] sm:$0xff]
  %v1479 = vld [vmem:[%s5 + $0x18] sm:$0xff]
  %v1481 = vsel %vm187, %v1475, 0
  %1483 = vmatprep.subr.mxu0 0.0
  %1484 = vmatpush1.msra.mxu0 %v1476
  %1485 = vmatprep.subr.mxu0 0.0
  %1486 = vmatpush1.msra.mxu0 %v1477
  %1487 = vmatprep.subr.mxu0 0.0
  %1488 = vmatpush1.msra.mxu0 %v1478
  %1489 = vmatprep.subr.mxu0 0.0
  %1490 = vmatpush1.msra.mxu0 %v1479
  %1491 = vmatprep.subr.mxu0 0.0
  %1492 = vmatpush1.msra.mxu0 0.0
  %1493 = vmatprep.subr.mxu0 0.0
  %1494 = vmatpush1.msra.mxu0 0.0
  %1495 = vmatprep.subr.mxu0 0.0
  %1496 = vmatpush1.msra.mxu0 0.0
  %1497 = vmatprep.subr.mxu0 0.0
  %1498 = vmatpush1.msra.mxu0 0.0
  %1499 = vmatprep.subr.mxu0 0.0
  %1500 = vmatpush1.msra.mxu0 0.0
  %1501 = vmatprep.subr.mxu0 0.0
  %1502 = vmatpush1.msra.mxu0 0.0
  %1503 = vmatprep.subr.mxu0 0.0
  %1504 = vmatpush1.msra.mxu0 0.0
  %1505 = vmatprep.subr.mxu0 0.0
  %1506 = vmatpush1.msra.mxu0 0.0
  %1507 = vmatprep.subr.mxu0 0.0
  %1508 = vmatpush1.msra.mxu0 0.0
  %1509 = vmatprep.subr.mxu0 0.0
  %1510 = vmatpush1.msra.mxu0 0.0
  %1511 = vmatprep.subr.mxu0 0.0
  %1512 = vmatpush1.msra.mxu0 0.0
  %1513 = vmatprep.subr.mxu0 0.0
  %1514 = vmatpush1.msra.mxu0 0.0
  %1515 = vmatprep.subr.mxu0 0.0
  %1516 = vmatpush1.msra.mxu0 0.0
  %1517 = vmatprep.subr.mxu0 0.0
  %1518 = vmatpush1.msra.mxu0 0.0
  %1519 = vmatprep.subr.mxu0 0.0
  %1520 = vmatpush1.msra.mxu0 0.0
  %1521 = vmatprep.subr.mxu0 0.0
  %1522 = vmatpush1.msra.mxu0 0.0
  %1523 = vmatprep.subr.mxu0 0.0
  %1524 = vmatpush1.msra.mxu0 0.0
  %1525 = vmatprep.subr.mxu0 0.0
  %1526 = vmatpush1.msra.mxu0 0.0
  %1527 = vmatprep.subr.mxu0 0.0
  %1528 = vmatpush1.msra.mxu0 0.0
  %1529 = vmatprep.subr.mxu0 0.0
  %1530 = vmatpush1.msra.mxu0 0.0
  %1531 = vmatprep.subr.mxu0 0.0
  %1532 = vmatpush1.msra.mxu0 0.0
  %1533 = vmatprep.subr.mxu0 0.0
  %1534 = vmatpush1.msra.mxu0 0.0
  %1535 = vmatprep.subr.mxu0 0.0
  %1536 = vmatpush1.msra.mxu0 0.0
  %1537 = vmatprep.subr.mxu0 0.0
  %1538 = vmatpush1.msra.mxu0 0.0
  %1539 = vmatprep.subr.mxu0 0.0
  %1540 = vmatpush1.msra.mxu0 0.0
  %1541 = vmatprep.subr.mxu0 0.0
  %1542 = vmatpush1.msra.mxu0 0.0
  %1543 = vmatprep.subr.mxu0 0.0
  %1544 = vmatpush1.msra.mxu0 0.0
  %1545 = vmatprep.subr.mxu0 0.0
  %1546 = vmatpush1.msra.mxu0 0.0
  %1547 = vmatprep.mubr.f32.mxu0 0.0
  %1548 = vmatmul.mubr.f32.gmra.mrb[0].mxu0 %v1481
  %v1549 = vpop.f32.mrb[0].mxu0
  %v1550 = vadd.f32 0.0, %v1549
  %v1551 = vpop.f32.mrb[0].mxu0
  %1552 = vdwg.mxu0
  %v1553 = vadd.f32 %v1231, %v1550
  %v1554 = vxor.u32 %v1553, 2147483648
  %v1555 = vmul.f32 %v1554, 1.442695
  %v1556 = vpow.pop %v1555
  %v1557 = vadd.f32 %v1556, 1.0
  %v1558 = vrcp.pop %v1557
  %v1559 = vmul.f32 1.0, %v1558
  %v1560 = vtanh.pop %v1553
  %v1561 = vld [vmem:[#allocation6] sm:$0xff]
  %1563 = vrot.lane.b32.xlu0 %v1561, 32
  %v1564 = vpop.permute.xlu0 %1563
  %v1566 = vmul.f32 %v1559, %v1564
  %1568 = vrot.lane.b32.xlu0 %v1560, 32
  %v1569 = vpop.permute.xlu0 %1568
  %v1571 = vmul.f32 %v1559, %v1569
  %1573 = vrot.lane.b32.xlu0 %v1571, 32
  %v1574 = vpop.permute.xlu0 %1573
  %v1576 = vadd.f32 %v1566, %v1574
  %1578 = vrot.lane.b32.xlu0 %v1576, 96
  %v1579 = vpop.permute.xlu0 %1578
  %1581 = vst.msk [vmem:[#allocation6] sm:$0xff] %vm187, %v1579
  %v1582 = vtanh.pop %v1576
  %1584 = vrot.lane.b32.xlu0 %v1582, 32
  %v1585 = vpop.permute.xlu0 %1584
  %v1587 = vmul.f32 %v1559, %v1585
  %1589 = vrot.lane.b32.xlu0 %v1587, 64
  %v1590 = vpop.permute.xlu0 %1589
  %1592 = vst.msk [vmem:[#allocation5] sm:$0xff] %vm187, %v1590
  %s1593 = scalar_lea.vmem [#allocation7], 16
  %1594 = vst.msk [vmem:[%s1593] sm:$0xff] %vm187, %v1590
  %v1595 = vld [vmem:[#allocation5] sm:$0xff]
  %v1596 = vld [vmem:[%s5] sm:$0xff]
  %v1597 = vld [vmem:[%s5 + $0x8] sm:$0xff]
  %v1598 = vld [vmem:[%s5 + $0x10] sm:$0xff]
  %v1599 = vld [vmem:[%s5 + $0x18] sm:$0xff]
  %v1601 = vsel %vm187, %v1595, 0
  %1603 = vmatprep.subr.mxu0 0.0
  %1604 = vmatpush1.msra.mxu0 %v1596
  %1605 = vmatprep.subr.mxu0 0.0
  %1606 = vmatpush1.msra.mxu0 %v1597
  %1607 = vmatprep.subr.mxu0 0.0
  %1608 = vmatpush1.msra.mxu0 %v1598
  %1609 = vmatprep.subr.mxu0 0.0
  %1610 = vmatpush1.msra.mxu0 %v1599
  %1611 = vmatprep.subr.mxu0 0.0
  %1612 = vmatpush1.msra.mxu0 0.0
  %1613 = vmatprep.subr.mxu0 0.0
  %1614 = vmatpush1.msra.mxu0 0.0
  %1615 = vmatprep.subr.mxu0 0.0
  %1616 = vmatpush1.msra.mxu0 0.0
  %1617 = vmatprep.subr.mxu0 0.0
  %1618 = vmatpush1.msra.mxu0 0.0
  %1619 = vmatprep.subr.mxu0 0.0
  %1620 = vmatpush1.msra.mxu0 0.0
  %1621 = vmatprep.subr.mxu0 0.0
  %1622 = vmatpush1.msra.mxu0 0.0
  %1623 = vmatprep.subr.mxu0 0.0
  %1624 = vmatpush1.msra.mxu0 0.0
  %1625 = vmatprep.subr.mxu0 0.0
  %1626 = vmatpush1.msra.mxu0 0.0
  %1627 = vmatprep.subr.mxu0 0.0
  %1628 = vmatpush1.msra.mxu0 0.0
  %1629 = vmatprep.subr.mxu0 0.0
  %1630 = vmatpush1.msra.mxu0 0.0
  %1631 = vmatprep.subr.mxu0 0.0
  %1632 = vmatpush1.msra.mxu0 0.0
  %1633 = vmatprep.subr.mxu0 0.0
  %1634 = vmatpush1.msra.mxu0 0.0
  %1635 = vmatprep.subr.mxu0 0.0
  %1636 = vmatpush1.msra.mxu0 0.0
  %1637 = vmatprep.subr.mxu0 0.0
  %1638 = vmatpush1.msra.mxu0 0.0
  %1639 = vmatprep.subr.mxu0 0.0
  %1640 = vmatpush1.msra.mxu0 0.0
  %1641 = vmatprep.subr.mxu0 0.0
  %1642 = vmatpush1.msra.mxu0 0.0
  %1643 = vmatprep.subr.mxu0 0.0
  %1644 = vmatpush1.msra.mxu0 0.0
  %1645 = vmatprep.subr.mxu0 0.0
  %1646 = vmatpush1.msra.mxu0 0.0
  %1647 = vmatprep.subr.mxu0 0.0
  %1648 = vmatpush1.msra.mxu0 0.0
  %1649 = vmatprep.subr.mxu0 0.0
  %1650 = vmatpush1.msra.mxu0 0.0
  %1651 = vmatprep.subr.mxu0 0.0
  %1652 = vmatpush1.msra.mxu0 0.0
  %1653 = vmatprep.subr.mxu0 0.0
  %1654 = vmatpush1.msra.mxu0 0.0
  %1655 = vmatprep.subr.mxu0 0.0
  %1656 = vmatpush1.msra.mxu0 0.0
  %1657 = vmatprep.subr.mxu0 0.0
  %1658 = vmatpush1.msra.mxu0 0.0
  %1659 = vmatprep.subr.mxu0 0.0
  %1660 = vmatpush1.msra.mxu0 0.0
  %1661 = vmatprep.subr.mxu0 0.0
  %1662 = vmatpush1.msra.mxu0 0.0
  %1663 = vmatprep.subr.mxu0 0.0
  %1664 = vmatpush1.msra.mxu0 0.0
  %1665 = vmatprep.subr.mxu0 0.0
  %1666 = vmatpush1.msra.mxu0 0.0
  %1667 = vmatprep.mubr.f32.mxu0 0.0
  %1668 = vmatmul.mubr.f32.gmra.mrb[0].mxu0 %v1601
  %v1669 = vpop.f32.mrb[0].mxu0
  %v1670 = vadd.f32 0.0, %v1669
  %v1671 = vpop.f32.mrb[0].mxu0
  %1672 = vdwg.mxu0
  %v1673 = vadd.f32 %v1231, %v1670
  %v1674 = vxor.u32 %v1673, 2147483648
  %v1675 = vmul.f32 %v1674, 1.442695
  %v1676 = vpow.pop %v1675
  %v1677 = vadd.f32 %v1676, 1.0
  %v1678 = vrcp.pop %v1677
  %v1679 = vmul.f32 1.0, %v1678
  %v1680 = vtanh.pop %v1673
  %v1681 = vld [vmem:[#allocation6] sm:$0xff]
  %1683 = vrot.lane.b32.xlu0 %v1681, 32
  %v1684 = vpop.permute.xlu0 %1683
  %v1686 = vmul.f32 %v1679, %v1684
  %1688 = vrot.lane.b32.xlu0 %v1680, 32
  %v1689 = vpop.permute.xlu0 %1688
  %v1691 = vmul.f32 %v1679, %v1689
  %1693 = vrot.lane.b32.xlu0 %v1691, 32
  %v1694 = vpop.permute.xlu0 %1693
  %v1696 = vadd.f32 %v1686, %v1694
  %1698 = vrot.lane.b32.xlu0 %v1696, 96
  %v1699 = vpop.permute.xlu0 %1698
  %1701 = vst.msk [vmem:[#allocation6] sm:$0xff] %vm187, %v1699
  %v1702 = vtanh.pop %v1696
  %1704 = vrot.lane.b32.xlu0 %v1702, 32
  %v1705 = vpop.permute.xlu0 %1704
  %v1707 = vmul.f32 %v1679, %v1705
  %1709 = vrot.lane.b32.xlu0 %v1707, 64
  %v1710 = vpop.permute.xlu0 %1709
  %1712 = vst.msk [vmem:[#allocation5] sm:$0xff] %vm187, %v1710
  %s1713 = scalar_lea.vmem [#allocation7], 24
  %1714 = vst.msk [vmem:[%s1713] sm:$0xff] %vm187, %v1710
  %v1715 = vld [vmem:[#allocation5] sm:$0xff]
  %v1716 = vld [vmem:[%s5] sm:$0xff]
  %v1717 = vld [vmem:[%s5 + $0x8] sm:$0xff]
  %v1718 = vld [vmem:[%s5 + $0x10] sm:$0xff]
  %v1719 = vld [vmem:[%s5 + $0x18] sm:$0xff]
  %v1721 = vsel %vm187, %v1715, 0
  %1723 = vmatprep.subr.mxu0 0.0
  %1724 = vmatpush1.msra.mxu0 %v1716
  %1725 = vmatprep.subr.mxu0 0.0
  %1726 = vmatpush1.msra.mxu0 %v1717
  %1727 = vmatprep.subr.mxu0 0.0
  %1728 = vmatpush1.msra.mxu0 %v1718
  %1729 = vmatprep.subr.mxu0 0.0
  %1730 = vmatpush1.msra.mxu0 %v1719
  %1731 = vmatprep.subr.mxu0 0.0
  %1732 = vmatpush1.msra.mxu0 0.0
  %1733 = vmatprep.subr.mxu0 0.0
  %1734 = vmatpush1.msra.mxu0 0.0
  %1735 = vmatprep.subr.mxu0 0.0
  %1736 = vmatpush1.msra.mxu0 0.0
  %1737 = vmatprep.subr.mxu0 0.0
  %1738 = vmatpush1.msra.mxu0 0.0
  %1739 = vmatprep.subr.mxu0 0.0
  %1740 = vmatpush1.msra.mxu0 0.0
  %1741 = vmatprep.subr.mxu0 0.0
  %1742 = vmatpush1.msra.mxu0 0.0
  %1743 = vmatprep.subr.mxu0 0.0
  %1744 = vmatpush1.msra.mxu0 0.0
  %1745 = vmatprep.subr.mxu0 0.0
  %1746 = vmatpush1.msra.mxu0 0.0
  %1747 = vmatprep.subr.mxu0 0.0
  %1748 = vmatpush1.msra.mxu0 0.0
  %1749 = vmatprep.subr.mxu0 0.0
  %1750 = vmatpush1.msra.mxu0 0.0
  %1751 = vmatprep.subr.mxu0 0.0
  %1752 = vmatpush1.msra.mxu0 0.0
  %1753 = vmatprep.subr.mxu0 0.0
  %1754 = vmatpush1.msra.mxu0 0.0
  %1755 = vmatprep.subr.mxu0 0.0
  %1756 = vmatpush1.msra.mxu0 0.0
  %1757 = vmatprep.subr.mxu0 0.0
  %1758 = vmatpush1.msra.mxu0 0.0
  %1759 = vmatprep.subr.mxu0 0.0
  %1760 = vmatpush1.msra.mxu0 0.0
  %1761 = vmatprep.subr.mxu0 0.0
  %1762 = vmatpush1.msra.mxu0 0.0
  %1763 = vmatprep.subr.mxu0 0.0
  %1764 = vmatpush1.msra.mxu0 0.0
  %1765 = vmatprep.subr.mxu0 0.0
  %1766 = vmatpush1.msra.mxu0 0.0
  %1767 = vmatprep.subr.mxu0 0.0
  %1768 = vmatpush1.msra.mxu0 0.0
  %1769 = vmatprep.subr.mxu0 0.0
  %1770 = vmatpush1.msra.mxu0 0.0
  %1771 = vmatprep.subr.mxu0 0.0
  %1772 = vmatpush1.msra.mxu0 0.0
  %1773 = vmatprep.subr.mxu0 0.0
  %1774 = vmatpush1.msra.mxu0 0.0
  %1775 = vmatprep.subr.mxu0 0.0
  %1776 = vmatpush1.msra.mxu0 0.0
  %1777 = vmatprep.subr.mxu0 0.0
  %1778 = vmatpush1.msra.mxu0 0.0
  %1779 = vmatprep.subr.mxu0 0.0
  %1780 = vmatpush1.msra.mxu0 0.0
  %1781 = vmatprep.subr.mxu0 0.0
  %1782 = vmatpush1.msra.mxu0 0.0
  %1783 = vmatprep.subr.mxu0 0.0
  %1784 = vmatpush1.msra.mxu0 0.0
  %1785 = vmatprep.subr.mxu0 0.0
  %1786 = vmatpush1.msra.mxu0 0.0
  %1787 = vmatprep.mubr.f32.mxu0 0.0
  %1788 = vmatmul.mubr.f32.gmra.mrb[0].mxu0 %v1721
  %v1789 = vpop.f32.mrb[0].mxu0
  %v1790 = vadd.f32 0.0, %v1789
  %v1791 = vpop.f32.mrb[0].mxu0
  %1792 = vdwg.mxu0
  %v1793 = vadd.f32 %v1231, %v1790
  %v1794 = vxor.u32 %v1793, 2147483648
  %v1795 = vmul.f32 %v1794, 1.442695
  %v1796 = vpow.pop %v1795
  %v1797 = vadd.f32 %v1796, 1.0
  %v1798 = vrcp.pop %v1797
  %v1799 = vmul.f32 1.0, %v1798
  %v1800 = vtanh.pop %v1793
  %v1801 = vld [vmem:[#allocation6] sm:$0xff]
  %1803 = vrot.lane.b32.xlu0 %v1801, 32
  %v1804 = vpop.permute.xlu0 %1803
  %v1806 = vmul.f32 %v1799, %v1804
  %1808 = vrot.lane.b32.xlu0 %v1800, 32
  %v1809 = vpop.permute.xlu0 %1808
  %v1811 = vmul.f32 %v1799, %v1809
  %1813 = vrot.lane.b32.xlu0 %v1811, 32
  %v1814 = vpop.permute.xlu0 %1813
  %v1816 = vadd.f32 %v1806, %v1814
  %1818 = vrot.lane.b32.xlu0 %v1816, 96
  %v1819 = vpop.permute.xlu0 %1818
  %1821 = vst.msk [vmem:[#allocation6] sm:$0xff] %vm187, %v1819
  %v1822 = vtanh.pop %v1816
  %1824 = vrot.lane.b32.xlu0 %v1822, 32
  %v1825 = vpop.permute.xlu0 %1824
  %v1827 = vmul.f32 %v1799, %v1825
  %1829 = vrot.lane.b32.xlu0 %v1827, 64
  %v1830 = vpop.permute.xlu0 %1829
  %1832 = vst.msk [vmem:[#allocation5] sm:$0xff] %vm187, %v1830
  %s1833 = scalar_lea.vmem [#allocation7], 32
  %1834 = vst.msk [vmem:[%s1833] sm:$0xff] %vm187, %v1830
  %v1835 = vld [vmem:[#allocation5] sm:$0xff]
  %v1836 = vld [vmem:[%s5] sm:$0xff]
  %v1837 = vld [vmem:[%s5 + $0x8] sm:$0xff]
  %v1838 = vld [vmem:[%s5 + $0x10] sm:$0xff]
  %v1839 = vld [vmem:[%s5 + $0x18] sm:$0xff]
  %v1841 = vsel %vm187, %v1835, 0
  %1843 = vmatprep.subr.mxu0 0.0
  %1844 = vmatpush1.msra.mxu0 %v1836
  %1845 = vmatprep.subr.mxu0 0.0
  %1846 = vmatpush1.msra.mxu0 %v1837
  %1847 = vmatprep.subr.mxu0 0.0
  %1848 = vmatpush1.msra.mxu0 %v1838
  %1849 = vmatprep.subr.mxu0 0.0
  %1850 = vmatpush1.msra.mxu0 %v1839
  %1851 = vmatprep.subr.mxu0 0.0
  %1852 = vmatpush1.msra.mxu0 0.0
  %1853 = vmatprep.subr.mxu0 0.0
  %1854 = vmatpush1.msra.mxu0 0.0
  %1855 = vmatprep.subr.mxu0 0.0
  %1856 = vmatpush1.msra.mxu0 0.0
  %1857 = vmatprep.subr.mxu0 0.0
  %1858 = vmatpush1.msra.mxu0 0.0
  %1859 = vmatprep.subr.mxu0 0.0
  %1860 = vmatpush1.msra.mxu0 0.0
  %1861 = vmatprep.subr.mxu0 0.0
  %1862 = vmatpush1.msra.mxu0 0.0
  %1863 = vmatprep.subr.mxu0 0.0
  %1864 = vmatpush1.msra.mxu0 0.0
  %1865 = vmatprep.subr.mxu0 0.0
  %1866 = vmatpush1.msra.mxu0 0.0
  %1867 = vmatprep.subr.mxu0 0.0
  %1868 = vmatpush1.msra.mxu0 0.0
  %1869 = vmatprep.subr.mxu0 0.0
  %1870 = vmatpush1.msra.mxu0 0.0
  %1871 = vmatprep.subr.mxu0 0.0
  %1872 = vmatpush1.msra.mxu0 0.0
  %1873 = vmatprep.subr.mxu0 0.0
  %1874 = vmatpush1.msra.mxu0 0.0
  %1875 = vmatprep.subr.mxu0 0.0
  %1876 = vmatpush1.msra.mxu0 0.0
  %1877 = vmatprep.subr.mxu0 0.0
  %1878 = vmatpush1.msra.mxu0 0.0
  %1879 = vmatprep.subr.mxu0 0.0
  %1880 = vmatpush1.msra.mxu0 0.0
  %1881 = vmatprep.subr.mxu0 0.0
  %1882 = vmatpush1.msra.mxu0 0.0
  %1883 = vmatprep.subr.mxu0 0.0
  %1884 = vmatpush1.msra.mxu0 0.0
  %1885 = vmatprep.subr.mxu0 0.0
  %1886 = vmatpush1.msra.mxu0 0.0
  %1887 = vmatprep.subr.mxu0 0.0
  %1888 = vmatpush1.msra.mxu0 0.0
  %1889 = vmatprep.subr.mxu0 0.0
  %1890 = vmatpush1.msra.mxu0 0.0
  %1891 = vmatprep.subr.mxu0 0.0
  %1892 = vmatpush1.msra.mxu0 0.0
  %1893 = vmatprep.subr.mxu0 0.0
  %1894 = vmatpush1.msra.mxu0 0.0
  %1895 = vmatprep.subr.mxu0 0.0
  %1896 = vmatpush1.msra.mxu0 0.0
  %1897 = vmatprep.subr.mxu0 0.0
  %1898 = vmatpush1.msra.mxu0 0.0
  %1899 = vmatprep.subr.mxu0 0.0
  %1900 = vmatpush1.msra.mxu0 0.0
  %1901 = vmatprep.subr.mxu0 0.0
  %1902 = vmatpush1.msra.mxu0 0.0
  %1903 = vmatprep.subr.mxu0 0.0
  %1904 = vmatpush1.msra.mxu0 0.0
  %1905 = vmatprep.subr.mxu0 0.0
  %1906 = vmatpush1.msra.mxu0 0.0
  %1907 = vmatprep.mubr.f32.mxu0 0.0
  %1908 = vmatmul.mubr.f32.gmra.mrb[0].mxu0 %v1841
  %v1909 = vpop.f32.mrb[0].mxu0
  %v1910 = vadd.f32 0.0, %v1909
  %v1911 = vpop.f32.mrb[0].mxu0
  %1912 = vdwg.mxu0
  %v1913 = vadd.f32 %v1231, %v1910
  %v1914 = vxor.u32 %v1913, 2147483648
  %v1915 = vmul.f32 %v1914, 1.442695
  %v1916 = vpow.pop %v1915
  %v1917 = vadd.f32 %v1916, 1.0
  %v1918 = vrcp.pop %v1917
  %v1919 = vmul.f32 1.0, %v1918
  %v1920 = vtanh.pop %v1913
  %v1921 = vld [vmem:[#allocation6] sm:$0xff]
  %1923 = vrot.lane.b32.xlu0 %v1921, 32
  %v1924 = vpop.permute.xlu0 %1923
  %v1926 = vmul.f32 %v1919, %v1924
  %1928 = vrot.lane.b32.xlu0 %v1920, 32
  %v1929 = vpop.permute.xlu0 %1928
  %v1931 = vmul.f32 %v1919, %v1929
  %1933 = vrot.lane.b32.xlu0 %v1931, 32
  %v1934 = vpop.permute.xlu0 %1933
  %v1936 = vadd.f32 %v1926, %v1934
  %1938 = vrot.lane.b32.xlu0 %v1936, 96
  %v1939 = vpop.permute.xlu0 %1938
  %1941 = vst.msk [vmem:[#allocation6] sm:$0xff] %vm187, %v1939
  %v1942 = vtanh.pop %v1936
  %1944 = vrot.lane.b32.xlu0 %v1942, 32
  %v1945 = vpop.permute.xlu0 %1944
  %v1947 = vmul.f32 %v1919, %v1945
  %1949 = vrot.lane.b32.xlu0 %v1947, 64
  %v1950 = vpop.permute.xlu0 %1949
  %1952 = vst.msk [vmem:[#allocation5] sm:$0xff] %vm187, %v1950
  %s1953 = scalar_lea.vmem [#allocation7], 40
  %1954 = vst.msk [vmem:[%s1953] sm:$0xff] %vm187, %v1950
  %v1955 = vld [vmem:[#allocation5] sm:$0xff]
  %v1956 = vld [vmem:[%s5] sm:$0xff]
  %v1957 = vld [vmem:[%s5 + $0x8] sm:$0xff]
  %v1958 = vld [vmem:[%s5 + $0x10] sm:$0xff]
  %v1959 = vld [vmem:[%s5 + $0x18] sm:$0xff]
  %v1961 = vsel %vm187, %v1955, 0
  %1963 = vmatprep.subr.mxu0 0.0
  %1964 = vmatpush1.msra.mxu0 %v1956
  %1965 = vmatprep.subr.mxu0 0.0
  %1966 = vmatpush1.msra.mxu0 %v1957
  %1967 = vmatprep.subr.mxu0 0.0
  %1968 = vmatpush1.msra.mxu0 %v1958
  %1969 = vmatprep.subr.mxu0 0.0
  %1970 = vmatpush1.msra.mxu0 %v1959
  %1971 = vmatprep.subr.mxu0 0.0
  %1972 = vmatpush1.msra.mxu0 0.0
  %1973 = vmatprep.subr.mxu0 0.0
  %1974 = vmatpush1.msra.mxu0 0.0
  %1975 = vmatprep.subr.mxu0 0.0
  %1976 = vmatpush1.msra.mxu0 0.0
  %1977 = vmatprep.subr.mxu0 0.0
  %1978 = vmatpush1.msra.mxu0 0.0
  %1979 = vmatprep.subr.mxu0 0.0
  %1980 = vmatpush1.msra.mxu0 0.0
  %1981 = vmatprep.subr.mxu0 0.0
  %1982 = vmatpush1.msra.mxu0 0.0
  %1983 = vmatprep.subr.mxu0 0.0
  %1984 = vmatpush1.msra.mxu0 0.0
  %1985 = vmatprep.subr.mxu0 0.0
  %1986 = vmatpush1.msra.mxu0 0.0
  %1987 = vmatprep.subr.mxu0 0.0
  %1988 = vmatpush1.msra.mxu0 0.0
  %1989 = vmatprep.subr.mxu0 0.0
  %1990 = vmatpush1.msra.mxu0 0.0
  %1991 = vmatprep.subr.mxu0 0.0
  %1992 = vmatpush1.msra.mxu0 0.0
  %1993 = vmatprep.subr.mxu0 0.0
  %1994 = vmatpush1.msra.mxu0 0.0
  %1995 = vmatprep.subr.mxu0 0.0
  %1996 = vmatpush1.msra.mxu0 0.0
  %1997 = vmatprep.subr.mxu0 0.0
  %1998 = vmatpush1.msra.mxu0 0.0
  %1999 = vmatprep.subr.mxu0 0.0
  %2000 = vmatpush1.msra.mxu0 0.0
  %2001 = vmatprep.subr.mxu0 0.0
  %2002 = vmatpush1.msra.mxu0 0.0
  %2003 = vmatprep.subr.mxu0 0.0
  %2004 = vmatpush1.msra.mxu0 0.0
  %2005 = vmatprep.subr.mxu0 0.0
  %2006 = vmatpush1.msra.mxu0 0.0
  %2007 = vmatprep.subr.mxu0 0.0
  %2008 = vmatpush1.msra.mxu0 0.0
  %2009 = vmatprep.subr.mxu0 0.0
  %2010 = vmatpush1.msra.mxu0 0.0
  %2011 = vmatprep.subr.mxu0 0.0
  %2012 = vmatpush1.msra.mxu0 0.0
  %2013 = vmatprep.subr.mxu0 0.0
  %2014 = vmatpush1.msra.mxu0 0.0
  %2015 = vmatprep.subr.mxu0 0.0
  %2016 = vmatpush1.msra.mxu0 0.0
  %2017 = vmatprep.subr.mxu0 0.0
  %2018 = vmatpush1.msra.mxu0 0.0
  %2019 = vmatprep.subr.mxu0 0.0
  %2020 = vmatpush1.msra.mxu0 0.0
  %2021 = vmatprep.subr.mxu0 0.0
  %2022 = vmatpush1.msra.mxu0 0.0
  %2023 = vmatprep.subr.mxu0 0.0
  %2024 = vmatpush1.msra.mxu0 0.0
  %2025 = vmatprep.subr.mxu0 0.0
  %2026 = vmatpush1.msra.mxu0 0.0
  %2027 = vmatprep.mubr.f32.mxu0 0.0
  %2028 = vmatmul.mubr.f32.gmra.mrb[0].mxu0 %v1961
  %v2029 = vpop.f32.mrb[0].mxu0
  %v2030 = vadd.f32 0.0, %v2029
  %v2031 = vpop.f32.mrb[0].mxu0
  %2032 = vdwg.mxu0
  %v2033 = vadd.f32 %v1231, %v2030
  %v2034 = vxor.u32 %v2033, 2147483648
  %v2035 = vmul.f32 %v2034, 1.442695
  %v2036 = vpow.pop %v2035
  %v2037 = vadd.f32 %v2036, 1.0
  %v2038 = vrcp.pop %v2037
  %v2039 = vmul.f32 1.0, %v2038
  %v2040 = vtanh.pop %v2033
  %v2041 = vld [vmem:[#allocation6] sm:$0xff]
  %2043 = vrot.lane.b32.xlu0 %v2041, 32
  %v2044 = vpop.permute.xlu0 %2043
  %v2046 = vmul.f32 %v2039, %v2044
  %2048 = vrot.lane.b32.xlu0 %v2040, 32
  %v2049 = vpop.permute.xlu0 %2048
  %v2051 = vmul.f32 %v2039, %v2049
  %2053 = vrot.lane.b32.xlu0 %v2051, 32
  %v2054 = vpop.permute.xlu0 %2053
  %v2056 = vadd.f32 %v2046, %v2054
  %2058 = vrot.lane.b32.xlu0 %v2056, 96
  %v2059 = vpop.permute.xlu0 %2058
  %2061 = vst.msk [vmem:[#allocation6] sm:$0xff] %vm187, %v2059
  %v2062 = vtanh.pop %v2056
  %2064 = vrot.lane.b32.xlu0 %v2062, 32
  %v2065 = vpop.permute.xlu0 %2064
  %v2067 = vmul.f32 %v2039, %v2065
  %2069 = vrot.lane.b32.xlu0 %v2067, 64
  %v2070 = vpop.permute.xlu0 %2069
  %2072 = vst.msk [vmem:[#allocation5] sm:$0xff] %vm187, %v2070
  %s2073 = scalar_lea.vmem [#allocation7], 48
  %2074 = vst.msk [vmem:[%s2073] sm:$0xff] %vm187, %v2070
  %v2075 = vld [vmem:[#allocation5] sm:$0xff]
  %v2076 = vld [vmem:[%s5] sm:$0xff]
  %v2077 = vld [vmem:[%s5 + $0x8] sm:$0xff]
  %v2078 = vld [vmem:[%s5 + $0x10] sm:$0xff]
  %v2079 = vld [vmem:[%s5 + $0x18] sm:$0xff]
  %v2081 = vsel %vm187, %v2075, 0
  %2083 = vmatprep.subr.mxu0 0.0
  %2084 = vmatpush1.msra.mxu0 %v2076
  %2085 = vmatprep.subr.mxu0 0.0
  %2086 = vmatpush1.msra.mxu0 %v2077
  %2087 = vmatprep.subr.mxu0 0.0
  %2088 = vmatpush1.msra.mxu0 %v2078
  %2089 = vmatprep.subr.mxu0 0.0
  %2090 = vmatpush1.msra.mxu0 %v2079
  %2091 = vmatprep.subr.mxu0 0.0
  %2092 = vmatpush1.msra.mxu0 0.0
  %2093 = vmatprep.subr.mxu0 0.0
  %2094 = vmatpush1.msra.mxu0 0.0
  %2095 = vmatprep.subr.mxu0 0.0
  %2096 = vmatpush1.msra.mxu0 0.0
  %2097 = vmatprep.subr.mxu0 0.0
  %2098 = vmatpush1.msra.mxu0 0.0
  %2099 = vmatprep.subr.mxu0 0.0
  %2100 = vmatpush1.msra.mxu0 0.0
  %2101 = vmatprep.subr.mxu0 0.0
  %2102 = vmatpush1.msra.mxu0 0.0
  %2103 = vmatprep.subr.mxu0 0.0
  %2104 = vmatpush1.msra.mxu0 0.0
  %2105 = vmatprep.subr.mxu0 0.0
  %2106 = vmatpush1.msra.mxu0 0.0
  %2107 = vmatprep.subr.mxu0 0.0
  %2108 = vmatpush1.msra.mxu0 0.0
  %2109 = vmatprep.subr.mxu0 0.0
  %2110 = vmatpush1.msra.mxu0 0.0
  %2111 = vmatprep.subr.mxu0 0.0
  %2112 = vmatpush1.msra.mxu0 0.0
  %2113 = vmatprep.subr.mxu0 0.0
  %2114 = vmatpush1.msra.mxu0 0.0
  %2115 = vmatprep.subr.mxu0 0.0
  %2116 = vmatpush1.msra.mxu0 0.0
  %2117 = vmatprep.subr.mxu0 0.0
  %2118 = vmatpush1.msra.mxu0 0.0
  %2119 = vmatprep.subr.mxu0 0.0
  %2120 = vmatpush1.msra.mxu0 0.0
  %2121 = vmatprep.subr.mxu0 0.0
  %2122 = vmatpush1.msra.mxu0 0.0
  %2123 = vmatprep.subr.mxu0 0.0
  %2124 = vmatpush1.msra.mxu0 0.0
  %2125 = vmatprep.subr.mxu0 0.0
  %2126 = vmatpush1.msra.mxu0 0.0
  %2127 = vmatprep.subr.mxu0 0.0
  %2128 = vmatpush1.msra.mxu0 0.0
  %2129 = vmatprep.subr.mxu0 0.0
  %2130 = vmatpush1.msra.mxu0 0.0
  %2131 = vmatprep.subr.mxu0 0.0
  %2132 = vmatpush1.msra.mxu0 0.0
  %2133 = vmatprep.subr.mxu0 0.0
  %2134 = vmatpush1.msra.mxu0 0.0
  %2135 = vmatprep.subr.mxu0 0.0
  %2136 = vmatpush1.msra.mxu0 0.0
  %2137 = vmatprep.subr.mxu0 0.0
  %2138 = vmatpush1.msra.mxu0 0.0
  %2139 = vmatprep.subr.mxu0 0.0
  %2140 = vmatpush1.msra.mxu0 0.0
  %2141 = vmatprep.subr.mxu0 0.0
  %2142 = vmatpush1.msra.mxu0 0.0
  %2143 = vmatprep.subr.mxu0 0.0
  %2144 = vmatpush1.msra.mxu0 0.0
  %2145 = vmatprep.subr.mxu0 0.0
  %2146 = vmatpush1.msra.mxu0 0.0
  %2147 = vmatprep.mubr.f32.mxu0 0.0
  %2148 = vmatmul.mubr.f32.gmra.mrb[0].mxu0 %v2081
  %v2149 = vpop.f32.mrb[0].mxu0
  %v2150 = vadd.f32 0.0, %v2149
  %v2151 = vpop.f32.mrb[0].mxu0
  %2152 = vdwg.mxu0
  %v2153 = vadd.f32 %v1231, %v2150
  %v2154 = vxor.u32 %v2153, 2147483648
  %v2155 = vmul.f32 %v2154, 1.442695
  %v2156 = vpow.pop %v2155
  %v2157 = vadd.f32 %v2156, 1.0
  %v2158 = vrcp.pop %v2157
  %v2159 = vmul.f32 1.0, %v2158
  %v2160 = vtanh.pop %v2153
  %v2161 = vld [vmem:[#allocation6] sm:$0xff]
  %2163 = vrot.lane.b32.xlu0 %v2161, 32
  %v2164 = vpop.permute.xlu0 %2163
  %v2166 = vmul.f32 %v2159, %v2164
  %2168 = vrot.lane.b32.xlu0 %v2160, 32
  %v2169 = vpop.permute.xlu0 %2168
  %v2171 = vmul.f32 %v2159, %v2169
  %2173 = vrot.lane.b32.xlu0 %v2171, 32
  %v2174 = vpop.permute.xlu0 %2173
  %v2176 = vadd.f32 %v2166, %v2174
  %2178 = vrot.lane.b32.xlu0 %v2176, 96
  %v2179 = vpop.permute.xlu0 %2178
  %2181 = vst.msk [vmem:[#allocation6] sm:$0xff] %vm187, %v2179
  %v2182 = vtanh.pop %v2176
  %2184 = vrot.lane.b32.xlu0 %v2182, 32
  %v2185 = vpop.permute.xlu0 %2184
  %v2187 = vmul.f32 %v2159, %v2185
  %2189 = vrot.lane.b32.xlu0 %v2187, 64
  %v2190 = vpop.permute.xlu0 %2189
  %2192 = vst.msk [vmem:[#allocation5] sm:$0xff] %vm187, %v2190
  %s2193 = scalar_lea.vmem [#allocation7], 56
  %2194 = vst.msk [vmem:[%s2193] sm:$0xff] %vm187, %v2190
  %v2195 = vld [vmem:[#allocation7] sm:$0xff]
  %v2196 = vld [vmem:[#allocation7 + $0x8] sm:$0xff]
  %v2197 = vld [vmem:[#allocation7 + $0x10] sm:$0xff]
  %v2198 = vld [vmem:[#allocation7 + $0x18] sm:$0xff]
  %v2199 = vld [vmem:[#allocation7 + $0x20] sm:$0xff]
  %v2200 = vld [vmem:[#allocation7 + $0x28] sm:$0xff]
  %v2201 = vld [vmem:[#allocation7 + $0x30] sm:$0xff]
  %v2202 = vld [vmem:[#allocation7 + $0x38] sm:$0xff]
  %v2203 = vld [vmem:[%s7] sm:$0xff]
  %v2204 = vld [vmem:[%s7 + $0x8] sm:$0xff]
  %v2205 = vld [vmem:[%s7 + $0x10] sm:$0xff]
  %v2206 = vld [vmem:[%s7 + $0x18] sm:$0xff]
  %v2207 = vld [vmem:[%s8] sm:$0x1]
  %v2209 = vlaneseq
  %v2210 = vshrl.u32 %v2209, 7
  %v2211 = vsub.s32 0, %v2210
  %v2212 = vrot.slane %v2207, %v2211
  %v2215 = vsel %vm187, %v2195, 0
  %v2218 = vsel %vm187, %v2196, 0
  %v2221 = vsel %vm187, %v2197, 0
  %v2224 = vsel %vm187, %v2198, 0
  %v2227 = vsel %vm187, %v2199, 0
  %v2230 = vsel %vm187, %v2200, 0
  %v2233 = vsel %vm187, %v2201, 0
  %v2236 = vsel %vm187, %v2202, 0
  %2238 = vmatprep.subr.mxu0 0.0
  %2239 = vmatpush1.msra.mxu0 %v2203
  %2240 = vmatprep.subr.mxu0 0.0
  %2241 = vmatpush1.msra.mxu0 %v2204
  %2242 = vmatprep.subr.mxu0 0.0
  %2243 = vmatpush1.msra.mxu0 %v2205
  %2244 = vmatprep.subr.mxu0 0.0
  %2245 = vmatpush1.msra.mxu0 %v2206
  %2246 = vmatprep.subr.mxu0 0.0
  %2247 = vmatpush1.msra.mxu0 0.0
  %2248 = vmatprep.subr.mxu0 0.0
  %2249 = vmatpush1.msra.mxu0 0.0
  %2250 = vmatprep.subr.mxu0 0.0
  %2251 = vmatpush1.msra.mxu0 0.0
  %2252 = vmatprep.subr.mxu0 0.0
  %2253 = vmatpush1.msra.mxu0 0.0
  %2254 = vmatprep.subr.mxu0 0.0
  %2255 = vmatpush1.msra.mxu0 0.0
  %2256 = vmatprep.subr.mxu0 0.0
  %2257 = vmatpush1.msra.mxu0 0.0
  %2258 = vmatprep.subr.mxu0 0.0
  %2259 = vmatpush1.msra.mxu0 0.0
  %2260 = vmatprep.subr.mxu0 0.0
  %2261 = vmatpush1.msra.mxu0 0.0
  %2262 = vmatprep.subr.mxu0 0.0
  %2263 = vmatpush1.msra.mxu0 0.0
  %2264 = vmatprep.subr.mxu0 0.0
  %2265 = vmatpush1.msra.mxu0 0.0
  %2266 = vmatprep.subr.mxu0 0.0
  %2267 = vmatpush1.msra.mxu0 0.0
  %2268 = vmatprep.subr.mxu0 0.0
  %2269 = vmatpush1.msra.mxu0 0.0
  %2270 = vmatprep.subr.mxu0 0.0
  %2271 = vmatpush1.msra.mxu0 0.0
  %2272 = vmatprep.subr.mxu0 0.0
  %2273 = vmatpush1.msra.mxu0 0.0
  %2274 = vmatprep.subr.mxu0 0.0
  %2275 = vmatpush1.msra.mxu0 0.0
  %2276 = vmatprep.subr.mxu0 0.0
  %2277 = vmatpush1.msra.mxu0 0.0
  %2278 = vmatprep.subr.mxu0 0.0
  %2279 = vmatpush1.msra.mxu0 0.0
  %2280 = vmatprep.subr.mxu0 0.0
  %2281 = vmatpush1.msra.mxu0 0.0
  %2282 = vmatprep.subr.mxu0 0.0
  %2283 = vmatpush1.msra.mxu0 0.0
  %2284 = vmatprep.subr.mxu0 0.0
  %2285 = vmatpush1.msra.mxu0 0.0
  %2286 = vmatprep.subr.mxu0 0.0
  %2287 = vmatpush1.msra.mxu0 0.0
  %2288 = vmatprep.subr.mxu0 0.0
  %2289 = vmatpush1.msra.mxu0 0.0
  %2290 = vmatprep.subr.mxu0 0.0
  %2291 = vmatpush1.msra.mxu0 0.0
  %2292 = vmatprep.subr.mxu0 0.0
  %2293 = vmatpush1.msra.mxu0 0.0
  %2294 = vmatprep.subr.mxu0 0.0
  %2295 = vmatpush1.msra.mxu0 0.0
  %2296 = vmatprep.subr.mxu0 0.0
  %2297 = vmatpush1.msra.mxu0 0.0
  %2298 = vmatprep.subr.mxu0 0.0
  %2299 = vmatpush1.msra.mxu0 0.0
  %2300 = vmatprep.subr.mxu0 0.0
  %2301 = vmatpush1.msra.mxu0 0.0
  %2302 = vmatprep.mubr.f32.mxu0 0.0
  %2303 = vmatmul.mubr.f32.gmra.mrb[0].mxu0 %v2215
  %v2304 = vpop.f32.mrb[0].mxu0
  %v2305 = vadd.f32 %v2212, %v2304
  %v2306 = vpop.f32.mrb[0].mxu0
  %2307 = vmatprep.mubr.f32.mxu0 0.0
  %2308 = vmatmul.mubr.f32.gmra.mrb[0].mxu0 %v2218
  %v2309 = vpop.f32.mrb[0].mxu0
  %v2310 = vadd.f32 %v2212, %v2309
  %v2311 = vpop.f32.mrb[0].mxu0
  %2312 = vmatprep.mubr.f32.mxu0 0.0
  %2313 = vmatmul.mubr.f32.gmra.mrb[0].mxu0 %v2221
  %v2314 = vpop.f32.mrb[0].mxu0
  %v2315 = vadd.f32 %v2212, %v2314
  %v2316 = vpop.f32.mrb[0].mxu0
  %2317 = vmatprep.mubr.f32.mxu0 0.0
  %2318 = vmatmul.mubr.f32.gmra.mrb[0].mxu0 %v2224
  %v2319 = vpop.f32.mrb[0].mxu0
  %v2320 = vadd.f32 %v2212, %v2319
  %v2321 = vpop.f32.mrb[0].mxu0
  %2322 = vmatprep.mubr.f32.mxu0 0.0
  %2323 = vmatmul.mubr.f32.gmra.mrb[0].mxu0 %v2227
  %v2324 = vpop.f32.mrb[0].mxu0
  %v2325 = vadd.f32 %v2212, %v2324
  %v2326 = vpop.f32.mrb[0].mxu0
  %2327 = vmatprep.mubr.f32.mxu0 0.0
  %2328 = vmatmul.mubr.f32.gmra.mrb[0].mxu0 %v2230
  %v2329 = vpop.f32.mrb[0].mxu0
  %v2330 = vadd.f32 %v2212, %v2329
  %v2331 = vpop.f32.mrb[0].mxu0
  %2332 = vmatprep.mubr.f32.mxu0 0.0
  %2333 = vmatmul.mubr.f32.gmra.mrb[0].mxu0 %v2233
  %v2334 = vpop.f32.mrb[0].mxu0
  %v2335 = vadd.f32 %v2212, %v2334
  %v2336 = vpop.f32.mrb[0].mxu0
  %2337 = vmatprep.mubr.f32.mxu0 0.0
  %2338 = vmatmul.mubr.f32.gmra.mrb[0].mxu0 %v2236
  %v2339 = vpop.f32.mrb[0].mxu0
  %v2340 = vadd.f32 %v2212, %v2339
  %v2341 = vpop.f32.mrb[0].mxu0
  %2342 = vdwg.mxu0
  %v2343 = vtanh.pop %v2305
  %v2344 = vtanh.pop %v2310
  %v2345 = vtanh.pop %v2315
  %v2346 = vtanh.pop %v2320
  %v2347 = vtanh.pop %v2325
  %v2348 = vtanh.pop %v2330
  %v2349 = vtanh.pop %v2335
  %v2350 = vtanh.pop %v2340
  %2351 = vst.msk [vmem:[%s9] sm:$0xff] %vm49, %v2343
  %2352 = vst.msk [vmem:[%s9 + $0x8] sm:$0xff] %vm49, %v2344
  %2353 = vst.msk [vmem:[%s9 + $0x10] sm:$0xff] %vm49, %v2345
  %2354 = vst.msk [vmem:[%s9 + $0x18] sm:$0xff] %vm49, %v2346
  %2355 = vst.msk [vmem:[%s9 + $0x20] sm:$0xff] %vm49, %v2347
  %2356 = vst.msk [vmem:[%s9 + $0x28] sm:$0xff] %vm49, %v2348
  %2357 = vst.msk [vmem:[%s9 + $0x30] sm:$0xff] %vm49, %v2349
  %2358 = vst.msk [vmem:[%s9 + $0x38] sm:$0xff] %vm49, %v2350
  // Predicated region
  $region38: #{lstm_autoencoder_forward.1} parent=0 // pred_check
    _
  $region39: #{lstm_autoencoder_forward.1} parent=0 // pred_check_branch
    %2360 = sbr.rel (0) target = $region41
  $region40: #{lstm_autoencoder_forward.1} parent=0 // pred_region
    _
  $region41: #{lstm_autoencoder_forward.1} parent=0 // pred_fallthru
    _
  // Predicated region
  $region42: #{lstm_autoencoder_forward.1} parent=0 // pred_check
    _
  $region43: #{lstm_autoencoder_forward.1} parent=0 // pred_check_branch
    %2362 = sbr.rel (0) target = $region45
  $region44: #{lstm_autoencoder_forward.1} parent=0 // pred_region
    _
  $region45: #{lstm_autoencoder_forward.1} parent=0 // pred_fallthru
    _

</llo_original>
